<compile_context>
chip_gen: v6e
topology: v6e:2x2x1
jax: 0.10.0
libtpu: 0.0.40
codegen_flags: <defaults>
</compile_context>

<pallas_src>
import jax
import jax.numpy as jnp
from jax.experimental import pallas as pl
from jax.experimental.pallas import tpu as pltpu

C_IN = 1000     # Conv1d(1000, 400) input channels
C_MID = 400     # channels = 400
C_OUT = 400     # fc_layer = Linear(400, 400)   (dataset = 'thumosimages')
C_PAD = 512     # 400 padded to a multiple of 128 for lane-dense intermediate matmuls
BN_EPS = 1e-5   # PyTorch BatchNorm1d default eps


def repr_kernel(x_ref, w1_ref, t1_ref, w2_ref, t2_ref, wf_ref, bf_ref, o_ref):
    # x: (TB, 1000) f32 -> cast to bf16 in-kernel (VPU slot, free while MXU-bound).
    x = x_ref[...].astype(jnp.bfloat16)
    # conv1 (center tap only, BN1 scale folded into w1) + BN1 shift + ReLU
    h1 = jnp.dot(x, w1_ref[...], preferred_element_type=jnp.float32)
    h1 = jnp.maximum(h1 + t1_ref[...], 0.0).astype(jnp.bfloat16)
    # conv2 (center tap only, BN2 scale folded into w2) + BN2 shift + ReLU
    h2 = jnp.dot(h1, w2_ref[...], preferred_element_type=jnp.float32)
    h2 = jnp.maximum(h2 + t2_ref[...], 0.0).astype(jnp.bfloat16)
    # fc_layer: Linear(400, 400); write only the 400 real output columns.
    o_ref[...] = jnp.dot(h2, wf_ref[...], preferred_element_type=jnp.float32) + bf_ref[...]


def representation_forward(x, params):
    B = x.shape[0]

    # Batch tile: single tile for tiny batches; otherwise ~B/2 (multiple of 8),
    # capped at 512 -> >=2 grid steps for v7x's two TensorCores, large-M tiles
    # for MXU occupancy / HBM roofline on v5e/v6e.
    if B <= 16:
        TB = B
    else:
        TB = min(512, (((B + 1) // 2 + 7) // 8) * 8)
    grid = (pl.cdiv(B, TB),)   # ragged edge block handled by Pallas; no batch pad

    const = lambda i: (0, 0)   # weights/shifts: same block every tile -> stay resident
    in_specs = [pl.BlockSpec((TB, C_IN), lambda i: (i, 0))] + \
               [pl.BlockSpec(p.shape, const) for p in params]
    out_spec = pl.BlockSpec((TB, C_OUT), lambda i: (i, 0))

    flops = 2 * B * (C_IN * C_PAD + C_PAD * C_PAD + C_PAD * C_OUT)
    bytes_accessed = (B * C_IN * 4
                      + sum(int(p.size) * p.dtype.itemsize for p in params)
                      + B * C_OUT * 4)

    out = pl.pallas_call(
        repr_kernel,
        out_shape=jax.ShapeDtypeStruct((B, C_OUT), jnp.float32),
        grid_spec=pltpu.PrefetchScalarGridSpec(
            num_scalar_prefetch=0,
            grid=grid,
            in_specs=in_specs,
            out_specs=out_spec,
        ),
        compiler_params=pltpu.CompilerParams(
            dimension_semantics=("parallel",),   # batch tiles independent (2 TCs on v7x)
            vmem_limit_bytes=32 << 20,           # ~10 MiB footprint at TB=512; <= v7x scoped limit
        ),
        cost_estimate=pl.CostEstimate(
            flops=flops, transcendentals=0, bytes_accessed=bytes_accessed),
    )(x, *params)
    return out


def init_params(key):
    """Raw parameters in PyTorch layouts (eval-mode BN running stats)."""
    k1, k2, k3, k4, kbn = jax.random.split(key, 5)
    # nn.Conv1d weight layout: (out_channels, in_channels, kernel_size=3), bias=False
    conv1_w = 0.02 * jax.random.normal(k1, (C_MID, C_IN, 3), jnp.float32)
    conv2_w = 0.05 * jax.random.normal(k2, (C_MID, C_MID, 3), jnp.float32)
    # nn.Linear weight layout: (out_features, in_features)
    fc_w = 0.05 * jax.random.normal(k3, (C_OUT, C_MID), jnp.float32)
    fc_b = 0.10 * jax.random.normal(k4, (C_OUT,), jnp.float32)

    kb1, kb2, kb3, kb4 = jax.random.split(kbn, 4)

    def bn(kg, kb, c):
        gamma = 1.0 + 0.1 * jax.random.normal(kg, (c,), jnp.float32)
        beta = 0.1 * jax.random.normal(kb, (c,), jnp.float32)
        mean = jnp.zeros((c,), jnp.float32)
        var = jnp.ones((c,), jnp.float32)
        return gamma, beta, mean, var

    bn1 = bn(kb1, kb2, C_MID)
    bn2 = bn(kb3, kb4, C_MID)
    return conv1_w, bn1, conv2_w, bn2, fc_w, fc_b


def prepare_params(raw):
    """Fold BN (eval semantics), take the conv center tap, pad intermediate channel
    dims to 512 lanes, keep the final output at 400 columns, cast weights to bf16."""
    conv1_w, bn1, conv2_w, bn2, fc_w, fc_b = raw

    def fold(gamma, beta, mean, var):
        scale = gamma / jnp.sqrt(var + BN_EPS)
        shift = beta - mean * scale
        return scale, shift

    s1, t1 = fold(*bn1)
    s2, t2 = fold(*bn2)

    # L=1 with pad=1: only kernel tap index 1 multiplies real data; taps 0/2 hit zeros.
    w1 = conv1_w[:, :, 1].T * s1[None, :]   # (C_IN, C_MID), BN1 scale folded in
    w2 = conv2_w[:, :, 1].T * s2[None, :]   # (C_MID, C_MID), BN2 scale folded in
    wf = fc_w.T                             # (C_MID, C_OUT)
    bf = fc_b

    pc = C_PAD - C_MID                      # zero-pad channels 400 -> 512 (inert through ReLU)
    w1 = jnp.pad(w1, ((0, 0), (0, pc)))             # (1000, 512)
    w2 = jnp.pad(w2, ((0, pc), (0, pc)))            # (512, 512)
    wf = jnp.pad(wf, ((0, pc), (0, 0)))             # (512, 400)  -- output stays 400 wide
    t1 = jnp.pad(t1, (0, pc)).reshape(1, C_PAD)
    t2 = jnp.pad(t2, (0, pc)).reshape(1, C_PAD)
    bf = bf.reshape(1, C_OUT)

    return (w1.astype(jnp.bfloat16), t1,
            w2.astype(jnp.bfloat16), t2,
            wf.astype(jnp.bfloat16), bf)


def reference(x, params):
    """Same math as the kernel (bf16 operands, f32 accumulation), in plain JAX."""
    w1, t1, w2, t2, wf, bf = params
    hp = jax.lax.Precision.HIGHEST
    xb = x.astype(jnp.bfloat16)
    h1 = jnp.maximum(jnp.dot(xb, w1, preferred_element_type=jnp.float32, precision=hp) + t1, 0.0)
    h1 = h1.astype(jnp.bfloat16)
    h2 = jnp.maximum(jnp.dot(h1, w2, preferred_element_type=jnp.float32, precision=hp) + t2, 0.0)
    h2 = h2.astype(jnp.bfloat16)
    return jnp.dot(h2, wf, preferred_element_type=jnp.float32, precision=hp) + bf


if __name__ == "__main__":
    key = jax.random.PRNGKey(0)
    kx, kp = jax.random.split(key)
    B = 8
    x = jax.random.normal(kx, (B, C_IN), jnp.float32)
    params = prepare_params(init_params(kp))

    out = representation_forward(x, params)
    out = jax.block_until_ready(out)

    ref = reference(x, params)
    assert out.shape == (B, C_OUT)
    assert jnp.allclose(out, ref, atol=2e-3, rtol=2e-3), float(jnp.max(jnp.abs(out - ref)))
    print("KERNEL_OK")
</pallas_src>

<mosaic_0001>
module attributes {stable_mosaic.version = 11 : i64} {
  func.func @repr_kernel(%arg0: i32, %arg1: memref<8x1000xf32, #tpu.memory_space<vmem>>, %arg2: memref<1000x512xbf16, #tpu.memory_space<vmem>>, %arg3: memref<1x512xf32, #tpu.memory_space<vmem>>, %arg4: memref<512x512xbf16, #tpu.memory_space<vmem>>, %arg5: memref<1x512xf32, #tpu.memory_space<vmem>>, %arg6: memref<512x400xbf16, #tpu.memory_space<vmem>>, %arg7: memref<1x400xf32, #tpu.memory_space<vmem>>, %arg8: memref<8x400xf32, #tpu.memory_space<vmem>>) attributes {dimension_semantics = [#tpu.dimension_semantics<parallel>], iteration_bounds = array<i64: 1>, scalar_prefetch = 0 : i64, scratch_operands = 0 : i64, tpu.core_type = #tpu.core_type<tc>, window_params = [{transform_indices = @transform_0, window_bounds = array<i64: 8, 1000>}, {pipeline_mode = #tpu.pipeline_mode<synchronous>, transform_indices = @transform_1, window_bounds = array<i64: 1000, 512>}, {pipeline_mode = #tpu.pipeline_mode<synchronous>, transform_indices = @transform_2, window_bounds = array<i64: 1, 512>}, {pipeline_mode = #tpu.pipeline_mode<synchronous>, transform_indices = @transform_3, window_bounds = array<i64: 512, 512>}, {pipeline_mode = #tpu.pipeline_mode<synchronous>, transform_indices = @transform_4, window_bounds = array<i64: 1, 512>}, {pipeline_mode = #tpu.pipeline_mode<synchronous>, transform_indices = @transform_5, window_bounds = array<i64: 512, 400>}, {pipeline_mode = #tpu.pipeline_mode<synchronous>, transform_indices = @transform_6, window_bounds = array<i64: 1, 400>}, {transform_indices = @transform_7, window_bounds = array<i64: 8, 400>}]} {
    %c0 = arith.constant 0 : index
    %c0_0 = arith.constant 0 : index
    %0 = vector.load %arg1[%c0, %c0_0] : memref<8x1000xf32, #tpu.memory_space<vmem>>, vector<8x1000xf32>
    %1 = arith.truncf %0 : vector<8x1000xf32> to vector<8x1000xbf16>
    %c0_1 = arith.constant 0 : index
    %c0_2 = arith.constant 0 : index
    %2 = vector.load %arg2[%c0_1, %c0_2] : memref<1000x512xbf16, #tpu.memory_space<vmem>>, vector<1000x512xbf16>
    %cst = arith.constant dense<0.000000e+00> : vector<8x512xf32>
    %3 = tpu.matmul %1, %2, %cst {dimension_numbers = #tpu.dot_dimension_numbers<[1], [0], [0], [1], [0, 0, 1, 1], [], []>} : vector<8x1000xbf16>, vector<1000x512xbf16>, vector<8x512xf32> -> vector<8x512xf32>
    %c0_3 = arith.constant 0 : index
    %c0_4 = arith.constant 0 : index
    %4 = vector.load %arg3[%c0_3, %c0_4] : memref<1x512xf32, #tpu.memory_space<vmem>>, vector<1x512xf32>
    %5 = vector.broadcast %4 : vector<1x512xf32> to vector<8x512xf32>
    %6 = arith.addf %3, %5 : vector<8x512xf32>
    %cst_5 = arith.constant 0.000000e+00 : f32
    %7 = vector.broadcast %cst_5 : f32 to vector<8x512xf32>
    %8 = arith.maximumf %6, %7 : vector<8x512xf32>
    %9 = arith.truncf %8 : vector<8x512xf32> to vector<8x512xbf16>
    %c0_6 = arith.constant 0 : index
    %c0_7 = arith.constant 0 : index
    %10 = vector.load %arg4[%c0_6, %c0_7] : memref<512x512xbf16, #tpu.memory_space<vmem>>, vector<512x512xbf16>
    %cst_8 = arith.constant dense<0.000000e+00> : vector<8x512xf32>
    %11 = tpu.matmul %9, %10, %cst_8 {dimension_numbers = #tpu.dot_dimension_numbers<[1], [0], [0], [1], [0, 0, 1, 1], [], []>} : vector<8x512xbf16>, vector<512x512xbf16>, vector<8x512xf32> -> vector<8x512xf32>
    %c0_9 = arith.constant 0 : index
    %c0_10 = arith.constant 0 : index
    %12 = vector.load %arg5[%c0_9, %c0_10] : memref<1x512xf32, #tpu.memory_space<vmem>>, vector<1x512xf32>
    %13 = vector.broadcast %12 : vector<1x512xf32> to vector<8x512xf32>
    %14 = arith.addf %11, %13 : vector<8x512xf32>
    %cst_11 = arith.constant 0.000000e+00 : f32
    %15 = vector.broadcast %cst_11 : f32 to vector<8x512xf32>
    %16 = arith.maximumf %14, %15 : vector<8x512xf32>
    %17 = arith.truncf %16 : vector<8x512xf32> to vector<8x512xbf16>
    %c0_12 = arith.constant 0 : index
    %c0_13 = arith.constant 0 : index
    %18 = vector.load %arg6[%c0_12, %c0_13] : memref<512x400xbf16, #tpu.memory_space<vmem>>, vector<512x400xbf16>
    %cst_14 = arith.constant dense<0.000000e+00> : vector<8x400xf32>
    %19 = tpu.matmul %17, %18, %cst_14 {dimension_numbers = #tpu.dot_dimension_numbers<[1], [0], [0], [1], [0, 0, 1, 1], [], []>} : vector<8x512xbf16>, vector<512x400xbf16>, vector<8x400xf32> -> vector<8x400xf32>
    %c0_15 = arith.constant 0 : index
    %c0_16 = arith.constant 0 : index
    %20 = vector.load %arg7[%c0_15, %c0_16] : memref<1x400xf32, #tpu.memory_space<vmem>>, vector<1x400xf32>
    %21 = vector.broadcast %20 : vector<1x400xf32> to vector<8x400xf32>
    %22 = arith.addf %19, %21 : vector<8x400xf32>
    %c0_17 = arith.constant 0 : index
    %c0_18 = arith.constant 0 : index
    %23 = vector.load %arg8[%c0_17, %c0_18] : memref<8x400xf32, #tpu.memory_space<vmem>>, vector<8x400xf32>
    tpu.vector_store %arg8[%c0_17, %c0_18], %22 {strides = array<i32>} : memref<8x400xf32, #tpu.memory_space<vmem>>, vector<8x400xf32>,
    return
  }
  func.func @transform_0(%arg0: i32) -> (i32, i32) {
    %c0_i32 = arith.constant 0 : i32
    %c0_i32_0 = arith.constant 0 : i32
    return %arg0, %c0_i32 : i32, i32
  }
  func.func @transform_1(%arg0: i32) -> (i32, i32) {
    %c0_i32 = arith.constant 0 : i32
    %c0_i32_0 = arith.constant 0 : i32
    %c0_i32_1 = arith.constant 0 : i32
    return %c0_i32, %c0_i32_0 : i32, i32
  }
  func.func @transform_2(%arg0: i32) -> (i32, i32) {
    %c0_i32 = arith.constant 0 : i32
    %c0_i32_0 = arith.constant 0 : i32
    %c0_i32_1 = arith.constant 0 : i32
    return %c0_i32, %c0_i32_0 : i32, i32
  }
  func.func @transform_3(%arg0: i32) -> (i32, i32) {
    %c0_i32 = arith.constant 0 : i32
    %c0_i32_0 = arith.constant 0 : i32
    %c0_i32_1 = arith.constant 0 : i32
    return %c0_i32, %c0_i32_0 : i32, i32
  }
  func.func @transform_4(%arg0: i32) -> (i32, i32) {
    %c0_i32 = arith.constant 0 : i32
    %c0_i32_0 = arith.constant 0 : i32
    %c0_i32_1 = arith.constant 0 : i32
    return %c0_i32, %c0_i32_0 : i32, i32
  }
  func.func @transform_5(%arg0: i32) -> (i32, i32) {
    %c0_i32 = arith.constant 0 : i32
    %c0_i32_0 = arith.constant 0 : i32
    %c0_i32_1 = arith.constant 0 : i32
    return %c0_i32, %c0_i32_0 : i32, i32
  }
  func.func @transform_6(%arg0: i32) -> (i32, i32) {
    %c0_i32 = arith.constant 0 : i32
    %c0_i32_0 = arith.constant 0 : i32
    %c0_i32_1 = arith.constant 0 : i32
    return %c0_i32, %c0_i32_0 : i32, i32
  }
  func.func @transform_7(%arg0: i32) -> (i32, i32) {
    %c0_i32 = arith.constant 0 : i32
    %c0_i32_0 = arith.constant 0 : i32
    return %arg0, %c0_i32 : i32, i32
  }
}

</mosaic_0001>

<llo_original>
// kernel: tpu_custom_call.1
$region0: #{tpu_custom_call.1}
  #allocation0 [shape = 'u32[]', space=smem, size = 0x4, offset = 0x4, fixed_abs, tag = 'smem constant byte address 0x4 - core index']
  #allocation1 [shape = 'u32[144,128]{1,0:T(1,128)}', space=vmem, size = 0x12000, scoped, tag = 'internal scratch']
  %s0 = inlined_call_operand.vmem [shape: f32[8,1000], index: 0, kind: input, shape index: {}]
  %s1 = inlined_call_operand.hbm [shape: bf16[1000,512], index: 1, kind: input, shape index: {}]
  %s2 = inlined_call_operand.vmem [shape: f32[1,512], index: 2, kind: input, shape index: {}]
  %s3 = inlined_call_operand.vmem [shape: bf16[512,512], index: 3, kind: input, shape index: {}]
  %s4 = inlined_call_operand.vmem [shape: f32[1,512], index: 4, kind: input, shape index: {}]
  %s5 = inlined_call_operand.vmem [shape: bf16[512,400], index: 5, kind: input, shape index: {}]
  %s6 = inlined_call_operand.vmem [shape: f32[1,400], index: 6, kind: input, shape index: {}]
  %s7 = inlined_call_operand.hbm [shape: f32[8,400], index: 7, kind: output, shape index: {}]
  %s8 = sld [smem:[#allocation0]]
  $region42: #{tpu_custom_call.1} parent=0
    _
  %s10 = ssub.s32 1, %s8
  %s11 = scalar_select 0, %s10, %s8
  $region1: #{tpu_custom_call.1} parent=0
    #allocation2 [shape = 'u8[1024000]{0}', space=vmem, size = 0xfa000, scoped, tag = 'input window, operand 1, single buffered']
    #allocation3 [shape = 's32[1]{0}', space=sflag, size = 0x4, scoped, tag = 'scoped memory for tpu_custom_call.1']
    #allocation4 [shape = 's32[1]{0}', space=sflag, size = 0x4, scoped, tag = 'scoped memory for tpu_custom_call.1']
    #allocation5 [shape = 'u8[16384]{0}', space=vmem, size = 0x4000, scoped, tag = 'output window, operand 0, single buffered']
    %12 = vsyncpa [#allocation3], 0
    %13 = vsyncpa [#allocation4], 0
    // Predicated region
    $region2: #{tpu_custom_call.1} parent=1 // pred_check
      _
    $region3: #{tpu_custom_call.1} parent=1 // pred_check_branch
      %15 = sbr.rel (0) target = $region5
    $region4: #{tpu_custom_call.1} parent=1 // pred_region
      _
    $region5: #{tpu_custom_call.1} parent=1 // pred_fallthru
      _
    // Predicated region
    $region6: #{tpu_custom_call.1} parent=1 // pred_check
      _
    $region7: #{tpu_custom_call.1} parent=1 // pred_check_branch
      %17 = sbr.rel (0) target = $region9
    $region8: #{tpu_custom_call.1} parent=1 // pred_region
      %s19 = ssub.s32 32000, 32000
      %20 = vsyncadd [#allocation3], %s19
      %s21 = sshll.u32 [#allocation2], 4
      %s22 = int_to_ptr.vmem [resolvable:$true] %s21
      %27 = dma.hbm_to_vmem [thread:$0]  %s1, 32000, %s22, [#allocation3], 256, 256, 16
    $region9: #{tpu_custom_call.1} parent=1 // pred_fallthru
      _
    // Predicated region
    $region10: #{tpu_custom_call.1} parent=1 // pred_check
      _
    $region11: #{tpu_custom_call.1} parent=1 // pred_check_branch
      %29 = sbr.rel (0) target = $region13
    $region12: #{tpu_custom_call.1} parent=1 // pred_region
      _
    $region13: #{tpu_custom_call.1} parent=1 // pred_fallthru
      _
    // Predicated region
    $region14: #{tpu_custom_call.1} parent=1 // pred_check
      _
    $region15: #{tpu_custom_call.1} parent=1 // pred_check_branch
      %31 = sbr.rel (0) target = $region17
    $region16: #{tpu_custom_call.1} parent=1 // pred_region
      _
    $region17: #{tpu_custom_call.1} parent=1 // pred_fallthru
      _
    // Predicated region
    $region18: #{tpu_custom_call.1} parent=1 // pred_check
      _
    $region19: #{tpu_custom_call.1} parent=1 // pred_check_branch
      %33 = sbr.rel (0) target = $region21
    $region20: #{tpu_custom_call.1} parent=1 // pred_region
      _
    $region21: #{tpu_custom_call.1} parent=1 // pred_fallthru
      _
    // Predicated region
    $region22: #{tpu_custom_call.1} parent=1 // pred_check
      _
    $region23: #{tpu_custom_call.1} parent=1 // pred_check_branch
      %35 = sbr.rel (0) target = $region25
    $region24: #{tpu_custom_call.1} parent=1 // pred_region
      _
    $region25: #{tpu_custom_call.1} parent=1 // pred_fallthru
      _
    // Predicated region
    $region26: #{tpu_custom_call.1} parent=1 // pred_check
      _
    $region27: #{tpu_custom_call.1} parent=1 // pred_check_branch
      %37 = sbr.rel (0) target = $region29
    $region28: #{tpu_custom_call.1} parent=1 // pred_region
      _
    $region29: #{tpu_custom_call.1} parent=1 // pred_fallthru
      _
    // Predicated region
    $region30: #{tpu_custom_call.1} parent=1 // pred_check
      _
    $region31: #{tpu_custom_call.1} parent=1 // pred_check_branch
      %39 = sbr.rel (0) target = $region33
    $region32: #{tpu_custom_call.1} parent=1 // pred_region
      %40 = dma.done [#allocation3], 32000
    $region33: #{tpu_custom_call.1} parent=1 // pred_fallthru
      _
    %v42 = vld [vmem:[%s0] sm:$0xff]
    %v43 = vld [vmem:[%s0 + $0x8] sm:$0xff]
    %v44 = vld [vmem:[%s0 + $0x10] sm:$0xff]
    %v45 = vld [vmem:[%s0 + $0x18] sm:$0xff]
    %v46 = vld [vmem:[%s0 + $0x20] sm:$0xff]
    %v47 = vld [vmem:[%s0 + $0x28] sm:$0xff]
    %v48 = vld [vmem:[%s0 + $0x30] sm:$0xff]
    %v49 = vld [vmem:[%s0 + $0x38] sm:$0xff]
    %v50 = vpack.c.bf16 %v42, %v42
    %v51 = vpack.c.bf16 %v43, %v43
    %v52 = vpack.c.bf16 %v44, %v44
    %v53 = vpack.c.bf16 %v45, %v45
    %v54 = vpack.c.bf16 %v46, %v46
    %v55 = vpack.c.bf16 %v47, %v47
    %v56 = vpack.c.bf16 %v48, %v48
    %v57 = vpack.c.bf16 %v49, %v49
    %v58 = vld [vmem:[#allocation2] sm:$0xff]
    %v59 = vld [vmem:[#allocation2 + $0x8] sm:$0xff]
    %v60 = vld [vmem:[#allocation2 + $0x10] sm:$0xff]
    %v61 = vld [vmem:[#allocation2 + $0x18] sm:$0xff]
    %v62 = vld [vmem:[#allocation2 + $0x20] sm:$0xff]
    %v63 = vld [vmem:[#allocation2 + $0x28] sm:$0xff]
    %v64 = vld [vmem:[#allocation2 + $0x30] sm:$0xff]
    %v65 = vld [vmem:[#allocation2 + $0x38] sm:$0xff]
    %v66 = vld [vmem:[#allocation2 + $0x40] sm:$0xff]
    %v67 = vld [vmem:[#allocation2 + $0x48] sm:$0xff]
    %v68 = vld [vmem:[#allocation2 + $0x50] sm:$0xff]
    %v69 = vld [vmem:[#allocation2 + $0x58] sm:$0xff]
    %v70 = vld [vmem:[#allocation2 + $0x60] sm:$0xff]
    %v71 = vld [vmem:[#allocation2 + $0x68] sm:$0xff]
    %v72 = vld [vmem:[#allocation2 + $0x70] sm:$0xff]
    %v73 = vld [vmem:[#allocation2 + $0x78] sm:$0xff]
    %v74 = vld [vmem:[#allocation2 + $0x80] sm:$0xff]
    %v75 = vld [vmem:[#allocation2 + $0x88] sm:$0xff]
    %v76 = vld [vmem:[#allocation2 + $0x90] sm:$0xff]
    %v77 = vld [vmem:[#allocation2 + $0x98] sm:$0xff]
    %v78 = vld [vmem:[#allocation2 + $0xa0] sm:$0xff]
    %v79 = vld [vmem:[#allocation2 + $0xa8] sm:$0xff]
    %v80 = vld [vmem:[#allocation2 + $0xb0] sm:$0xff]
    %v81 = vld [vmem:[#allocation2 + $0xb8] sm:$0xff]
    %v82 = vld [vmem:[#allocation2 + $0xc0] sm:$0xff]
    %v83 = vld [vmem:[#allocation2 + $0xc8] sm:$0xff]
    %v84 = vld [vmem:[#allocation2 + $0xd0] sm:$0xff]
    %v85 = vld [vmem:[#allocation2 + $0xd8] sm:$0xff]
    %v86 = vld [vmem:[#allocation2 + $0xe0] sm:$0xff]
    %v87 = vld [vmem:[#allocation2 + $0xe8] sm:$0xff]
    %v88 = vld [vmem:[#allocation2 + $0xf0] sm:$0xff]
    %v89 = vld [vmem:[#allocation2 + $0xf8] sm:$0xff]
    %v90 = vld [vmem:[#allocation2 + $0x100] sm:$0xff]
    %v91 = vld [vmem:[#allocation2 + $0x108] sm:$0xff]
    %v92 = vld [vmem:[#allocation2 + $0x110] sm:$0xff]
    %v93 = vld [vmem:[#allocation2 + $0x118] sm:$0xff]
    %v94 = vld [vmem:[#allocation2 + $0x120] sm:$0xff]
    %v95 = vld [vmem:[#allocation2 + $0x128] sm:$0xff]
    %v96 = vld [vmem:[#allocation2 + $0x130] sm:$0xff]
    %v97 = vld [vmem:[#allocation2 + $0x138] sm:$0xff]
    %v98 = vld [vmem:[#allocation2 + $0x140] sm:$0xff]
    %v99 = vld [vmem:[#allocation2 + $0x148] sm:$0xff]
    %v100 = vld [vmem:[#allocation2 + $0x150] sm:$0xff]
    %v101 = vld [vmem:[#allocation2 + $0x158] sm:$0xff]
    %v102 = vld [vmem:[#allocation2 + $0x160] sm:$0xff]
    %v103 = vld [vmem:[#allocation2 + $0x168] sm:$0xff]
    %v104 = vld [vmem:[#allocation2 + $0x170] sm:$0xff]
    %v105 = vld [vmem:[#allocation2 + $0x178] sm:$0xff]
    %v106 = vld [vmem:[#allocation2 + $0x180] sm:$0xff]
    %v107 = vld [vmem:[#allocation2 + $0x188] sm:$0xff]
    %v108 = vld [vmem:[#allocation2 + $0x190] sm:$0xff]
    %v109 = vld [vmem:[#allocation2 + $0x198] sm:$0xff]
    %v110 = vld [vmem:[#allocation2 + $0x1a0] sm:$0xff]
    %v111 = vld [vmem:[#allocation2 + $0x1a8] sm:$0xff]
    %v112 = vld [vmem:[#allocation2 + $0x1b0] sm:$0xff]
    %v113 = vld [vmem:[#allocation2 + $0x1b8] sm:$0xff]
    %v114 = vld [vmem:[#allocation2 + $0x1c0] sm:$0xff]
    %v115 = vld [vmem:[#allocation2 + $0x1c8] sm:$0xff]
    %v116 = vld [vmem:[#allocation2 + $0x1d0] sm:$0xff]
    %v117 = vld [vmem:[#allocation2 + $0x1d8] sm:$0xff]
    %v118 = vld [vmem:[#allocation2 + $0x1e0] sm:$0xff]
    %v119 = vld [vmem:[#allocation2 + $0x1e8] sm:$0xff]
    %v120 = vld [vmem:[#allocation2 + $0x1f0] sm:$0xff]
    %v121 = vld [vmem:[#allocation2 + $0x1f8] sm:$0xff]
    %v122 = vld [vmem:[#allocation2 + $0x200] sm:$0xff]
    %v123 = vld [vmem:[#allocation2 + $0x208] sm:$0xff]
    %v124 = vld [vmem:[#allocation2 + $0x210] sm:$0xff]
    %v125 = vld [vmem:[#allocation2 + $0x218] sm:$0xff]
    %v126 = vld [vmem:[#allocation2 + $0x220] sm:$0xff]
    %v127 = vld [vmem:[#allocation2 + $0x228] sm:$0xff]
    %v128 = vld [vmem:[#allocation2 + $0x230] sm:$0xff]
    %v129 = vld [vmem:[#allocation2 + $0x238] sm:$0xff]
    %v130 = vld [vmem:[#allocation2 + $0x240] sm:$0xff]
    %v131 = vld [vmem:[#allocation2 + $0x248] sm:$0xff]
    %v132 = vld [vmem:[#allocation2 + $0x250] sm:$0xff]
    %v133 = vld [vmem:[#allocation2 + $0x258] sm:$0xff]
    %v134 = vld [vmem:[#allocation2 + $0x260] sm:$0xff]
    %v135 = vld [vmem:[#allocation2 + $0x268] sm:$0xff]
    %v136 = vld [vmem:[#allocation2 + $0x270] sm:$0xff]
    %v137 = vld [vmem:[#allocation2 + $0x278] sm:$0xff]
    %v138 = vld [vmem:[#allocation2 + $0x280] sm:$0xff]
    %v139 = vld [vmem:[#allocation2 + $0x288] sm:$0xff]
    %v140 = vld [vmem:[#allocation2 + $0x290] sm:$0xff]
    %v141 = vld [vmem:[#allocation2 + $0x298] sm:$0xff]
    %v142 = vld [vmem:[#allocation2 + $0x2a0] sm:$0xff]
    %v143 = vld [vmem:[#allocation2 + $0x2a8] sm:$0xff]
    %v144 = vld [vmem:[#allocation2 + $0x2b0] sm:$0xff]
    %v145 = vld [vmem:[#allocation2 + $0x2b8] sm:$0xff]
    %v146 = vld [vmem:[#allocation2 + $0x2c0] sm:$0xff]
    %v147 = vld [vmem:[#allocation2 + $0x2c8] sm:$0xff]
    %v148 = vld [vmem:[#allocation2 + $0x2d0] sm:$0xff]
    %v149 = vld [vmem:[#allocation2 + $0x2d8] sm:$0xff]
    %v150 = vld [vmem:[#allocation2 + $0x2e0] sm:$0xff]
    %v151 = vld [vmem:[#allocation2 + $0x2e8] sm:$0xff]
    %v152 = vld [vmem:[#allocation2 + $0x2f0] sm:$0xff]
    %v153 = vld [vmem:[#allocation2 + $0x2f8] sm:$0xff]
    %v154 = vld [vmem:[#allocation2 + $0x300] sm:$0xff]
    %v155 = vld [vmem:[#allocation2 + $0x308] sm:$0xff]
    %v156 = vld [vmem:[#allocation2 + $0x310] sm:$0xff]
    %v157 = vld [vmem:[#allocation2 + $0x318] sm:$0xff]
    %v158 = vld [vmem:[#allocation2 + $0x320] sm:$0xff]
    %v159 = vld [vmem:[#allocation2 + $0x328] sm:$0xff]
    %v160 = vld [vmem:[#allocation2 + $0x330] sm:$0xff]
    %v161 = vld [vmem:[#allocation2 + $0x338] sm:$0xff]
    %v162 = vld [vmem:[#allocation2 + $0x340] sm:$0xff]
    %v163 = vld [vmem:[#allocation2 + $0x348] sm:$0xff]
    %v164 = vld [vmem:[#allocation2 + $0x350] sm:$0xff]
    %v165 = vld [vmem:[#allocation2 + $0x358] sm:$0xff]
    %v166 = vld [vmem:[#allocation2 + $0x360] sm:$0xff]
    %v167 = vld [vmem:[#allocation2 + $0x368] sm:$0xff]
    %v168 = vld [vmem:[#allocation2 + $0x370] sm:$0xff]
    %v169 = vld [vmem:[#allocation2 + $0x378] sm:$0xff]
    %v170 = vld [vmem:[#allocation2 + $0x380] sm:$0xff]
    %v171 = vld [vmem:[#allocation2 + $0x388] sm:$0xff]
    %v172 = vld [vmem:[#allocation2 + $0x390] sm:$0xff]
    %v173 = vld [vmem:[#allocation2 + $0x398] sm:$0xff]
    %v174 = vld [vmem:[#allocation2 + $0x3a0] sm:$0xff]
    %v175 = vld [vmem:[#allocation2 + $0x3a8] sm:$0xff]
    %v176 = vld [vmem:[#allocation2 + $0x3b0] sm:$0xff]
    %v177 = vld [vmem:[#allocation2 + $0x3b8] sm:$0xff]
    %v178 = vld [vmem:[#allocation2 + $0x3c0] sm:$0xff]
    %v179 = vld [vmem:[#allocation2 + $0x3c8] sm:$0xff]
    %v180 = vld [vmem:[#allocation2 + $0x3d0] sm:$0xff]
    %v181 = vld [vmem:[#allocation2 + $0x3d8] sm:$0xff]
    %v182 = vld [vmem:[#allocation2 + $0x3e0] sm:$0xff]
    %v183 = vld [vmem:[#allocation2 + $0x3e8] sm:$0xff]
    %v184 = vld [vmem:[#allocation2 + $0x3f0] sm:$0xff]
    %v185 = vld [vmem:[#allocation2 + $0x3f8] sm:$0xff]
    %v186 = vld [vmem:[#allocation2 + $0x400] sm:$0xff]
    %v187 = vld [vmem:[#allocation2 + $0x408] sm:$0xff]
    %v188 = vld [vmem:[#allocation2 + $0x410] sm:$0xff]
    %v189 = vld [vmem:[#allocation2 + $0x418] sm:$0xff]
    %v190 = vld [vmem:[#allocation2 + $0x420] sm:$0xff]
    %v191 = vld [vmem:[#allocation2 + $0x428] sm:$0xff]
    %v192 = vld [vmem:[#allocation2 + $0x430] sm:$0xff]
    %v193 = vld [vmem:[#allocation2 + $0x438] sm:$0xff]
    %v194 = vld [vmem:[#allocation2 + $0x440] sm:$0xff]
    %v195 = vld [vmem:[#allocation2 + $0x448] sm:$0xff]
    %v196 = vld [vmem:[#allocation2 + $0x450] sm:$0xff]
    %v197 = vld [vmem:[#allocation2 + $0x458] sm:$0xff]
    %v198 = vld [vmem:[#allocation2 + $0x460] sm:$0xff]
    %v199 = vld [vmem:[#allocation2 + $0x468] sm:$0xff]
    %v200 = vld [vmem:[#allocation2 + $0x470] sm:$0xff]
    %v201 = vld [vmem:[#allocation2 + $0x478] sm:$0xff]
    %v202 = vld [vmem:[#allocation2 + $0x480] sm:$0xff]
    %v203 = vld [vmem:[#allocation2 + $0x488] sm:$0xff]
    %v204 = vld [vmem:[#allocation2 + $0x490] sm:$0xff]
    %v205 = vld [vmem:[#allocation2 + $0x498] sm:$0xff]
    %v206 = vld [vmem:[#allocation2 + $0x4a0] sm:$0xff]
    %v207 = vld [vmem:[#allocation2 + $0x4a8] sm:$0xff]
    %v208 = vld [vmem:[#allocation2 + $0x4b0] sm:$0xff]
    %v209 = vld [vmem:[#allocation2 + $0x4b8] sm:$0xff]
    %v210 = vld [vmem:[#allocation2 + $0x4c0] sm:$0xff]
    %v211 = vld [vmem:[#allocation2 + $0x4c8] sm:$0xff]
    %v212 = vld [vmem:[#allocation2 + $0x4d0] sm:$0xff]
    %v213 = vld [vmem:[#allocation2 + $0x4d8] sm:$0xff]
    %v214 = vld [vmem:[#allocation2 + $0x4e0] sm:$0xff]
    %v215 = vld [vmem:[#allocation2 + $0x4e8] sm:$0xff]
    %v216 = vld [vmem:[#allocation2 + $0x4f0] sm:$0xff]
    %v217 = vld [vmem:[#allocation2 + $0x4f8] sm:$0xff]
    %v218 = vld [vmem:[#allocation2 + $0x500] sm:$0xff]
    %v219 = vld [vmem:[#allocation2 + $0x508] sm:$0xff]
    %v220 = vld [vmem:[#allocation2 + $0x510] sm:$0xff]
    %v221 = vld [vmem:[#allocation2 + $0x518] sm:$0xff]
    %v222 = vld [vmem:[#allocation2 + $0x520] sm:$0xff]
    %v223 = vld [vmem:[#allocation2 + $0x528] sm:$0xff]
    %v224 = vld [vmem:[#allocation2 + $0x530] sm:$0xff]
    %v225 = vld [vmem:[#allocation2 + $0x538] sm:$0xff]
    %v226 = vld [vmem:[#allocation2 + $0x540] sm:$0xff]
    %v227 = vld [vmem:[#allocation2 + $0x548] sm:$0xff]
    %v228 = vld [vmem:[#allocation2 + $0x550] sm:$0xff]
    %v229 = vld [vmem:[#allocation2 + $0x558] sm:$0xff]
    %v230 = vld [vmem:[#allocation2 + $0x560] sm:$0xff]
    %v231 = vld [vmem:[#allocation2 + $0x568] sm:$0xff]
    %v232 = vld [vmem:[#allocation2 + $0x570] sm:$0xff]
    %v233 = vld [vmem:[#allocation2 + $0x578] sm:$0xff]
    %v234 = vld [vmem:[#allocation2 + $0x580] sm:$0xff]
    %v235 = vld [vmem:[#allocation2 + $0x588] sm:$0xff]
    %v236 = vld [vmem:[#allocation2 + $0x590] sm:$0xff]
    %v237 = vld [vmem:[#allocation2 + $0x598] sm:$0xff]
    %v238 = vld [vmem:[#allocation2 + $0x5a0] sm:$0xff]
    %v239 = vld [vmem:[#allocation2 + $0x5a8] sm:$0xff]
    %v240 = vld [vmem:[#allocation2 + $0x5b0] sm:$0xff]
    %v241 = vld [vmem:[#allocation2 + $0x5b8] sm:$0xff]
    %v242 = vld [vmem:[#allocation2 + $0x5c0] sm:$0xff]
    %v243 = vld [vmem:[#allocation2 + $0x5c8] sm:$0xff]
    %v244 = vld [vmem:[#allocation2 + $0x5d0] sm:$0xff]
    %v245 = vld [vmem:[#allocation2 + $0x5d8] sm:$0xff]
    %v246 = vld [vmem:[#allocation2 + $0x5e0] sm:$0xff]
    %v247 = vld [vmem:[#allocation2 + $0x5e8] sm:$0xff]
    %v248 = vld [vmem:[#allocation2 + $0x5f0] sm:$0xff]
    %v249 = vld [vmem:[#allocation2 + $0x5f8] sm:$0xff]
    %v250 = vld [vmem:[#allocation2 + $0x600] sm:$0xff]
    %v251 = vld [vmem:[#allocation2 + $0x608] sm:$0xff]
    %v252 = vld [vmem:[#allocation2 + $0x610] sm:$0xff]
    %v253 = vld [vmem:[#allocation2 + $0x618] sm:$0xff]
    %v254 = vld [vmem:[#allocation2 + $0x620] sm:$0xff]
    %v255 = vld [vmem:[#allocation2 + $0x628] sm:$0xff]
    %v256 = vld [vmem:[#allocation2 + $0x630] sm:$0xff]
    %v257 = vld [vmem:[#allocation2 + $0x638] sm:$0xff]
    %v258 = vld [vmem:[#allocation2 + $0x640] sm:$0xff]
    %v259 = vld [vmem:[#allocation2 + $0x648] sm:$0xff]
    %v260 = vld [vmem:[#allocation2 + $0x650] sm:$0xff]
    %v261 = vld [vmem:[#allocation2 + $0x658] sm:$0xff]
    %v262 = vld [vmem:[#allocation2 + $0x660] sm:$0xff]
    %v263 = vld [vmem:[#allocation2 + $0x668] sm:$0xff]
    %v264 = vld [vmem:[#allocation2 + $0x670] sm:$0xff]
    %v265 = vld [vmem:[#allocation2 + $0x678] sm:$0xff]
    %v266 = vld [vmem:[#allocation2 + $0x680] sm:$0xff]
    %v267 = vld [vmem:[#allocation2 + $0x688] sm:$0xff]
    %v268 = vld [vmem:[#allocation2 + $0x690] sm:$0xff]
    %v269 = vld [vmem:[#allocation2 + $0x698] sm:$0xff]
    %v270 = vld [vmem:[#allocation2 + $0x6a0] sm:$0xff]
    %v271 = vld [vmem:[#allocation2 + $0x6a8] sm:$0xff]
    %v272 = vld [vmem:[#allocation2 + $0x6b0] sm:$0xff]
    %v273 = vld [vmem:[#allocation2 + $0x6b8] sm:$0xff]
    %v274 = vld [vmem:[#allocation2 + $0x6c0] sm:$0xff]
    %v275 = vld [vmem:[#allocation2 + $0x6c8] sm:$0xff]
    %v276 = vld [vmem:[#allocation2 + $0x6d0] sm:$0xff]
    %v277 = vld [vmem:[#allocation2 + $0x6d8] sm:$0xff]
    %v278 = vld [vmem:[#allocation2 + $0x6e0] sm:$0xff]
    %v279 = vld [vmem:[#allocation2 + $0x6e8] sm:$0xff]
    %v280 = vld [vmem:[#allocation2 + $0x6f0] sm:$0xff]
    %v281 = vld [vmem:[#allocation2 + $0x6f8] sm:$0xff]
    %v282 = vld [vmem:[#allocation2 + $0x700] sm:$0xff]
    %v283 = vld [vmem:[#allocation2 + $0x708] sm:$0xff]
    %v284 = vld [vmem:[#allocation2 + $0x710] sm:$0xff]
    %v285 = vld [vmem:[#allocation2 + $0x718] sm:$0xff]
    %v286 = vld [vmem:[#allocation2 + $0x720] sm:$0xff]
    %v287 = vld [vmem:[#allocation2 + $0x728] sm:$0xff]
    %v288 = vld [vmem:[#allocation2 + $0x730] sm:$0xff]
    %v289 = vld [vmem:[#allocation2 + $0x738] sm:$0xff]
    %v290 = vld [vmem:[#allocation2 + $0x740] sm:$0xff]
    %v291 = vld [vmem:[#allocation2 + $0x748] sm:$0xff]
    %v292 = vld [vmem:[#allocation2 + $0x750] sm:$0xff]
    %v293 = vld [vmem:[#allocation2 + $0x758] sm:$0xff]
    %v294 = vld [vmem:[#allocation2 + $0x760] sm:$0xff]
    %v295 = vld [vmem:[#allocation2 + $0x768] sm:$0xff]
    %v296 = vld [vmem:[#allocation2 + $0x770] sm:$0xff]
    %v297 = vld [vmem:[#allocation2 + $0x778] sm:$0xff]
    %v298 = vld [vmem:[#allocation2 + $0x780] sm:$0xff]
    %v299 = vld [vmem:[#allocation2 + $0x788] sm:$0xff]
    %v300 = vld [vmem:[#allocation2 + $0x790] sm:$0xff]
    %v301 = vld [vmem:[#allocation2 + $0x798] sm:$0xff]
    %v302 = vld [vmem:[#allocation2 + $0x7a0] sm:$0xff]
    %v303 = vld [vmem:[#allocation2 + $0x7a8] sm:$0xff]
    %v304 = vld [vmem:[#allocation2 + $0x7b0] sm:$0xff]
    %v305 = vld [vmem:[#allocation2 + $0x7b8] sm:$0xff]
    %v306 = vld [vmem:[#allocation2 + $0x7c0] sm:$0xff]
    %v307 = vld [vmem:[#allocation2 + $0x7c8] sm:$0xff]
    %v308 = vld [vmem:[%s2] sm:$0xf]
    %v310 = vlaneseq
    %v311 = vshrl.u32 %v310, 7
    %v312 = vsub.s32 0, %v311
    %v313 = vrot.slane %v308, %v312
    %v314 = vlaneseq
    %v315 = vshrl.u32 %v314, 7
    %v316 = vsub.s32 1, %v315
    %v317 = vrot.slane %v308, %v316
    %v318 = vlaneseq
    %v319 = vshrl.u32 %v318, 7
    %v320 = vsub.s32 2, %v319
    %v321 = vrot.slane %v308, %v320
    %v322 = vlaneseq
    %v323 = vshrl.u32 %v322, 7
    %v324 = vsub.s32 3, %v323
    %v325 = vrot.slane %v308, %v324
    %v580 = vunpack.c.l.b16 %v58
    %v581 = vunpack.c.h.b16 %v58
    %v582 = vunpack.c.l.b16 %v59
    %v583 = vunpack.c.h.b16 %v59
    %v584 = vunpack.c.l.b16 %v60
    %v585 = vunpack.c.h.b16 %v60
    %v586 = vunpack.c.l.b16 %v61
    %v587 = vunpack.c.h.b16 %v61
    %v588 = vunpack.c.l.b16 %v62
    %v589 = vunpack.c.h.b16 %v62
    %v590 = vunpack.c.l.b16 %v63
    %v591 = vunpack.c.h.b16 %v63
    %v592 = vunpack.c.l.b16 %v64
    %v593 = vunpack.c.h.b16 %v64
    %v594 = vunpack.c.l.b16 %v65
    %v595 = vunpack.c.h.b16 %v65
    %v596 = vunpack.c.l.b16 %v66
    %v597 = vunpack.c.h.b16 %v66
    %v598 = vunpack.c.l.b16 %v67
    %v599 = vunpack.c.h.b16 %v67
    %v600 = vunpack.c.l.b16 %v68
    %v601 = vunpack.c.h.b16 %v68
    %v602 = vunpack.c.l.b16 %v69
    %v603 = vunpack.c.h.b16 %v69
    %v604 = vunpack.c.l.b16 %v70
    %v605 = vunpack.c.h.b16 %v70
    %v606 = vunpack.c.l.b16 %v71
    %v607 = vunpack.c.h.b16 %v71
    %v608 = vunpack.c.l.b16 %v72
    %v609 = vunpack.c.h.b16 %v72
    %v610 = vunpack.c.l.b16 %v73
    %v611 = vunpack.c.h.b16 %v73
    %v612 = vunpack.c.l.b16 %v74
    %v613 = vunpack.c.h.b16 %v74
    %v614 = vunpack.c.l.b16 %v75
    %v615 = vunpack.c.h.b16 %v75
    %v616 = vunpack.c.l.b16 %v76
    %v617 = vunpack.c.h.b16 %v76
    %v618 = vunpack.c.l.b16 %v77
    %v619 = vunpack.c.h.b16 %v77
    %v620 = vunpack.c.l.b16 %v78
    %v621 = vunpack.c.h.b16 %v78
    %v622 = vunpack.c.l.b16 %v79
    %v623 = vunpack.c.h.b16 %v79
    %v624 = vunpack.c.l.b16 %v80
    %v625 = vunpack.c.h.b16 %v80
    %v626 = vunpack.c.l.b16 %v81
    %v627 = vunpack.c.h.b16 %v81
    %v628 = vunpack.c.l.b16 %v82
    %v629 = vunpack.c.h.b16 %v82
    %v630 = vunpack.c.l.b16 %v83
    %v631 = vunpack.c.h.b16 %v83
    %v632 = vunpack.c.l.b16 %v84
    %v633 = vunpack.c.h.b16 %v84
    %v634 = vunpack.c.l.b16 %v85
    %v635 = vunpack.c.h.b16 %v85
    %v636 = vunpack.c.l.b16 %v86
    %v637 = vunpack.c.h.b16 %v86
    %v638 = vunpack.c.l.b16 %v87
    %v639 = vunpack.c.h.b16 %v87
    %v640 = vunpack.c.l.b16 %v88
    %v641 = vunpack.c.h.b16 %v88
    %v642 = vunpack.c.l.b16 %v89
    %v643 = vunpack.c.h.b16 %v89
    %v644 = vunpack.c.l.b16 %v90
    %v645 = vunpack.c.h.b16 %v90
    %v646 = vunpack.c.l.b16 %v91
    %v647 = vunpack.c.h.b16 %v91
    %v648 = vunpack.c.l.b16 %v92
    %v649 = vunpack.c.h.b16 %v92
    %v650 = vunpack.c.l.b16 %v93
    %v651 = vunpack.c.h.b16 %v93
    %v652 = vunpack.c.l.b16 %v94
    %v653 = vunpack.c.h.b16 %v94
    %v654 = vunpack.c.l.b16 %v95
    %v655 = vunpack.c.h.b16 %v95
    %v656 = vunpack.c.l.b16 %v96
    %v657 = vunpack.c.h.b16 %v96
    %v658 = vunpack.c.l.b16 %v97
    %v659 = vunpack.c.h.b16 %v97
    %v660 = vunpack.c.l.b16 %v98
    %v661 = vunpack.c.h.b16 %v98
    %v662 = vunpack.c.l.b16 %v99
    %v663 = vunpack.c.h.b16 %v99
    %v664 = vunpack.c.l.b16 %v100
    %v665 = vunpack.c.h.b16 %v100
    %v666 = vunpack.c.l.b16 %v101
    %v667 = vunpack.c.h.b16 %v101
    %v668 = vunpack.c.l.b16 %v102
    %v669 = vunpack.c.h.b16 %v102
    %v670 = vunpack.c.l.b16 %v103
    %v671 = vunpack.c.h.b16 %v103
    %v672 = vunpack.c.l.b16 %v104
    %v673 = vunpack.c.h.b16 %v104
    %v674 = vunpack.c.l.b16 %v105
    %v675 = vunpack.c.h.b16 %v105
    %v676 = vunpack.c.l.b16 %v106
    %v677 = vunpack.c.h.b16 %v106
    %v678 = vunpack.c.l.b16 %v107
    %v679 = vunpack.c.h.b16 %v107
    %v680 = vunpack.c.l.b16 %v108
    %v681 = vunpack.c.h.b16 %v108
    %v682 = vunpack.c.l.b16 %v109
    %v683 = vunpack.c.h.b16 %v109
    %v684 = vunpack.c.l.b16 %v110
    %v685 = vunpack.c.h.b16 %v110
    %v686 = vunpack.c.l.b16 %v111
    %v687 = vunpack.c.h.b16 %v111
    %v688 = vunpack.c.l.b16 %v112
    %v689 = vunpack.c.h.b16 %v112
    %v690 = vunpack.c.l.b16 %v113
    %v691 = vunpack.c.h.b16 %v113
    %v692 = vunpack.c.l.b16 %v114
    %v693 = vunpack.c.h.b16 %v114
    %v694 = vunpack.c.l.b16 %v115
    %v695 = vunpack.c.h.b16 %v115
    %v696 = vunpack.c.l.b16 %v116
    %v697 = vunpack.c.h.b16 %v116
    %v698 = vunpack.c.l.b16 %v117
    %v699 = vunpack.c.h.b16 %v117
    %v700 = vunpack.c.l.b16 %v118
    %v701 = vunpack.c.h.b16 %v118
    %v702 = vunpack.c.l.b16 %v119
    %v703 = vunpack.c.h.b16 %v119
    %v704 = vunpack.c.l.b16 %v120
    %v705 = vunpack.c.h.b16 %v120
    %v706 = vunpack.c.l.b16 %v121
    %v707 = vunpack.c.h.b16 %v121
    %v708 = vunpack.c.l.b16 %v122
    %v709 = vunpack.c.h.b16 %v122
    %v710 = vunpack.c.l.b16 %v123
    %v711 = vunpack.c.h.b16 %v123
    %v712 = vunpack.c.l.b16 %v124
    %v713 = vunpack.c.h.b16 %v124
    %v714 = vunpack.c.l.b16 %v125
    %v715 = vunpack.c.h.b16 %v125
    %v716 = vunpack.c.l.b16 %v126
    %v717 = vunpack.c.h.b16 %v126
    %v718 = vunpack.c.l.b16 %v127
    %v719 = vunpack.c.h.b16 %v127
    %v720 = vunpack.c.l.b16 %v128
    %v721 = vunpack.c.h.b16 %v128
    %v722 = vunpack.c.l.b16 %v129
    %v723 = vunpack.c.h.b16 %v129
    %v724 = vunpack.c.l.b16 %v130
    %v725 = vunpack.c.h.b16 %v130
    %v726 = vunpack.c.l.b16 %v131
    %v727 = vunpack.c.h.b16 %v131
    %v728 = vunpack.c.l.b16 %v132
    %v729 = vunpack.c.h.b16 %v132
    %v730 = vunpack.c.l.b16 %v133
    %v731 = vunpack.c.h.b16 %v133
    %v732 = vunpack.c.l.b16 %v134
    %v733 = vunpack.c.h.b16 %v134
    %v734 = vunpack.c.l.b16 %v135
    %v735 = vunpack.c.h.b16 %v135
    %v736 = vunpack.c.l.b16 %v136
    %v737 = vunpack.c.h.b16 %v136
    %v738 = vunpack.c.l.b16 %v137
    %v739 = vunpack.c.h.b16 %v137
    %v740 = vunpack.c.l.b16 %v138
    %v741 = vunpack.c.h.b16 %v138
    %v742 = vunpack.c.l.b16 %v139
    %v743 = vunpack.c.h.b16 %v139
    %v744 = vunpack.c.l.b16 %v140
    %v745 = vunpack.c.h.b16 %v140
    %v746 = vunpack.c.l.b16 %v141
    %v747 = vunpack.c.h.b16 %v141
    %v748 = vunpack.c.l.b16 %v142
    %v749 = vunpack.c.h.b16 %v142
    %v750 = vunpack.c.l.b16 %v143
    %v751 = vunpack.c.h.b16 %v143
    %v752 = vunpack.c.l.b16 %v144
    %v753 = vunpack.c.h.b16 %v144
    %v754 = vunpack.c.l.b16 %v145
    %v755 = vunpack.c.h.b16 %v145
    %v756 = vunpack.c.l.b16 %v146
    %v757 = vunpack.c.h.b16 %v146
    %v758 = vunpack.c.l.b16 %v147
    %v759 = vunpack.c.h.b16 %v147
    %v760 = vunpack.c.l.b16 %v148
    %v761 = vunpack.c.h.b16 %v148
    %v762 = vunpack.c.l.b16 %v149
    %v763 = vunpack.c.h.b16 %v149
    %v764 = vunpack.c.l.b16 %v150
    %v765 = vunpack.c.h.b16 %v150
    %v766 = vunpack.c.l.b16 %v151
    %v767 = vunpack.c.h.b16 %v151
    %v768 = vunpack.c.l.b16 %v152
    %v769 = vunpack.c.h.b16 %v152
    %v770 = vunpack.c.l.b16 %v153
    %v771 = vunpack.c.h.b16 %v153
    %v772 = vunpack.c.l.b16 %v154
    %v773 = vunpack.c.h.b16 %v154
    %v774 = vunpack.c.l.b16 %v155
    %v775 = vunpack.c.h.b16 %v155
    %v776 = vunpack.c.l.b16 %v156
    %v777 = vunpack.c.h.b16 %v156
    %v778 = vunpack.c.l.b16 %v157
    %v779 = vunpack.c.h.b16 %v157
    %v780 = vunpack.c.l.b16 %v158
    %v781 = vunpack.c.h.b16 %v158
    %v782 = vunpack.c.l.b16 %v159
    %v783 = vunpack.c.h.b16 %v159
    %v784 = vunpack.c.l.b16 %v160
    %v785 = vunpack.c.h.b16 %v160
    %v786 = vunpack.c.l.b16 %v161
    %v787 = vunpack.c.h.b16 %v161
    %v788 = vunpack.c.l.b16 %v162
    %v789 = vunpack.c.h.b16 %v162
    %v790 = vunpack.c.l.b16 %v163
    %v791 = vunpack.c.h.b16 %v163
    %v792 = vunpack.c.l.b16 %v164
    %v793 = vunpack.c.h.b16 %v164
    %v794 = vunpack.c.l.b16 %v165
    %v795 = vunpack.c.h.b16 %v165
    %v796 = vunpack.c.l.b16 %v166
    %v797 = vunpack.c.h.b16 %v166
    %v798 = vunpack.c.l.b16 %v167
    %v799 = vunpack.c.h.b16 %v167
    %v800 = vunpack.c.l.b16 %v168
    %v801 = vunpack.c.h.b16 %v168
    %v802 = vunpack.c.l.b16 %v169
    %v803 = vunpack.c.h.b16 %v169
    %v804 = vunpack.c.l.b16 %v170
    %v805 = vunpack.c.h.b16 %v170
    %v806 = vunpack.c.l.b16 %v171
    %v807 = vunpack.c.h.b16 %v171
    %v808 = vunpack.c.l.b16 %v172
    %v809 = vunpack.c.h.b16 %v172
    %v810 = vunpack.c.l.b16 %v173
    %v811 = vunpack.c.h.b16 %v173
    %v812 = vunpack.c.l.b16 %v174
    %v813 = vunpack.c.h.b16 %v174
    %v814 = vunpack.c.l.b16 %v175
    %v815 = vunpack.c.h.b16 %v175
    %v816 = vunpack.c.l.b16 %v176
    %v817 = vunpack.c.h.b16 %v176
    %v818 = vunpack.c.l.b16 %v177
    %v819 = vunpack.c.h.b16 %v177
    %v820 = vunpack.c.l.b16 %v178
    %v821 = vunpack.c.h.b16 %v178
    %v822 = vunpack.c.l.b16 %v179
    %v823 = vunpack.c.h.b16 %v179
    %v824 = vunpack.c.l.b16 %v180
    %v825 = vunpack.c.h.b16 %v180
    %v826 = vunpack.c.l.b16 %v181
    %v827 = vunpack.c.h.b16 %v181
    %v828 = vunpack.c.l.b16 %v182
    %v829 = vunpack.c.h.b16 %v182
    %v830 = vunpack.c.l.b16 %v183
    %v831 = vunpack.c.h.b16 %v183
    %v832 = vunpack.c.l.b16 %v184
    %v833 = vunpack.c.h.b16 %v184
    %v834 = vunpack.c.l.b16 %v185
    %v835 = vunpack.c.h.b16 %v185
    %v836 = vunpack.c.l.b16 %v186
    %v837 = vunpack.c.h.b16 %v186
    %v838 = vunpack.c.l.b16 %v187
    %v839 = vunpack.c.h.b16 %v187
    %v840 = vunpack.c.l.b16 %v188
    %v841 = vunpack.c.h.b16 %v188
    %v842 = vunpack.c.l.b16 %v189
    %v843 = vunpack.c.h.b16 %v189
    %v844 = vunpack.c.l.b16 %v190
    %v845 = vunpack.c.h.b16 %v190
    %v846 = vunpack.c.l.b16 %v191
    %v847 = vunpack.c.h.b16 %v191
    %v848 = vunpack.c.l.b16 %v192
    %v849 = vunpack.c.h.b16 %v192
    %v850 = vunpack.c.l.b16 %v193
    %v851 = vunpack.c.h.b16 %v193
    %v852 = vunpack.c.l.b16 %v194
    %v853 = vunpack.c.h.b16 %v194
    %v854 = vunpack.c.l.b16 %v195
    %v855 = vunpack.c.h.b16 %v195
    %v856 = vunpack.c.l.b16 %v196
    %v857 = vunpack.c.h.b16 %v196
    %v858 = vunpack.c.l.b16 %v197
    %v859 = vunpack.c.h.b16 %v197
    %v860 = vunpack.c.l.b16 %v198
    %v861 = vunpack.c.h.b16 %v198
    %v862 = vunpack.c.l.b16 %v199
    %v863 = vunpack.c.h.b16 %v199
    %v864 = vunpack.c.l.b16 %v200
    %v865 = vunpack.c.h.b16 %v200
    %v866 = vunpack.c.l.b16 %v201
    %v867 = vunpack.c.h.b16 %v201
    %v868 = vunpack.c.l.b16 %v202
    %v869 = vunpack.c.h.b16 %v202
    %v870 = vunpack.c.l.b16 %v203
    %v871 = vunpack.c.h.b16 %v203
    %v872 = vunpack.c.l.b16 %v204
    %v873 = vunpack.c.h.b16 %v204
    %v874 = vunpack.c.l.b16 %v205
    %v875 = vunpack.c.h.b16 %v205
    %v876 = vunpack.c.l.b16 %v206
    %v877 = vunpack.c.h.b16 %v206
    %v878 = vunpack.c.l.b16 %v207
    %v879 = vunpack.c.h.b16 %v207
    %v880 = vunpack.c.l.b16 %v208
    %v881 = vunpack.c.h.b16 %v208
    %v882 = vunpack.c.l.b16 %v209
    %v883 = vunpack.c.h.b16 %v209
    %v884 = vunpack.c.l.b16 %v210
    %v885 = vunpack.c.h.b16 %v210
    %v886 = vunpack.c.l.b16 %v211
    %v887 = vunpack.c.h.b16 %v211
    %v888 = vunpack.c.l.b16 %v212
    %v889 = vunpack.c.h.b16 %v212
    %v890 = vunpack.c.l.b16 %v213
    %v891 = vunpack.c.h.b16 %v213
    %v892 = vunpack.c.l.b16 %v214
    %v893 = vunpack.c.h.b16 %v214
    %v894 = vunpack.c.l.b16 %v215
    %v895 = vunpack.c.h.b16 %v215
    %v896 = vunpack.c.l.b16 %v216
    %v897 = vunpack.c.h.b16 %v216
    %v898 = vunpack.c.l.b16 %v217
    %v899 = vunpack.c.h.b16 %v217
    %v900 = vunpack.c.l.b16 %v218
    %v901 = vunpack.c.h.b16 %v218
    %v902 = vunpack.c.l.b16 %v219
    %v903 = vunpack.c.h.b16 %v219
    %v904 = vunpack.c.l.b16 %v220
    %v905 = vunpack.c.h.b16 %v220
    %v906 = vunpack.c.l.b16 %v221
    %v907 = vunpack.c.h.b16 %v221
    %v908 = vunpack.c.l.b16 %v222
    %v909 = vunpack.c.h.b16 %v222
    %v910 = vunpack.c.l.b16 %v223
    %v911 = vunpack.c.h.b16 %v223
    %v912 = vunpack.c.l.b16 %v224
    %v913 = vunpack.c.h.b16 %v224
    %v914 = vunpack.c.l.b16 %v225
    %v915 = vunpack.c.h.b16 %v225
    %v916 = vunpack.c.l.b16 %v226
    %v917 = vunpack.c.h.b16 %v226
    %v918 = vunpack.c.l.b16 %v227
    %v919 = vunpack.c.h.b16 %v227
    %v920 = vunpack.c.l.b16 %v228
    %v921 = vunpack.c.h.b16 %v228
    %v922 = vunpack.c.l.b16 %v229
    %v923 = vunpack.c.h.b16 %v229
    %v924 = vunpack.c.l.b16 %v230
    %v925 = vunpack.c.h.b16 %v230
    %v926 = vunpack.c.l.b16 %v231
    %v927 = vunpack.c.h.b16 %v231
    %v928 = vunpack.c.l.b16 %v232
    %v929 = vunpack.c.h.b16 %v232
    %v930 = vunpack.c.l.b16 %v233
    %v931 = vunpack.c.h.b16 %v233
    %v932 = vunpack.c.l.b16 %v234
    %v933 = vunpack.c.h.b16 %v234
    %v934 = vunpack.c.l.b16 %v235
    %v935 = vunpack.c.h.b16 %v235
    %v936 = vunpack.c.l.b16 %v236
    %v937 = vunpack.c.h.b16 %v236
    %v938 = vunpack.c.l.b16 %v237
    %v939 = vunpack.c.h.b16 %v237
    %v940 = vunpack.c.l.b16 %v238
    %v941 = vunpack.c.h.b16 %v238
    %v942 = vunpack.c.l.b16 %v239
    %v943 = vunpack.c.h.b16 %v239
    %v944 = vunpack.c.l.b16 %v240
    %v945 = vunpack.c.h.b16 %v240
    %v946 = vunpack.c.l.b16 %v241
    %v947 = vunpack.c.h.b16 %v241
    %v948 = vunpack.c.l.b16 %v242
    %v949 = vunpack.c.h.b16 %v242
    %v950 = vunpack.c.l.b16 %v243
    %v951 = vunpack.c.h.b16 %v243
    %v952 = vunpack.c.l.b16 %v244
    %v953 = vunpack.c.h.b16 %v244
    %v954 = vunpack.c.l.b16 %v245
    %v955 = vunpack.c.h.b16 %v245
    %v956 = vunpack.c.l.b16 %v246
    %v957 = vunpack.c.h.b16 %v246
    %v958 = vunpack.c.l.b16 %v247
    %v959 = vunpack.c.h.b16 %v247
    %v960 = vunpack.c.l.b16 %v248
    %v961 = vunpack.c.h.b16 %v248
    %v962 = vunpack.c.l.b16 %v249
    %v963 = vunpack.c.h.b16 %v249
    %v964 = vunpack.c.l.b16 %v250
    %v965 = vunpack.c.h.b16 %v250
    %v966 = vunpack.c.l.b16 %v251
    %v967 = vunpack.c.h.b16 %v251
    %v968 = vunpack.c.l.b16 %v252
    %v969 = vunpack.c.h.b16 %v252
    %v970 = vunpack.c.l.b16 %v253
    %v971 = vunpack.c.h.b16 %v253
    %v972 = vunpack.c.l.b16 %v254
    %v973 = vunpack.c.h.b16 %v254
    %v974 = vunpack.c.l.b16 %v255
    %v975 = vunpack.c.h.b16 %v255
    %v976 = vunpack.c.l.b16 %v256
    %v977 = vunpack.c.h.b16 %v256
    %v978 = vunpack.c.l.b16 %v257
    %v979 = vunpack.c.h.b16 %v257
    %v980 = vunpack.c.l.b16 %v258
    %v981 = vunpack.c.h.b16 %v258
    %v982 = vunpack.c.l.b16 %v259
    %v983 = vunpack.c.h.b16 %v259
    %v984 = vunpack.c.l.b16 %v260
    %v985 = vunpack.c.h.b16 %v260
    %v986 = vunpack.c.l.b16 %v261
    %v987 = vunpack.c.h.b16 %v261
    %v988 = vunpack.c.l.b16 %v262
    %v989 = vunpack.c.h.b16 %v262
    %v990 = vunpack.c.l.b16 %v263
    %v991 = vunpack.c.h.b16 %v263
    %v992 = vunpack.c.l.b16 %v264
    %v993 = vunpack.c.h.b16 %v264
    %v994 = vunpack.c.l.b16 %v265
    %v995 = vunpack.c.h.b16 %v265
    %v996 = vunpack.c.l.b16 %v266
    %v997 = vunpack.c.h.b16 %v266
    %v998 = vunpack.c.l.b16 %v267
    %v999 = vunpack.c.h.b16 %v267
    %v1000 = vunpack.c.l.b16 %v268
    %v1001 = vunpack.c.h.b16 %v268
    %v1002 = vunpack.c.l.b16 %v269
    %v1003 = vunpack.c.h.b16 %v269
    %v1004 = vunpack.c.l.b16 %v270
    %v1005 = vunpack.c.h.b16 %v270
    %v1006 = vunpack.c.l.b16 %v271
    %v1007 = vunpack.c.h.b16 %v271
    %v1008 = vunpack.c.l.b16 %v272
    %v1009 = vunpack.c.h.b16 %v272
    %v1010 = vunpack.c.l.b16 %v273
    %v1011 = vunpack.c.h.b16 %v273
    %v1012 = vunpack.c.l.b16 %v274
    %v1013 = vunpack.c.h.b16 %v274
    %v1014 = vunpack.c.l.b16 %v275
    %v1015 = vunpack.c.h.b16 %v275
    %v1016 = vunpack.c.l.b16 %v276
    %v1017 = vunpack.c.h.b16 %v276
    %v1018 = vunpack.c.l.b16 %v277
    %v1019 = vunpack.c.h.b16 %v277
    %v1020 = vunpack.c.l.b16 %v278
    %v1021 = vunpack.c.h.b16 %v278
    %v1022 = vunpack.c.l.b16 %v279
    %v1023 = vunpack.c.h.b16 %v279
    %v1024 = vunpack.c.l.b16 %v280
    %v1025 = vunpack.c.h.b16 %v280
    %v1026 = vunpack.c.l.b16 %v281
    %v1027 = vunpack.c.h.b16 %v281
    %v1028 = vunpack.c.l.b16 %v282
    %v1029 = vunpack.c.h.b16 %v282
    %v1030 = vunpack.c.l.b16 %v283
    %v1031 = vunpack.c.h.b16 %v283
    %v1032 = vunpack.c.l.b16 %v284
    %v1033 = vunpack.c.h.b16 %v284
    %v1034 = vunpack.c.l.b16 %v285
    %v1035 = vunpack.c.h.b16 %v285
    %v1036 = vunpack.c.l.b16 %v286
    %v1037 = vunpack.c.h.b16 %v286
    %v1038 = vunpack.c.l.b16 %v287
    %v1039 = vunpack.c.h.b16 %v287
    %v1040 = vunpack.c.l.b16 %v288
    %v1041 = vunpack.c.h.b16 %v288
    %v1042 = vunpack.c.l.b16 %v289
    %v1043 = vunpack.c.h.b16 %v289
    %v1044 = vunpack.c.l.b16 %v290
    %v1045 = vunpack.c.h.b16 %v290
    %v1046 = vunpack.c.l.b16 %v291
    %v1047 = vunpack.c.h.b16 %v291
    %v1048 = vunpack.c.l.b16 %v292
    %v1049 = vunpack.c.h.b16 %v292
    %v1050 = vunpack.c.l.b16 %v293
    %v1051 = vunpack.c.h.b16 %v293
    %v1052 = vunpack.c.l.b16 %v294
    %v1053 = vunpack.c.h.b16 %v294
    %v1054 = vunpack.c.l.b16 %v295
    %v1055 = vunpack.c.h.b16 %v295
    %v1056 = vunpack.c.l.b16 %v296
    %v1057 = vunpack.c.h.b16 %v296
    %v1058 = vunpack.c.l.b16 %v297
    %v1059 = vunpack.c.h.b16 %v297
    %v1060 = vunpack.c.l.b16 %v298
    %v1061 = vunpack.c.h.b16 %v298
    %v1062 = vunpack.c.l.b16 %v299
    %v1063 = vunpack.c.h.b16 %v299
    %v1064 = vunpack.c.l.b16 %v300
    %v1065 = vunpack.c.h.b16 %v300
    %v1066 = vunpack.c.l.b16 %v301
    %v1067 = vunpack.c.h.b16 %v301
    %v1068 = vunpack.c.l.b16 %v302
    %v1069 = vunpack.c.h.b16 %v302
    %v1070 = vunpack.c.l.b16 %v303
    %v1071 = vunpack.c.h.b16 %v303
    %v1072 = vunpack.c.l.b16 %v304
    %v1073 = vunpack.c.h.b16 %v304
    %v1074 = vunpack.c.l.b16 %v305
    %v1075 = vunpack.c.h.b16 %v305
    %v1076 = vunpack.c.l.b16 %v306
    %v1077 = vunpack.c.h.b16 %v306
    %v1078 = vunpack.c.l.b16 %v307
    %v1079 = vunpack.c.h.b16 %v307
    %v1080 = vpack.c.b16 %v584, %v580
    %v1081 = vpack.c.b16 %v585, %v581
    %v1082 = vpack.c.b16 %v586, %v582
    %v1083 = vpack.c.b16 %v587, %v583
    %v1084 = vpack.c.b16 %v592, %v588
    %v1085 = vpack.c.b16 %v593, %v589
    %v1086 = vpack.c.b16 %v594, %v590
    %v1087 = vpack.c.b16 %v595, %v591
    %v1088 = vpack.c.b16 %v600, %v596
    %v1089 = vpack.c.b16 %v601, %v597
    %v1090 = vpack.c.b16 %v602, %v598
    %v1091 = vpack.c.b16 %v603, %v599
    %v1092 = vpack.c.b16 %v608, %v604
    %v1093 = vpack.c.b16 %v609, %v605
    %v1094 = vpack.c.b16 %v610, %v606
    %v1095 = vpack.c.b16 %v611, %v607
    %v1096 = vpack.c.b16 %v616, %v612
    %v1097 = vpack.c.b16 %v617, %v613
    %v1098 = vpack.c.b16 %v618, %v614
    %v1099 = vpack.c.b16 %v619, %v615
    %v1100 = vpack.c.b16 %v624, %v620
    %v1101 = vpack.c.b16 %v625, %v621
    %v1102 = vpack.c.b16 %v626, %v622
    %v1103 = vpack.c.b16 %v627, %v623
    %v1104 = vpack.c.b16 %v632, %v628
    %v1105 = vpack.c.b16 %v633, %v629
    %v1106 = vpack.c.b16 %v634, %v630
    %v1107 = vpack.c.b16 %v635, %v631
    %v1108 = vpack.c.b16 %v640, %v636
    %v1109 = vpack.c.b16 %v641, %v637
    %v1110 = vpack.c.b16 %v642, %v638
    %v1111 = vpack.c.b16 %v643, %v639
    %v1112 = vpack.c.b16 %v648, %v644
    %v1113 = vpack.c.b16 %v649, %v645
    %v1114 = vpack.c.b16 %v650, %v646
    %v1115 = vpack.c.b16 %v651, %v647
    %v1116 = vpack.c.b16 %v656, %v652
    %v1117 = vpack.c.b16 %v657, %v653
    %v1118 = vpack.c.b16 %v658, %v654
    %v1119 = vpack.c.b16 %v659, %v655
    %v1120 = vpack.c.b16 %v664, %v660
    %v1121 = vpack.c.b16 %v665, %v661
    %v1122 = vpack.c.b16 %v666, %v662
    %v1123 = vpack.c.b16 %v667, %v663
    %v1124 = vpack.c.b16 %v672, %v668
    %v1125 = vpack.c.b16 %v673, %v669
    %v1126 = vpack.c.b16 %v674, %v670
    %v1127 = vpack.c.b16 %v675, %v671
    %v1128 = vpack.c.b16 %v680, %v676
    %v1129 = vpack.c.b16 %v681, %v677
    %v1130 = vpack.c.b16 %v682, %v678
    %v1131 = vpack.c.b16 %v683, %v679
    %v1132 = vpack.c.b16 %v688, %v684
    %v1133 = vpack.c.b16 %v689, %v685
    %v1134 = vpack.c.b16 %v690, %v686
    %v1135 = vpack.c.b16 %v691, %v687
    %v1136 = vpack.c.b16 %v696, %v692
    %v1137 = vpack.c.b16 %v697, %v693
    %v1138 = vpack.c.b16 %v698, %v694
    %v1139 = vpack.c.b16 %v699, %v695
    %v1140 = vpack.c.b16 %v704, %v700
    %v1141 = vpack.c.b16 %v705, %v701
    %v1142 = vpack.c.b16 %v706, %v702
    %v1143 = vpack.c.b16 %v707, %v703
    %v1144 = vpack.c.b16 %v712, %v708
    %v1145 = vpack.c.b16 %v713, %v709
    %v1146 = vpack.c.b16 %v714, %v710
    %v1147 = vpack.c.b16 %v715, %v711
    %v1148 = vpack.c.b16 %v720, %v716
    %v1149 = vpack.c.b16 %v721, %v717
    %v1150 = vpack.c.b16 %v722, %v718
    %v1151 = vpack.c.b16 %v723, %v719
    %v1152 = vpack.c.b16 %v728, %v724
    %v1153 = vpack.c.b16 %v729, %v725
    %v1154 = vpack.c.b16 %v730, %v726
    %v1155 = vpack.c.b16 %v731, %v727
    %v1156 = vpack.c.b16 %v736, %v732
    %v1157 = vpack.c.b16 %v737, %v733
    %v1158 = vpack.c.b16 %v738, %v734
    %v1159 = vpack.c.b16 %v739, %v735
    %v1160 = vpack.c.b16 %v744, %v740
    %v1161 = vpack.c.b16 %v745, %v741
    %v1162 = vpack.c.b16 %v746, %v742
    %v1163 = vpack.c.b16 %v747, %v743
    %v1164 = vpack.c.b16 %v752, %v748
    %v1165 = vpack.c.b16 %v753, %v749
    %v1166 = vpack.c.b16 %v754, %v750
    %v1167 = vpack.c.b16 %v755, %v751
    %v1168 = vpack.c.b16 %v760, %v756
    %v1169 = vpack.c.b16 %v761, %v757
    %v1170 = vpack.c.b16 %v762, %v758
    %v1171 = vpack.c.b16 %v763, %v759
    %v1172 = vpack.c.b16 %v768, %v764
    %v1173 = vpack.c.b16 %v769, %v765
    %v1174 = vpack.c.b16 %v770, %v766
    %v1175 = vpack.c.b16 %v771, %v767
    %v1176 = vpack.c.b16 %v776, %v772
    %v1177 = vpack.c.b16 %v777, %v773
    %v1178 = vpack.c.b16 %v778, %v774
    %v1179 = vpack.c.b16 %v779, %v775
    %v1180 = vpack.c.b16 %v784, %v780
    %v1181 = vpack.c.b16 %v785, %v781
    %v1182 = vpack.c.b16 %v786, %v782
    %v1183 = vpack.c.b16 %v787, %v783
    %v1184 = vpack.c.b16 %v792, %v788
    %v1185 = vpack.c.b16 %v793, %v789
    %v1186 = vpack.c.b16 %v794, %v790
    %v1187 = vpack.c.b16 %v795, %v791
    %v1188 = vpack.c.b16 %v800, %v796
    %v1189 = vpack.c.b16 %v801, %v797
    %v1190 = vpack.c.b16 %v802, %v798
    %v1191 = vpack.c.b16 %v803, %v799
    %v1192 = vpack.c.b16 %v808, %v804
    %v1193 = vpack.c.b16 %v809, %v805
    %v1194 = vpack.c.b16 %v810, %v806
    %v1195 = vpack.c.b16 %v811, %v807
    %v1196 = vpack.c.b16 %v816, %v812
    %v1197 = vpack.c.b16 %v817, %v813
    %v1198 = vpack.c.b16 %v818, %v814
    %v1199 = vpack.c.b16 %v819, %v815
    %v1200 = vpack.c.b16 %v824, %v820
    %v1201 = vpack.c.b16 %v825, %v821
    %v1202 = vpack.c.b16 %v826, %v822
    %v1203 = vpack.c.b16 %v827, %v823
    %v1204 = vpack.c.b16 %v832, %v828
    %v1205 = vpack.c.b16 %v833, %v829
    %v1206 = vpack.c.b16 %v834, %v830
    %v1207 = vpack.c.b16 %v835, %v831
    %v1208 = vpack.c.b16 %v840, %v836
    %v1209 = vpack.c.b16 %v841, %v837
    %v1210 = vpack.c.b16 %v842, %v838
    %v1211 = vpack.c.b16 %v843, %v839
    %v1212 = vpack.c.b16 %v848, %v844
    %v1213 = vpack.c.b16 %v849, %v845
    %v1214 = vpack.c.b16 %v850, %v846
    %v1215 = vpack.c.b16 %v851, %v847
    %v1216 = vpack.c.b16 %v856, %v852
    %v1217 = vpack.c.b16 %v857, %v853
    %v1218 = vpack.c.b16 %v858, %v854
    %v1219 = vpack.c.b16 %v859, %v855
    %v1220 = vpack.c.b16 %v864, %v860
    %v1221 = vpack.c.b16 %v865, %v861
    %v1222 = vpack.c.b16 %v866, %v862
    %v1223 = vpack.c.b16 %v867, %v863
    %v1224 = vpack.c.b16 %v872, %v868
    %v1225 = vpack.c.b16 %v873, %v869
    %v1226 = vpack.c.b16 %v874, %v870
    %v1227 = vpack.c.b16 %v875, %v871
    %v1228 = vpack.c.b16 %v880, %v876
    %v1229 = vpack.c.b16 %v881, %v877
    %v1230 = vpack.c.b16 %v882, %v878
    %v1231 = vpack.c.b16 %v883, %v879
    %v1232 = vpack.c.b16 %v888, %v884
    %v1233 = vpack.c.b16 %v889, %v885
    %v1234 = vpack.c.b16 %v890, %v886
    %v1235 = vpack.c.b16 %v891, %v887
    %v1236 = vpack.c.b16 %v896, %v892
    %v1237 = vpack.c.b16 %v897, %v893
    %v1238 = vpack.c.b16 %v898, %v894
    %v1239 = vpack.c.b16 %v899, %v895
    %v1240 = vpack.c.b16 %v904, %v900
    %v1241 = vpack.c.b16 %v905, %v901
    %v1242 = vpack.c.b16 %v906, %v902
    %v1243 = vpack.c.b16 %v907, %v903
    %v1244 = vpack.c.b16 %v912, %v908
    %v1245 = vpack.c.b16 %v913, %v909
    %v1246 = vpack.c.b16 %v914, %v910
    %v1247 = vpack.c.b16 %v915, %v911
    %v1248 = vpack.c.b16 %v920, %v916
    %v1249 = vpack.c.b16 %v921, %v917
    %v1250 = vpack.c.b16 %v922, %v918
    %v1251 = vpack.c.b16 %v923, %v919
    %v1252 = vpack.c.b16 %v928, %v924
    %v1253 = vpack.c.b16 %v929, %v925
    %v1254 = vpack.c.b16 %v930, %v926
    %v1255 = vpack.c.b16 %v931, %v927
    %v1256 = vpack.c.b16 %v936, %v932
    %v1257 = vpack.c.b16 %v937, %v933
    %v1258 = vpack.c.b16 %v938, %v934
    %v1259 = vpack.c.b16 %v939, %v935
    %v1260 = vpack.c.b16 %v944, %v940
    %v1261 = vpack.c.b16 %v945, %v941
    %v1262 = vpack.c.b16 %v946, %v942
    %v1263 = vpack.c.b16 %v947, %v943
    %v1264 = vpack.c.b16 %v952, %v948
    %v1265 = vpack.c.b16 %v953, %v949
    %v1266 = vpack.c.b16 %v954, %v950
    %v1267 = vpack.c.b16 %v955, %v951
    %v1268 = vpack.c.b16 %v960, %v956
    %v1269 = vpack.c.b16 %v961, %v957
    %v1270 = vpack.c.b16 %v962, %v958
    %v1271 = vpack.c.b16 %v963, %v959
    %v1272 = vpack.c.b16 %v968, %v964
    %v1273 = vpack.c.b16 %v969, %v965
    %v1274 = vpack.c.b16 %v970, %v966
    %v1275 = vpack.c.b16 %v971, %v967
    %v1276 = vpack.c.b16 %v976, %v972
    %v1277 = vpack.c.b16 %v977, %v973
    %v1278 = vpack.c.b16 %v978, %v974
    %v1279 = vpack.c.b16 %v979, %v975
    %v1280 = vpack.c.b16 %v984, %v980
    %v1281 = vpack.c.b16 %v985, %v981
    %v1282 = vpack.c.b16 %v986, %v982
    %v1283 = vpack.c.b16 %v987, %v983
    %v1284 = vpack.c.b16 %v992, %v988
    %v1285 = vpack.c.b16 %v993, %v989
    %v1286 = vpack.c.b16 %v994, %v990
    %v1287 = vpack.c.b16 %v995, %v991
    %v1288 = vpack.c.b16 %v1000, %v996
    %v1289 = vpack.c.b16 %v1001, %v997
    %v1290 = vpack.c.b16 %v1002, %v998
    %v1291 = vpack.c.b16 %v1003, %v999
    %v1292 = vpack.c.b16 %v1008, %v1004
    %v1293 = vpack.c.b16 %v1009, %v1005
    %v1294 = vpack.c.b16 %v1010, %v1006
    %v1295 = vpack.c.b16 %v1011, %v1007
    %v1296 = vpack.c.b16 %v1016, %v1012
    %v1297 = vpack.c.b16 %v1017, %v1013
    %v1298 = vpack.c.b16 %v1018, %v1014
    %v1299 = vpack.c.b16 %v1019, %v1015
    %v1300 = vpack.c.b16 %v1024, %v1020
    %v1301 = vpack.c.b16 %v1025, %v1021
    %v1302 = vpack.c.b16 %v1026, %v1022
    %v1303 = vpack.c.b16 %v1027, %v1023
    %v1304 = vpack.c.b16 %v1032, %v1028
    %v1305 = vpack.c.b16 %v1033, %v1029
    %v1306 = vpack.c.b16 %v1034, %v1030
    %v1307 = vpack.c.b16 %v1035, %v1031
    %v1308 = vpack.c.b16 %v1040, %v1036
    %v1309 = vpack.c.b16 %v1041, %v1037
    %v1310 = vpack.c.b16 %v1042, %v1038
    %v1311 = vpack.c.b16 %v1043, %v1039
    %v1312 = vpack.c.b16 %v1048, %v1044
    %v1313 = vpack.c.b16 %v1049, %v1045
    %v1314 = vpack.c.b16 %v1050, %v1046
    %v1315 = vpack.c.b16 %v1051, %v1047
    %v1316 = vpack.c.b16 %v1056, %v1052
    %v1317 = vpack.c.b16 %v1057, %v1053
    %v1318 = vpack.c.b16 %v1058, %v1054
    %v1319 = vpack.c.b16 %v1059, %v1055
    %v1320 = vpack.c.b16 %v1064, %v1060
    %v1321 = vpack.c.b16 %v1065, %v1061
    %v1322 = vpack.c.b16 %v1066, %v1062
    %v1323 = vpack.c.b16 %v1067, %v1063
    %v1324 = vpack.c.b16 %v1072, %v1068
    %v1325 = vpack.c.b16 %v1073, %v1069
    %v1326 = vpack.c.b16 %v1074, %v1070
    %v1327 = vpack.c.b16 %v1075, %v1071
    %v1328 = vpack.c.b16 %v1076, %v1076
    %v1329 = vpack.c.b16 %v1077, %v1077
    %v1330 = vpack.c.b16 %v1078, %v1078
    %v1331 = vpack.c.b16 %v1079, %v1079
    %vm1580 = vcmask 850944
    %v1582 = vsel %vm1580, %v57, 0
    %vm1584 = vcmask 1043456
    %v1586 = vsel %vm1584, %v1328, 0
    %v1589 = vsel %vm1584, %v1329, 0
    %v1592 = vsel %vm1584, %v1330, 0
    %v1595 = vsel %vm1584, %v1331, 0
    %1597 = vmatprep.subr.bf16.mxu0 %v1109
    %1598 = vmatpush1.bf16.msra.mxu0 %v1108
    %1599 = vmatprep.subr.bf16.mxu0 %v1105
    %1600 = vmatpush1.bf16.msra.mxu0 %v1104
    %1601 = vmatprep.subr.bf16.mxu0 %v1101
    %1602 = vmatpush1.bf16.msra.mxu0 %v1100
    %1603 = vmatprep.subr.bf16.mxu0 %v1097
    %1604 = vmatpush1.bf16.msra.mxu0 %v1096
    %1605 = vmatprep.subr.bf16.mxu0 %v1093
    %1606 = vmatpush1.bf16.msra.mxu0 %v1092
    %1607 = vmatprep.subr.bf16.mxu0 %v1089
    %1608 = vmatpush1.bf16.msra.mxu0 %v1088
    %1609 = vmatprep.subr.bf16.mxu0 %v1085
    %1610 = vmatpush1.bf16.msra.mxu0 %v1084
    %1611 = vmatprep.subr.bf16.mxu0 %v1081
    %1612 = vmatpush1.bf16.msra.mxu0 %v1080
    %1613 = vmatprep.subr.bf16.mxu0 %v1141
    %1614 = vmatpush2.bf16.msra.mxu0 %v1140
    %1615 = vmatprep.subr.bf16.mxu0 %v1137
    %1616 = vmatpush2.bf16.msra.mxu0 %v1136
    %1617 = vmatprep.subr.bf16.mxu0 %v1133
    %1618 = vmatpush2.bf16.msra.mxu0 %v1132
    %1619 = vmatprep.subr.bf16.mxu0 %v1129
    %1620 = vmatpush2.bf16.msra.mxu0 %v1128
    %1621 = vmatprep.subr.bf16.mxu0 %v1125
    %1622 = vmatpush2.bf16.msra.mxu0 %v1124
    %1623 = vmatprep.subr.bf16.mxu0 %v1121
    %1624 = vmatpush2.bf16.msra.mxu0 %v1120
    %1625 = vmatprep.subr.bf16.mxu0 %v1117
    %1626 = vmatpush2.bf16.msra.mxu0 %v1116
    %1627 = vmatprep.subr.bf16.mxu0 %v1113
    %1628 = vmatpush2.bf16.msra.mxu0 %v1112
    %1629 = vmatprep.mubr.bf16.mxu0 %v51
    %1630 = vmatmul.mubr.bf16.gmra.mxu0 %v50
    %v1631 = vpop.f32.mrf.mxu0
    %v1632 = vadd.f32 %v313, %v1631
    %v1633 = vpop.f32.mrf.mxu0
    %v1634 = vadd.f32 %v317, %v1633
    %v1635 = vpop.f32.mrf.mxu0
    %v1636 = vpop.f32.mrf.mxu0
    %1637 = vdwg.mxu0
    %1638 = vmatprep.subr.bf16.mxu0 %v1173
    %1639 = vmatpush1.bf16.msra.mxu0 %v1172
    %1640 = vmatprep.subr.bf16.mxu0 %v1169
    %1641 = vmatpush1.bf16.msra.mxu0 %v1168
    %1642 = vmatprep.subr.bf16.mxu0 %v1165
    %1643 = vmatpush1.bf16.msra.mxu0 %v1164
    %1644 = vmatprep.subr.bf16.mxu0 %v1161
    %1645 = vmatpush1.bf16.msra.mxu0 %v1160
    %1646 = vmatprep.subr.bf16.mxu0 %v1157
    %1647 = vmatpush1.bf16.msra.mxu0 %v1156
    %1648 = vmatprep.subr.bf16.mxu0 %v1153
    %1649 = vmatpush1.bf16.msra.mxu0 %v1152
    %1650 = vmatprep.subr.bf16.mxu0 %v1149
    %1651 = vmatpush1.bf16.msra.mxu0 %v1148
    %1652 = vmatprep.subr.bf16.mxu0 %v1145
    %1653 = vmatpush1.bf16.msra.mxu0 %v1144
    %1654 = vmatprep.subr.bf16.mxu0 %v1205
    %1655 = vmatpush2.bf16.msra.mxu0 %v1204
    %1656 = vmatprep.subr.bf16.mxu0 %v1201
    %1657 = vmatpush2.bf16.msra.mxu0 %v1200
    %1658 = vmatprep.subr.bf16.mxu0 %v1197
    %1659 = vmatpush2.bf16.msra.mxu0 %v1196
    %1660 = vmatprep.subr.bf16.mxu0 %v1193
    %1661 = vmatpush2.bf16.msra.mxu0 %v1192
    %1662 = vmatprep.subr.bf16.mxu0 %v1189
    %1663 = vmatpush2.bf16.msra.mxu0 %v1188
    %1664 = vmatprep.subr.bf16.mxu0 %v1185
    %1665 = vmatpush2.bf16.msra.mxu0 %v1184
    %1666 = vmatprep.subr.bf16.mxu0 %v1181
    %1667 = vmatpush2.bf16.msra.mxu0 %v1180
    %1668 = vmatprep.subr.bf16.mxu0 %v1177
    %1669 = vmatpush2.bf16.msra.mxu0 %v1176
    %1670 = vmatprep.mubr.bf16.mxu0 %v53
    %1671 = vmatmul.mubr.bf16.gmra.mxu0 %v52
    %v1672 = vpop.f32.mrf.mxu0
    %v1673 = vadd.f32 %v1632, %v1672
    %v1674 = vpop.f32.mrf.mxu0
    %v1675 = vadd.f32 %v1634, %v1674
    %v1676 = vpop.f32.mrf.mxu0
    %v1677 = vpop.f32.mrf.mxu0
    %1678 = vdwg.mxu0
    %1679 = vmatprep.subr.bf16.mxu0 %v1237
    %1680 = vmatpush1.bf16.msra.mxu0 %v1236
    %1681 = vmatprep.subr.bf16.mxu0 %v1233
    %1682 = vmatpush1.bf16.msra.mxu0 %v1232
    %1683 = vmatprep.subr.bf16.mxu0 %v1229
    %1684 = vmatpush1.bf16.msra.mxu0 %v1228
    %1685 = vmatprep.subr.bf16.mxu0 %v1225
    %1686 = vmatpush1.bf16.msra.mxu0 %v1224
    %1687 = vmatprep.subr.bf16.mxu0 %v1221
    %1688 = vmatpush1.bf16.msra.mxu0 %v1220
    %1689 = vmatprep.subr.bf16.mxu0 %v1217
    %1690 = vmatpush1.bf16.msra.mxu0 %v1216
    %1691 = vmatprep.subr.bf16.mxu0 %v1213
    %1692 = vmatpush1.bf16.msra.mxu0 %v1212
    %1693 = vmatprep.subr.bf16.mxu0 %v1209
    %1694 = vmatpush1.bf16.msra.mxu0 %v1208
    %1695 = vmatprep.subr.bf16.mxu0 %v1269
    %1696 = vmatpush2.bf16.msra.mxu0 %v1268
    %1697 = vmatprep.subr.bf16.mxu0 %v1265
    %1698 = vmatpush2.bf16.msra.mxu0 %v1264
    %1699 = vmatprep.subr.bf16.mxu0 %v1261
    %1700 = vmatpush2.bf16.msra.mxu0 %v1260
    %1701 = vmatprep.subr.bf16.mxu0 %v1257
    %1702 = vmatpush2.bf16.msra.mxu0 %v1256
    %1703 = vmatprep.subr.bf16.mxu0 %v1253
    %1704 = vmatpush2.bf16.msra.mxu0 %v1252
    %1705 = vmatprep.subr.bf16.mxu0 %v1249
    %1706 = vmatpush2.bf16.msra.mxu0 %v1248
    %1707 = vmatprep.subr.bf16.mxu0 %v1245
    %1708 = vmatpush2.bf16.msra.mxu0 %v1244
    %1709 = vmatprep.subr.bf16.mxu0 %v1241
    %1710 = vmatpush2.bf16.msra.mxu0 %v1240
    %1711 = vmatprep.mubr.bf16.mxu0 %v55
    %1712 = vmatmul.mubr.bf16.gmra.mxu0 %v54
    %v1713 = vpop.f32.mrf.mxu0
    %v1714 = vadd.f32 %v1673, %v1713
    %v1715 = vpop.f32.mrf.mxu0
    %v1716 = vadd.f32 %v1675, %v1715
    %v1717 = vpop.f32.mrf.mxu0
    %v1718 = vpop.f32.mrf.mxu0
    %1719 = vdwg.mxu0
    %1720 = vmatprep.subr.bf16.mxu0 %v1301
    %1721 = vmatpush1.bf16.msra.mxu0 %v1300
    %1722 = vmatprep.subr.bf16.mxu0 %v1297
    %1723 = vmatpush1.bf16.msra.mxu0 %v1296
    %1724 = vmatprep.subr.bf16.mxu0 %v1293
    %1725 = vmatpush1.bf16.msra.mxu0 %v1292
    %1726 = vmatprep.subr.bf16.mxu0 %v1289
    %1727 = vmatpush1.bf16.msra.mxu0 %v1288
    %1728 = vmatprep.subr.bf16.mxu0 %v1285
    %1729 = vmatpush1.bf16.msra.mxu0 %v1284
    %1730 = vmatprep.subr.bf16.mxu0 %v1281
    %1731 = vmatpush1.bf16.msra.mxu0 %v1280
    %1732 = vmatprep.subr.bf16.mxu0 %v1277
    %1733 = vmatpush1.bf16.msra.mxu0 %v1276
    %1734 = vmatprep.subr.bf16.mxu0 %v1273
    %1735 = vmatpush1.bf16.msra.mxu0 %v1272
    %1736 = vmatprep.subr.bf16.mxu0 0
    %1737 = vmatpush2.bf16.msra.mxu0 0
    %1738 = vmatprep.subr.bf16.mxu0 %v1589
    %1739 = vmatpush2.bf16.msra.mxu0 %v1586
    %1740 = vmatprep.subr.bf16.mxu0 %v1325
    %1741 = vmatpush2.bf16.msra.mxu0 %v1324
    %1742 = vmatprep.subr.bf16.mxu0 %v1321
    %1743 = vmatpush2.bf16.msra.mxu0 %v1320
    %1744 = vmatprep.subr.bf16.mxu0 %v1317
    %1745 = vmatpush2.bf16.msra.mxu0 %v1316
    %1746 = vmatprep.subr.bf16.mxu0 %v1313
    %1747 = vmatpush2.bf16.msra.mxu0 %v1312
    %1748 = vmatprep.subr.bf16.mxu0 %v1309
    %1749 = vmatpush2.bf16.msra.mxu0 %v1308
    %1750 = vmatprep.subr.bf16.mxu0 %v1305
    %1751 = vmatpush2.bf16.msra.mxu0 %v1304
    %1752 = vmatprep.mubr.bf16.mxu0 %v1582
    %1753 = vmatmul.mubr.bf16.gmra.mxu0 %v56
    %v1754 = vpop.f32.mrf.mxu0
    %v1755 = vadd.f32 %v1714, %v1754
    %v1756 = vpop.f32.mrf.mxu0
    %v1757 = vadd.f32 %v1716, %v1756
    %v1758 = vpop.f32.mrf.mxu0
    %v1759 = vpop.f32.mrf.mxu0
    %1760 = vdwg.mxu0
    %1761 = vmatprep.subr.bf16.mxu0 %v1111
    %1762 = vmatpush1.bf16.msra.mxu0 %v1110
    %1763 = vmatprep.subr.bf16.mxu0 %v1107
    %1764 = vmatpush1.bf16.msra.mxu0 %v1106
    %1765 = vmatprep.subr.bf16.mxu0 %v1103
    %1766 = vmatpush1.bf16.msra.mxu0 %v1102
    %1767 = vmatprep.subr.bf16.mxu0 %v1099
    %1768 = vmatpush1.bf16.msra.mxu0 %v1098
    %1769 = vmatprep.subr.bf16.mxu0 %v1095
    %1770 = vmatpush1.bf16.msra.mxu0 %v1094
    %1771 = vmatprep.subr.bf16.mxu0 %v1091
    %1772 = vmatpush1.bf16.msra.mxu0 %v1090
    %1773 = vmatprep.subr.bf16.mxu0 %v1087
    %1774 = vmatpush1.bf16.msra.mxu0 %v1086
    %1775 = vmatprep.subr.bf16.mxu0 %v1083
    %1776 = vmatpush1.bf16.msra.mxu0 %v1082
    %1777 = vmatprep.subr.bf16.mxu0 %v1143
    %1778 = vmatpush2.bf16.msra.mxu0 %v1142
    %1779 = vmatprep.subr.bf16.mxu0 %v1139
    %1780 = vmatpush2.bf16.msra.mxu0 %v1138
    %1781 = vmatprep.subr.bf16.mxu0 %v1135
    %1782 = vmatpush2.bf16.msra.mxu0 %v1134
    %1783 = vmatprep.subr.bf16.mxu0 %v1131
    %1784 = vmatpush2.bf16.msra.mxu0 %v1130
    %1785 = vmatprep.subr.bf16.mxu0 %v1127
    %1786 = vmatpush2.bf16.msra.mxu0 %v1126
    %1787 = vmatprep.subr.bf16.mxu0 %v1123
    %1788 = vmatpush2.bf16.msra.mxu0 %v1122
    %1789 = vmatprep.subr.bf16.mxu0 %v1119
    %1790 = vmatpush2.bf16.msra.mxu0 %v1118
    %1791 = vmatprep.subr.bf16.mxu0 %v1115
    %1792 = vmatpush2.bf16.msra.mxu0 %v1114
    %1793 = vmatprep.mubr.bf16.mxu0 %v51
    %1794 = vmatmul.mubr.bf16.gmra.mxu0 %v50
    %v1795 = vpop.f32.mrf.mxu0
    %v1796 = vadd.f32 %v321, %v1795
    %v1797 = vpop.f32.mrf.mxu0
    %v1798 = vadd.f32 %v325, %v1797
    %v1799 = vpop.f32.mrf.mxu0
    %v1800 = vpop.f32.mrf.mxu0
    %1801 = vdwg.mxu0
    %1802 = vmatprep.subr.bf16.mxu0 %v1175
    %1803 = vmatpush1.bf16.msra.mxu0 %v1174
    %1804 = vmatprep.subr.bf16.mxu0 %v1171
    %1805 = vmatpush1.bf16.msra.mxu0 %v1170
    %1806 = vmatprep.subr.bf16.mxu0 %v1167
    %1807 = vmatpush1.bf16.msra.mxu0 %v1166
    %1808 = vmatprep.subr.bf16.mxu0 %v1163
    %1809 = vmatpush1.bf16.msra.mxu0 %v1162
    %1810 = vmatprep.subr.bf16.mxu0 %v1159
    %1811 = vmatpush1.bf16.msra.mxu0 %v1158
    %1812 = vmatprep.subr.bf16.mxu0 %v1155
    %1813 = vmatpush1.bf16.msra.mxu0 %v1154
    %1814 = vmatprep.subr.bf16.mxu0 %v1151
    %1815 = vmatpush1.bf16.msra.mxu0 %v1150
    %1816 = vmatprep.subr.bf16.mxu0 %v1147
    %1817 = vmatpush1.bf16.msra.mxu0 %v1146
    %1818 = vmatprep.subr.bf16.mxu0 %v1207
    %1819 = vmatpush2.bf16.msra.mxu0 %v1206
    %1820 = vmatprep.subr.bf16.mxu0 %v1203
    %1821 = vmatpush2.bf16.msra.mxu0 %v1202
    %1822 = vmatprep.subr.bf16.mxu0 %v1199
    %1823 = vmatpush2.bf16.msra.mxu0 %v1198
    %1824 = vmatprep.subr.bf16.mxu0 %v1195
    %1825 = vmatpush2.bf16.msra.mxu0 %v1194
    %1826 = vmatprep.subr.bf16.mxu0 %v1191
    %1827 = vmatpush2.bf16.msra.mxu0 %v1190
    %1828 = vmatprep.subr.bf16.mxu0 %v1187
    %1829 = vmatpush2.bf16.msra.mxu0 %v1186
    %1830 = vmatprep.subr.bf16.mxu0 %v1183
    %1831 = vmatpush2.bf16.msra.mxu0 %v1182
    %1832 = vmatprep.subr.bf16.mxu0 %v1179
    %1833 = vmatpush2.bf16.msra.mxu0 %v1178
    %1834 = vmatprep.mubr.bf16.mxu0 %v53
    %1835 = vmatmul.mubr.bf16.gmra.mxu0 %v52
    %v1836 = vpop.f32.mrf.mxu0
    %v1837 = vadd.f32 %v1796, %v1836
    %v1838 = vpop.f32.mrf.mxu0
    %v1839 = vadd.f32 %v1798, %v1838
    %v1840 = vpop.f32.mrf.mxu0
    %v1841 = vpop.f32.mrf.mxu0
    %1842 = vdwg.mxu0
    %1843 = vmatprep.subr.bf16.mxu0 %v1239
    %1844 = vmatpush1.bf16.msra.mxu0 %v1238
    %1845 = vmatprep.subr.bf16.mxu0 %v1235
    %1846 = vmatpush1.bf16.msra.mxu0 %v1234
    %1847 = vmatprep.subr.bf16.mxu0 %v1231
    %1848 = vmatpush1.bf16.msra.mxu0 %v1230
    %1849 = vmatprep.subr.bf16.mxu0 %v1227
    %1850 = vmatpush1.bf16.msra.mxu0 %v1226
    %1851 = vmatprep.subr.bf16.mxu0 %v1223
    %1852 = vmatpush1.bf16.msra.mxu0 %v1222
    %1853 = vmatprep.subr.bf16.mxu0 %v1219
    %1854 = vmatpush1.bf16.msra.mxu0 %v1218
    %1855 = vmatprep.subr.bf16.mxu0 %v1215
    %1856 = vmatpush1.bf16.msra.mxu0 %v1214
    %1857 = vmatprep.subr.bf16.mxu0 %v1211
    %1858 = vmatpush1.bf16.msra.mxu0 %v1210
    %1859 = vmatprep.subr.bf16.mxu0 %v1271
    %1860 = vmatpush2.bf16.msra.mxu0 %v1270
    %1861 = vmatprep.subr.bf16.mxu0 %v1267
    %1862 = vmatpush2.bf16.msra.mxu0 %v1266
    %1863 = vmatprep.subr.bf16.mxu0 %v1263
    %1864 = vmatpush2.bf16.msra.mxu0 %v1262
    %1865 = vmatprep.subr.bf16.mxu0 %v1259
    %1866 = vmatpush2.bf16.msra.mxu0 %v1258
    %1867 = vmatprep.subr.bf16.mxu0 %v1255
    %1868 = vmatpush2.bf16.msra.mxu0 %v1254
    %1869 = vmatprep.subr.bf16.mxu0 %v1251
    %1870 = vmatpush2.bf16.msra.mxu0 %v1250
    %1871 = vmatprep.subr.bf16.mxu0 %v1247
    %1872 = vmatpush2.bf16.msra.mxu0 %v1246
    %1873 = vmatprep.subr.bf16.mxu0 %v1243
    %1874 = vmatpush2.bf16.msra.mxu0 %v1242
    %1875 = vmatprep.mubr.bf16.mxu0 %v55
    %1876 = vmatmul.mubr.bf16.gmra.mxu0 %v54
    %v1877 = vpop.f32.mrf.mxu0
    %v1878 = vadd.f32 %v1837, %v1877
    %v1879 = vpop.f32.mrf.mxu0
    %v1880 = vadd.f32 %v1839, %v1879
    %v1881 = vpop.f32.mrf.mxu0
    %v1882 = vpop.f32.mrf.mxu0
    %1883 = vdwg.mxu0
    %1884 = vmatprep.subr.bf16.mxu0 %v1303
    %1885 = vmatpush1.bf16.msra.mxu0 %v1302
    %1886 = vmatprep.subr.bf16.mxu0 %v1299
    %1887 = vmatpush1.bf16.msra.mxu0 %v1298
    %1888 = vmatprep.subr.bf16.mxu0 %v1295
    %1889 = vmatpush1.bf16.msra.mxu0 %v1294
    %1890 = vmatprep.subr.bf16.mxu0 %v1291
    %1891 = vmatpush1.bf16.msra.mxu0 %v1290
    %1892 = vmatprep.subr.bf16.mxu0 %v1287
    %1893 = vmatpush1.bf16.msra.mxu0 %v1286
    %1894 = vmatprep.subr.bf16.mxu0 %v1283
    %1895 = vmatpush1.bf16.msra.mxu0 %v1282
    %1896 = vmatprep.subr.bf16.mxu0 %v1279
    %1897 = vmatpush1.bf16.msra.mxu0 %v1278
    %1898 = vmatprep.subr.bf16.mxu0 %v1275
    %1899 = vmatpush1.bf16.msra.mxu0 %v1274
    %1900 = vmatprep.subr.bf16.mxu0 0
    %1901 = vmatpush2.bf16.msra.mxu0 0
    %1902 = vmatprep.subr.bf16.mxu0 %v1595
    %1903 = vmatpush2.bf16.msra.mxu0 %v1592
    %1904 = vmatprep.subr.bf16.mxu0 %v1327
    %1905 = vmatpush2.bf16.msra.mxu0 %v1326
    %1906 = vmatprep.subr.bf16.mxu0 %v1323
    %1907 = vmatpush2.bf16.msra.mxu0 %v1322
    %1908 = vmatprep.subr.bf16.mxu0 %v1319
    %1909 = vmatpush2.bf16.msra.mxu0 %v1318
    %1910 = vmatprep.subr.bf16.mxu0 %v1315
    %1911 = vmatpush2.bf16.msra.mxu0 %v1314
    %1912 = vmatprep.subr.bf16.mxu0 %v1311
    %1913 = vmatpush2.bf16.msra.mxu0 %v1310
    %1914 = vmatprep.subr.bf16.mxu0 %v1307
    %1915 = vmatpush2.bf16.msra.mxu0 %v1306
    %1916 = vmatprep.mubr.bf16.mxu0 %v1582
    %1917 = vmatmul.mubr.bf16.gmra.mxu0 %v56
    %v1918 = vpop.f32.mrf.mxu0
    %v1919 = vadd.f32 %v1878, %v1918
    %v1920 = vpop.f32.mrf.mxu0
    %v1921 = vadd.f32 %v1880, %v1920
    %v1922 = vpop.f32.mrf.mxu0
    %v1923 = vpop.f32.mrf.mxu0
    %1924 = vdwg.mxu0
    %v1925 = vmax.f32 %v1755, 0.0
    %v1926 = vmax.f32 %v1757, 0.0
    %v1927 = vmax.f32 %v1919, 0.0
    %v1928 = vmax.f32 %v1921, 0.0
    %v1929 = vpack.c.bf16 %v1925, %v1925
    %v1930 = vpack.c.bf16 %v1926, %v1926
    %v1931 = vpack.c.bf16 %v1927, %v1927
    %v1932 = vpack.c.bf16 %v1928, %v1928
    %v1933 = vld [vmem:[%s3] sm:$0xff]
    %v1934 = vld [vmem:[%s3 + $0x8] sm:$0xff]
    %v1935 = vld [vmem:[%s3 + $0x10] sm:$0xff]
    %v1936 = vld [vmem:[%s3 + $0x18] sm:$0xff]
    %v1937 = vld [vmem:[%s3 + $0x20] sm:$0xff]
    %v1938 = vld [vmem:[%s3 + $0x28] sm:$0xff]
    %v1939 = vld [vmem:[%s3 + $0x30] sm:$0xff]
    %v1940 = vld [vmem:[%s3 + $0x38] sm:$0xff]
    %v1941 = vld [vmem:[%s3 + $0x40] sm:$0xff]
    %v1942 = vld [vmem:[%s3 + $0x48] sm:$0xff]
    %v1943 = vld [vmem:[%s3 + $0x50] sm:$0xff]
    %v1944 = vld [vmem:[%s3 + $0x58] sm:$0xff]
    %v1945 = vld [vmem:[%s3 + $0x60] sm:$0xff]
    %v1946 = vld [vmem:[%s3 + $0x68] sm:$0xff]
    %v1947 = vld [vmem:[%s3 + $0x70] sm:$0xff]
    %v1948 = vld [vmem:[%s3 + $0x78] sm:$0xff]
    %v1949 = vld [vmem:[%s3 + $0x80] sm:$0xff]
    %v1950 = vld [vmem:[%s3 + $0x88] sm:$0xff]
    %v1951 = vld [vmem:[%s3 + $0x90] sm:$0xff]
    %v1952 = vld [vmem:[%s3 + $0x98] sm:$0xff]
    %v1953 = vld [vmem:[%s3 + $0xa0] sm:$0xff]
    %v1954 = vld [vmem:[%s3 + $0xa8] sm:$0xff]
    %v1955 = vld [vmem:[%s3 + $0xb0] sm:$0xff]
    %v1956 = vld [vmem:[%s3 + $0xb8] sm:$0xff]
    %v1957 = vld [vmem:[%s3 + $0xc0] sm:$0xff]
    %v1958 = vld [vmem:[%s3 + $0xc8] sm:$0xff]
    %v1959 = vld [vmem:[%s3 + $0xd0] sm:$0xff]
    %v1960 = vld [vmem:[%s3 + $0xd8] sm:$0xff]
    %v1961 = vld [vmem:[%s3 + $0xe0] sm:$0xff]
    %v1962 = vld [vmem:[%s3 + $0xe8] sm:$0xff]
    %v1963 = vld [vmem:[%s3 + $0xf0] sm:$0xff]
    %v1964 = vld [vmem:[%s3 + $0xf8] sm:$0xff]
    %v1965 = vld [vmem:[%s3 + $0x100] sm:$0xff]
    %v1966 = vld [vmem:[%s3 + $0x108] sm:$0xff]
    %v1967 = vld [vmem:[%s3 + $0x110] sm:$0xff]
    %v1968 = vld [vmem:[%s3 + $0x118] sm:$0xff]
    %v1969 = vld [vmem:[%s3 + $0x120] sm:$0xff]
    %v1970 = vld [vmem:[%s3 + $0x128] sm:$0xff]
    %v1971 = vld [vmem:[%s3 + $0x130] sm:$0xff]
    %v1972 = vld [vmem:[%s3 + $0x138] sm:$0xff]
    %v1973 = vld [vmem:[%s3 + $0x140] sm:$0xff]
    %v1974 = vld [vmem:[%s3 + $0x148] sm:$0xff]
    %v1975 = vld [vmem:[%s3 + $0x150] sm:$0xff]
    %v1976 = vld [vmem:[%s3 + $0x158] sm:$0xff]
    %v1977 = vld [vmem:[%s3 + $0x160] sm:$0xff]
    %v1978 = vld [vmem:[%s3 + $0x168] sm:$0xff]
    %v1979 = vld [vmem:[%s3 + $0x170] sm:$0xff]
    %v1980 = vld [vmem:[%s3 + $0x178] sm:$0xff]
    %v1981 = vld [vmem:[%s3 + $0x180] sm:$0xff]
    %v1982 = vld [vmem:[%s3 + $0x188] sm:$0xff]
    %v1983 = vld [vmem:[%s3 + $0x190] sm:$0xff]
    %v1984 = vld [vmem:[%s3 + $0x198] sm:$0xff]
    %v1985 = vld [vmem:[%s3 + $0x1a0] sm:$0xff]
    %v1986 = vld [vmem:[%s3 + $0x1a8] sm:$0xff]
    %v1987 = vld [vmem:[%s3 + $0x1b0] sm:$0xff]
    %v1988 = vld [vmem:[%s3 + $0x1b8] sm:$0xff]
    %v1989 = vld [vmem:[%s3 + $0x1c0] sm:$0xff]
    %v1990 = vld [vmem:[%s3 + $0x1c8] sm:$0xff]
    %v1991 = vld [vmem:[%s3 + $0x1d0] sm:$0xff]
    %v1992 = vld [vmem:[%s3 + $0x1d8] sm:$0xff]
    %v1993 = vld [vmem:[%s3 + $0x1e0] sm:$0xff]
    %v1994 = vld [vmem:[%s3 + $0x1e8] sm:$0xff]
    %v1995 = vld [vmem:[%s3 + $0x1f0] sm:$0xff]
    %v1996 = vld [vmem:[%s3 + $0x1f8] sm:$0xff]
    %v1997 = vld [vmem:[%s3 + $0x200] sm:$0xff]
    %v1998 = vld [vmem:[%s3 + $0x208] sm:$0xff]
    %v1999 = vld [vmem:[%s3 + $0x210] sm:$0xff]
    %v2000 = vld [vmem:[%s3 + $0x218] sm:$0xff]
    %v2001 = vld [vmem:[%s3 + $0x220] sm:$0xff]
    %v2002 = vld [vmem:[%s3 + $0x228] sm:$0xff]
    %v2003 = vld [vmem:[%s3 + $0x230] sm:$0xff]
    %v2004 = vld [vmem:[%s3 + $0x238] sm:$0xff]
    %v2005 = vld [vmem:[%s3 + $0x240] sm:$0xff]
    %v2006 = vld [vmem:[%s3 + $0x248] sm:$0xff]
    %v2007 = vld [vmem:[%s3 + $0x250] sm:$0xff]
    %v2008 = vld [vmem:[%s3 + $0x258] sm:$0xff]
    %v2009 = vld [vmem:[%s3 + $0x260] sm:$0xff]
    %v2010 = vld [vmem:[%s3 + $0x268] sm:$0xff]
    %v2011 = vld [vmem:[%s3 + $0x270] sm:$0xff]
    %v2012 = vld [vmem:[%s3 + $0x278] sm:$0xff]
    %v2013 = vld [vmem:[%s3 + $0x280] sm:$0xff]
    %v2014 = vld [vmem:[%s3 + $0x288] sm:$0xff]
    %v2015 = vld [vmem:[%s3 + $0x290] sm:$0xff]
    %v2016 = vld [vmem:[%s3 + $0x298] sm:$0xff]
    %v2017 = vld [vmem:[%s3 + $0x2a0] sm:$0xff]
    %v2018 = vld [vmem:[%s3 + $0x2a8] sm:$0xff]
    %v2019 = vld [vmem:[%s3 + $0x2b0] sm:$0xff]
    %v2020 = vld [vmem:[%s3 + $0x2b8] sm:$0xff]
    %v2021 = vld [vmem:[%s3 + $0x2c0] sm:$0xff]
    %v2022 = vld [vmem:[%s3 + $0x2c8] sm:$0xff]
    %v2023 = vld [vmem:[%s3 + $0x2d0] sm:$0xff]
    %v2024 = vld [vmem:[%s3 + $0x2d8] sm:$0xff]
    %v2025 = vld [vmem:[%s3 + $0x2e0] sm:$0xff]
    %v2026 = vld [vmem:[%s3 + $0x2e8] sm:$0xff]
    %v2027 = vld [vmem:[%s3 + $0x2f0] sm:$0xff]
    %v2028 = vld [vmem:[%s3 + $0x2f8] sm:$0xff]
    %v2029 = vld [vmem:[%s3 + $0x300] sm:$0xff]
    %v2030 = vld [vmem:[%s3 + $0x308] sm:$0xff]
    %v2031 = vld [vmem:[%s3 + $0x310] sm:$0xff]
    %v2032 = vld [vmem:[%s3 + $0x318] sm:$0xff]
    %v2033 = vld [vmem:[%s3 + $0x320] sm:$0xff]
    %v2034 = vld [vmem:[%s3 + $0x328] sm:$0xff]
    %v2035 = vld [vmem:[%s3 + $0x330] sm:$0xff]
    %v2036 = vld [vmem:[%s3 + $0x338] sm:$0xff]
    %v2037 = vld [vmem:[%s3 + $0x340] sm:$0xff]
    %v2038 = vld [vmem:[%s3 + $0x348] sm:$0xff]
    %v2039 = vld [vmem:[%s3 + $0x350] sm:$0xff]
    %v2040 = vld [vmem:[%s3 + $0x358] sm:$0xff]
    %v2041 = vld [vmem:[%s3 + $0x360] sm:$0xff]
    %v2042 = vld [vmem:[%s3 + $0x368] sm:$0xff]
    %v2043 = vld [vmem:[%s3 + $0x370] sm:$0xff]
    %v2044 = vld [vmem:[%s3 + $0x378] sm:$0xff]
    %v2045 = vld [vmem:[%s3 + $0x380] sm:$0xff]
    %v2046 = vld [vmem:[%s3 + $0x388] sm:$0xff]
    %v2047 = vld [vmem:[%s3 + $0x390] sm:$0xff]
    %v2048 = vld [vmem:[%s3 + $0x398] sm:$0xff]
    %v2049 = vld [vmem:[%s3 + $0x3a0] sm:$0xff]
    %v2050 = vld [vmem:[%s3 + $0x3a8] sm:$0xff]
    %v2051 = vld [vmem:[%s3 + $0x3b0] sm:$0xff]
    %v2052 = vld [vmem:[%s3 + $0x3b8] sm:$0xff]
    %v2053 = vld [vmem:[%s3 + $0x3c0] sm:$0xff]
    %v2054 = vld [vmem:[%s3 + $0x3c8] sm:$0xff]
    %v2055 = vld [vmem:[%s3 + $0x3d0] sm:$0xff]
    %v2056 = vld [vmem:[%s3 + $0x3d8] sm:$0xff]
    %v2057 = vld [vmem:[%s3 + $0x3e0] sm:$0xff]
    %v2058 = vld [vmem:[%s3 + $0x3e8] sm:$0xff]
    %v2059 = vld [vmem:[%s3 + $0x3f0] sm:$0xff]
    %v2060 = vld [vmem:[%s3 + $0x3f8] sm:$0xff]
    %v2061 = vld [vmem:[%s4] sm:$0xf]
    %v2063 = vlaneseq
    %v2064 = vshrl.u32 %v2063, 7
    %v2065 = vsub.s32 0, %v2064
    %v2066 = vrot.slane %v2061, %v2065
    %v2067 = vlaneseq
    %v2068 = vshrl.u32 %v2067, 7
    %v2069 = vsub.s32 1, %v2068
    %v2070 = vrot.slane %v2061, %v2069
    %v2071 = vlaneseq
    %v2072 = vshrl.u32 %v2071, 7
    %v2073 = vsub.s32 2, %v2072
    %v2074 = vrot.slane %v2061, %v2073
    %v2075 = vlaneseq
    %v2076 = vshrl.u32 %v2075, 7
    %v2077 = vsub.s32 3, %v2076
    %v2078 = vrot.slane %v2061, %v2077
    %v2211 = vunpack.c.l.b16 %v1933
    %v2212 = vunpack.c.h.b16 %v1933
    %v2213 = vunpack.c.l.b16 %v1934
    %v2214 = vunpack.c.h.b16 %v1934
    %v2215 = vunpack.c.l.b16 %v1935
    %v2216 = vunpack.c.h.b16 %v1935
    %v2217 = vunpack.c.l.b16 %v1936
    %v2218 = vunpack.c.h.b16 %v1936
    %v2219 = vunpack.c.l.b16 %v1937
    %v2220 = vunpack.c.h.b16 %v1937
    %v2221 = vunpack.c.l.b16 %v1938
    %v2222 = vunpack.c.h.b16 %v1938
    %v2223 = vunpack.c.l.b16 %v1939
    %v2224 = vunpack.c.h.b16 %v1939
    %v2225 = vunpack.c.l.b16 %v1940
    %v2226 = vunpack.c.h.b16 %v1940
    %v2227 = vunpack.c.l.b16 %v1941
    %v2228 = vunpack.c.h.b16 %v1941
    %v2229 = vunpack.c.l.b16 %v1942
    %v2230 = vunpack.c.h.b16 %v1942
    %v2231 = vunpack.c.l.b16 %v1943
    %v2232 = vunpack.c.h.b16 %v1943
    %v2233 = vunpack.c.l.b16 %v1944
    %v2234 = vunpack.c.h.b16 %v1944
    %v2235 = vunpack.c.l.b16 %v1945
    %v2236 = vunpack.c.h.b16 %v1945
    %v2237 = vunpack.c.l.b16 %v1946
    %v2238 = vunpack.c.h.b16 %v1946
    %v2239 = vunpack.c.l.b16 %v1947
    %v2240 = vunpack.c.h.b16 %v1947
    %v2241 = vunpack.c.l.b16 %v1948
    %v2242 = vunpack.c.h.b16 %v1948
    %v2243 = vunpack.c.l.b16 %v1949
    %v2244 = vunpack.c.h.b16 %v1949
    %v2245 = vunpack.c.l.b16 %v1950
    %v2246 = vunpack.c.h.b16 %v1950
    %v2247 = vunpack.c.l.b16 %v1951
    %v2248 = vunpack.c.h.b16 %v1951
    %v2249 = vunpack.c.l.b16 %v1952
    %v2250 = vunpack.c.h.b16 %v1952
    %v2251 = vunpack.c.l.b16 %v1953
    %v2252 = vunpack.c.h.b16 %v1953
    %v2253 = vunpack.c.l.b16 %v1954
    %v2254 = vunpack.c.h.b16 %v1954
    %v2255 = vunpack.c.l.b16 %v1955
    %v2256 = vunpack.c.h.b16 %v1955
    %v2257 = vunpack.c.l.b16 %v1956
    %v2258 = vunpack.c.h.b16 %v1956
    %v2259 = vunpack.c.l.b16 %v1957
    %v2260 = vunpack.c.h.b16 %v1957
    %v2261 = vunpack.c.l.b16 %v1958
    %v2262 = vunpack.c.h.b16 %v1958
    %v2263 = vunpack.c.l.b16 %v1959
    %v2264 = vunpack.c.h.b16 %v1959
    %v2265 = vunpack.c.l.b16 %v1960
    %v2266 = vunpack.c.h.b16 %v1960
    %v2267 = vunpack.c.l.b16 %v1961
    %v2268 = vunpack.c.h.b16 %v1961
    %v2269 = vunpack.c.l.b16 %v1962
    %v2270 = vunpack.c.h.b16 %v1962
    %v2271 = vunpack.c.l.b16 %v1963
    %v2272 = vunpack.c.h.b16 %v1963
    %v2273 = vunpack.c.l.b16 %v1964
    %v2274 = vunpack.c.h.b16 %v1964
    %v2275 = vunpack.c.l.b16 %v1965
    %v2276 = vunpack.c.h.b16 %v1965
    %v2277 = vunpack.c.l.b16 %v1966
    %v2278 = vunpack.c.h.b16 %v1966
    %v2279 = vunpack.c.l.b16 %v1967
    %v2280 = vunpack.c.h.b16 %v1967
    %v2281 = vunpack.c.l.b16 %v1968
    %v2282 = vunpack.c.h.b16 %v1968
    %v2283 = vunpack.c.l.b16 %v1969
    %v2284 = vunpack.c.h.b16 %v1969
    %v2285 = vunpack.c.l.b16 %v1970
    %v2286 = vunpack.c.h.b16 %v1970
    %v2287 = vunpack.c.l.b16 %v1971
    %v2288 = vunpack.c.h.b16 %v1971
    %v2289 = vunpack.c.l.b16 %v1972
    %v2290 = vunpack.c.h.b16 %v1972
    %v2291 = vunpack.c.l.b16 %v1973
    %v2292 = vunpack.c.h.b16 %v1973
    %v2293 = vunpack.c.l.b16 %v1974
    %v2294 = vunpack.c.h.b16 %v1974
    %v2295 = vunpack.c.l.b16 %v1975
    %v2296 = vunpack.c.h.b16 %v1975
    %v2297 = vunpack.c.l.b16 %v1976
    %v2298 = vunpack.c.h.b16 %v1976
    %v2299 = vunpack.c.l.b16 %v1977
    %v2300 = vunpack.c.h.b16 %v1977
    %v2301 = vunpack.c.l.b16 %v1978
    %v2302 = vunpack.c.h.b16 %v1978
    %v2303 = vunpack.c.l.b16 %v1979
    %v2304 = vunpack.c.h.b16 %v1979
    %v2305 = vunpack.c.l.b16 %v1980
    %v2306 = vunpack.c.h.b16 %v1980
    %v2307 = vunpack.c.l.b16 %v1981
    %v2308 = vunpack.c.h.b16 %v1981
    %v2309 = vunpack.c.l.b16 %v1982
    %v2310 = vunpack.c.h.b16 %v1982
    %v2311 = vunpack.c.l.b16 %v1983
    %v2312 = vunpack.c.h.b16 %v1983
    %v2313 = vunpack.c.l.b16 %v1984
    %v2314 = vunpack.c.h.b16 %v1984
    %v2315 = vunpack.c.l.b16 %v1985
    %v2316 = vunpack.c.h.b16 %v1985
    %v2317 = vunpack.c.l.b16 %v1986
    %v2318 = vunpack.c.h.b16 %v1986
    %v2319 = vunpack.c.l.b16 %v1987
    %v2320 = vunpack.c.h.b16 %v1987
    %v2321 = vunpack.c.l.b16 %v1988
    %v2322 = vunpack.c.h.b16 %v1988
    %v2323 = vunpack.c.l.b16 %v1989
    %v2324 = vunpack.c.h.b16 %v1989
    %v2325 = vunpack.c.l.b16 %v1990
    %v2326 = vunpack.c.h.b16 %v1990
    %v2327 = vunpack.c.l.b16 %v1991
    %v2328 = vunpack.c.h.b16 %v1991
    %v2329 = vunpack.c.l.b16 %v1992
    %v2330 = vunpack.c.h.b16 %v1992
    %v2331 = vunpack.c.l.b16 %v1993
    %v2332 = vunpack.c.h.b16 %v1993
    %v2333 = vunpack.c.l.b16 %v1994
    %v2334 = vunpack.c.h.b16 %v1994
    %v2335 = vunpack.c.l.b16 %v1995
    %v2336 = vunpack.c.h.b16 %v1995
    %v2337 = vunpack.c.l.b16 %v1996
    %v2338 = vunpack.c.h.b16 %v1996
    %v2339 = vunpack.c.l.b16 %v1997
    %v2340 = vunpack.c.h.b16 %v1997
    %v2341 = vunpack.c.l.b16 %v1998
    %v2342 = vunpack.c.h.b16 %v1998
    %v2343 = vunpack.c.l.b16 %v1999
    %v2344 = vunpack.c.h.b16 %v1999
    %v2345 = vunpack.c.l.b16 %v2000
    %v2346 = vunpack.c.h.b16 %v2000
    %v2347 = vunpack.c.l.b16 %v2001
    %v2348 = vunpack.c.h.b16 %v2001
    %v2349 = vunpack.c.l.b16 %v2002
    %v2350 = vunpack.c.h.b16 %v2002
    %v2351 = vunpack.c.l.b16 %v2003
    %v2352 = vunpack.c.h.b16 %v2003
    %v2353 = vunpack.c.l.b16 %v2004
    %v2354 = vunpack.c.h.b16 %v2004
    %v2355 = vunpack.c.l.b16 %v2005
    %v2356 = vunpack.c.h.b16 %v2005
    %v2357 = vunpack.c.l.b16 %v2006
    %v2358 = vunpack.c.h.b16 %v2006
    %v2359 = vunpack.c.l.b16 %v2007
    %v2360 = vunpack.c.h.b16 %v2007
    %v2361 = vunpack.c.l.b16 %v2008
    %v2362 = vunpack.c.h.b16 %v2008
    %v2363 = vunpack.c.l.b16 %v2009
    %v2364 = vunpack.c.h.b16 %v2009
    %v2365 = vunpack.c.l.b16 %v2010
    %v2366 = vunpack.c.h.b16 %v2010
    %v2367 = vunpack.c.l.b16 %v2011
    %v2368 = vunpack.c.h.b16 %v2011
    %v2369 = vunpack.c.l.b16 %v2012
    %v2370 = vunpack.c.h.b16 %v2012
    %v2371 = vunpack.c.l.b16 %v2013
    %v2372 = vunpack.c.h.b16 %v2013
    %v2373 = vunpack.c.l.b16 %v2014
    %v2374 = vunpack.c.h.b16 %v2014
    %v2375 = vunpack.c.l.b16 %v2015
    %v2376 = vunpack.c.h.b16 %v2015
    %v2377 = vunpack.c.l.b16 %v2016
    %v2378 = vunpack.c.h.b16 %v2016
    %v2379 = vunpack.c.l.b16 %v2017
    %v2380 = vunpack.c.h.b16 %v2017
    %v2381 = vunpack.c.l.b16 %v2018
    %v2382 = vunpack.c.h.b16 %v2018
    %v2383 = vunpack.c.l.b16 %v2019
    %v2384 = vunpack.c.h.b16 %v2019
    %v2385 = vunpack.c.l.b16 %v2020
    %v2386 = vunpack.c.h.b16 %v2020
    %v2387 = vunpack.c.l.b16 %v2021
    %v2388 = vunpack.c.h.b16 %v2021
    %v2389 = vunpack.c.l.b16 %v2022
    %v2390 = vunpack.c.h.b16 %v2022
    %v2391 = vunpack.c.l.b16 %v2023
    %v2392 = vunpack.c.h.b16 %v2023
    %v2393 = vunpack.c.l.b16 %v2024
    %v2394 = vunpack.c.h.b16 %v2024
    %v2395 = vunpack.c.l.b16 %v2025
    %v2396 = vunpack.c.h.b16 %v2025
    %v2397 = vunpack.c.l.b16 %v2026
    %v2398 = vunpack.c.h.b16 %v2026
    %v2399 = vunpack.c.l.b16 %v2027
    %v2400 = vunpack.c.h.b16 %v2027
    %v2401 = vunpack.c.l.b16 %v2028
    %v2402 = vunpack.c.h.b16 %v2028
    %v2403 = vunpack.c.l.b16 %v2029
    %v2404 = vunpack.c.h.b16 %v2029
    %v2405 = vunpack.c.l.b16 %v2030
    %v2406 = vunpack.c.h.b16 %v2030
    %v2407 = vunpack.c.l.b16 %v2031
    %v2408 = vunpack.c.h.b16 %v2031
    %v2409 = vunpack.c.l.b16 %v2032
    %v2410 = vunpack.c.h.b16 %v2032
    %v2411 = vunpack.c.l.b16 %v2033
    %v2412 = vunpack.c.h.b16 %v2033
    %v2413 = vunpack.c.l.b16 %v2034
    %v2414 = vunpack.c.h.b16 %v2034
    %v2415 = vunpack.c.l.b16 %v2035
    %v2416 = vunpack.c.h.b16 %v2035
    %v2417 = vunpack.c.l.b16 %v2036
    %v2418 = vunpack.c.h.b16 %v2036
    %v2419 = vunpack.c.l.b16 %v2037
    %v2420 = vunpack.c.h.b16 %v2037
    %v2421 = vunpack.c.l.b16 %v2038
    %v2422 = vunpack.c.h.b16 %v2038
    %v2423 = vunpack.c.l.b16 %v2039
    %v2424 = vunpack.c.h.b16 %v2039
    %v2425 = vunpack.c.l.b16 %v2040
    %v2426 = vunpack.c.h.b16 %v2040
    %v2427 = vunpack.c.l.b16 %v2041
    %v2428 = vunpack.c.h.b16 %v2041
    %v2429 = vunpack.c.l.b16 %v2042
    %v2430 = vunpack.c.h.b16 %v2042
    %v2431 = vunpack.c.l.b16 %v2043
    %v2432 = vunpack.c.h.b16 %v2043
    %v2433 = vunpack.c.l.b16 %v2044
    %v2434 = vunpack.c.h.b16 %v2044
    %v2435 = vunpack.c.l.b16 %v2045
    %v2436 = vunpack.c.h.b16 %v2045
    %v2437 = vunpack.c.l.b16 %v2046
    %v2438 = vunpack.c.h.b16 %v2046
    %v2439 = vunpack.c.l.b16 %v2047
    %v2440 = vunpack.c.h.b16 %v2047
    %v2441 = vunpack.c.l.b16 %v2048
    %v2442 = vunpack.c.h.b16 %v2048
    %v2443 = vunpack.c.l.b16 %v2049
    %v2444 = vunpack.c.h.b16 %v2049
    %v2445 = vunpack.c.l.b16 %v2050
    %v2446 = vunpack.c.h.b16 %v2050
    %v2447 = vunpack.c.l.b16 %v2051
    %v2448 = vunpack.c.h.b16 %v2051
    %v2449 = vunpack.c.l.b16 %v2052
    %v2450 = vunpack.c.h.b16 %v2052
    %v2451 = vunpack.c.l.b16 %v2053
    %v2452 = vunpack.c.h.b16 %v2053
    %v2453 = vunpack.c.l.b16 %v2054
    %v2454 = vunpack.c.h.b16 %v2054
    %v2455 = vunpack.c.l.b16 %v2055
    %v2456 = vunpack.c.h.b16 %v2055
    %v2457 = vunpack.c.l.b16 %v2056
    %v2458 = vunpack.c.h.b16 %v2056
    %v2459 = vunpack.c.l.b16 %v2057
    %v2460 = vunpack.c.h.b16 %v2057
    %v2461 = vunpack.c.l.b16 %v2058
    %v2462 = vunpack.c.h.b16 %v2058
    %v2463 = vunpack.c.l.b16 %v2059
    %v2464 = vunpack.c.h.b16 %v2059
    %v2465 = vunpack.c.l.b16 %v2060
    %v2466 = vunpack.c.h.b16 %v2060
    %v2467 = vpack.c.b16 %v2215, %v2211
    %v2468 = vpack.c.b16 %v2216, %v2212
    %v2469 = vpack.c.b16 %v2217, %v2213
    %v2470 = vpack.c.b16 %v2218, %v2214
    %v2471 = vpack.c.b16 %v2223, %v2219
    %v2472 = vpack.c.b16 %v2224, %v2220
    %v2473 = vpack.c.b16 %v2225, %v2221
    %v2474 = vpack.c.b16 %v2226, %v2222
    %v2475 = vpack.c.b16 %v2231, %v2227
    %v2476 = vpack.c.b16 %v2232, %v2228
    %v2477 = vpack.c.b16 %v2233, %v2229
    %v2478 = vpack.c.b16 %v2234, %v2230
    %v2479 = vpack.c.b16 %v2239, %v2235
    %v2480 = vpack.c.b16 %v2240, %v2236
    %v2481 = vpack.c.b16 %v2241, %v2237
    %v2482 = vpack.c.b16 %v2242, %v2238
    %v2483 = vpack.c.b16 %v2247, %v2243
    %v2484 = vpack.c.b16 %v2248, %v2244
    %v2485 = vpack.c.b16 %v2249, %v2245
    %v2486 = vpack.c.b16 %v2250, %v2246
    %v2487 = vpack.c.b16 %v2255, %v2251
    %v2488 = vpack.c.b16 %v2256, %v2252
    %v2489 = vpack.c.b16 %v2257, %v2253
    %v2490 = vpack.c.b16 %v2258, %v2254
    %v2491 = vpack.c.b16 %v2263, %v2259
    %v2492 = vpack.c.b16 %v2264, %v2260
    %v2493 = vpack.c.b16 %v2265, %v2261
    %v2494 = vpack.c.b16 %v2266, %v2262
    %v2495 = vpack.c.b16 %v2271, %v2267
    %v2496 = vpack.c.b16 %v2272, %v2268
    %v2497 = vpack.c.b16 %v2273, %v2269
    %v2498 = vpack.c.b16 %v2274, %v2270
    %v2499 = vpack.c.b16 %v2279, %v2275
    %v2500 = vpack.c.b16 %v2280, %v2276
    %v2501 = vpack.c.b16 %v2281, %v2277
    %v2502 = vpack.c.b16 %v2282, %v2278
    %v2503 = vpack.c.b16 %v2287, %v2283
    %v2504 = vpack.c.b16 %v2288, %v2284
    %v2505 = vpack.c.b16 %v2289, %v2285
    %v2506 = vpack.c.b16 %v2290, %v2286
    %v2507 = vpack.c.b16 %v2295, %v2291
    %v2508 = vpack.c.b16 %v2296, %v2292
    %v2509 = vpack.c.b16 %v2297, %v2293
    %v2510 = vpack.c.b16 %v2298, %v2294
    %v2511 = vpack.c.b16 %v2303, %v2299
    %v2512 = vpack.c.b16 %v2304, %v2300
    %v2513 = vpack.c.b16 %v2305, %v2301
    %v2514 = vpack.c.b16 %v2306, %v2302
    %v2515 = vpack.c.b16 %v2311, %v2307
    %v2516 = vpack.c.b16 %v2312, %v2308
    %v2517 = vpack.c.b16 %v2313, %v2309
    %v2518 = vpack.c.b16 %v2314, %v2310
    %v2519 = vpack.c.b16 %v2319, %v2315
    %v2520 = vpack.c.b16 %v2320, %v2316
    %v2521 = vpack.c.b16 %v2321, %v2317
    %v2522 = vpack.c.b16 %v2322, %v2318
    %v2523 = vpack.c.b16 %v2327, %v2323
    %v2524 = vpack.c.b16 %v2328, %v2324
    %v2525 = vpack.c.b16 %v2329, %v2325
    %v2526 = vpack.c.b16 %v2330, %v2326
    %v2527 = vpack.c.b16 %v2335, %v2331
    %v2528 = vpack.c.b16 %v2336, %v2332
    %v2529 = vpack.c.b16 %v2337, %v2333
    %v2530 = vpack.c.b16 %v2338, %v2334
    %v2531 = vpack.c.b16 %v2343, %v2339
    %v2532 = vpack.c.b16 %v2344, %v2340
    %v2533 = vpack.c.b16 %v2345, %v2341
    %v2534 = vpack.c.b16 %v2346, %v2342
    %v2535 = vpack.c.b16 %v2351, %v2347
    %v2536 = vpack.c.b16 %v2352, %v2348
    %v2537 = vpack.c.b16 %v2353, %v2349
    %v2538 = vpack.c.b16 %v2354, %v2350
    %v2539 = vpack.c.b16 %v2359, %v2355
    %v2540 = vpack.c.b16 %v2360, %v2356
    %v2541 = vpack.c.b16 %v2361, %v2357
    %v2542 = vpack.c.b16 %v2362, %v2358
    %v2543 = vpack.c.b16 %v2367, %v2363
    %v2544 = vpack.c.b16 %v2368, %v2364
    %v2545 = vpack.c.b16 %v2369, %v2365
    %v2546 = vpack.c.b16 %v2370, %v2366
    %v2547 = vpack.c.b16 %v2375, %v2371
    %v2548 = vpack.c.b16 %v2376, %v2372
    %v2549 = vpack.c.b16 %v2377, %v2373
    %v2550 = vpack.c.b16 %v2378, %v2374
    %v2551 = vpack.c.b16 %v2383, %v2379
    %v2552 = vpack.c.b16 %v2384, %v2380
    %v2553 = vpack.c.b16 %v2385, %v2381
    %v2554 = vpack.c.b16 %v2386, %v2382
    %v2555 = vpack.c.b16 %v2391, %v2387
    %v2556 = vpack.c.b16 %v2392, %v2388
    %v2557 = vpack.c.b16 %v2393, %v2389
    %v2558 = vpack.c.b16 %v2394, %v2390
    %v2559 = vpack.c.b16 %v2399, %v2395
    %v2560 = vpack.c.b16 %v2400, %v2396
    %v2561 = vpack.c.b16 %v2401, %v2397
    %v2562 = vpack.c.b16 %v2402, %v2398
    %v2563 = vpack.c.b16 %v2407, %v2403
    %v2564 = vpack.c.b16 %v2408, %v2404
    %v2565 = vpack.c.b16 %v2409, %v2405
    %v2566 = vpack.c.b16 %v2410, %v2406
    %v2567 = vpack.c.b16 %v2415, %v2411
    %v2568 = vpack.c.b16 %v2416, %v2412
    %v2569 = vpack.c.b16 %v2417, %v2413
    %v2570 = vpack.c.b16 %v2418, %v2414
    %v2571 = vpack.c.b16 %v2423, %v2419
    %v2572 = vpack.c.b16 %v2424, %v2420
    %v2573 = vpack.c.b16 %v2425, %v2421
    %v2574 = vpack.c.b16 %v2426, %v2422
    %v2575 = vpack.c.b16 %v2431, %v2427
    %v2576 = vpack.c.b16 %v2432, %v2428
    %v2577 = vpack.c.b16 %v2433, %v2429
    %v2578 = vpack.c.b16 %v2434, %v2430
    %v2579 = vpack.c.b16 %v2439, %v2435
    %v2580 = vpack.c.b16 %v2440, %v2436
    %v2581 = vpack.c.b16 %v2441, %v2437
    %v2582 = vpack.c.b16 %v2442, %v2438
    %v2583 = vpack.c.b16 %v2447, %v2443
    %v2584 = vpack.c.b16 %v2448, %v2444
    %v2585 = vpack.c.b16 %v2449, %v2445
    %v2586 = vpack.c.b16 %v2450, %v2446
    %v2587 = vpack.c.b16 %v2455, %v2451
    %v2588 = vpack.c.b16 %v2456, %v2452
    %v2589 = vpack.c.b16 %v2457, %v2453
    %v2590 = vpack.c.b16 %v2458, %v2454
    %v2591 = vpack.c.b16 %v2463, %v2459
    %v2592 = vpack.c.b16 %v2464, %v2460
    %v2593 = vpack.c.b16 %v2465, %v2461
    %v2594 = vpack.c.b16 %v2466, %v2462
    %2723 = vmatprep.subr.bf16.mxu0 %v2496
    %2724 = vmatpush1.bf16.msra.mxu0 %v2495
    %2725 = vmatprep.subr.bf16.mxu0 %v2492
    %2726 = vmatpush1.bf16.msra.mxu0 %v2491
    %2727 = vmatprep.subr.bf16.mxu0 %v2488
    %2728 = vmatpush1.bf16.msra.mxu0 %v2487
    %2729 = vmatprep.subr.bf16.mxu0 %v2484
    %2730 = vmatpush1.bf16.msra.mxu0 %v2483
    %2731 = vmatprep.subr.bf16.mxu0 %v2480
    %2732 = vmatpush1.bf16.msra.mxu0 %v2479
    %2733 = vmatprep.subr.bf16.mxu0 %v2476
    %2734 = vmatpush1.bf16.msra.mxu0 %v2475
    %2735 = vmatprep.subr.bf16.mxu0 %v2472
    %2736 = vmatpush1.bf16.msra.mxu0 %v2471
    %2737 = vmatprep.subr.bf16.mxu0 %v2468
    %2738 = vmatpush1.bf16.msra.mxu0 %v2467
    %2739 = vmatprep.subr.bf16.mxu0 %v2528
    %2740 = vmatpush2.bf16.msra.mxu0 %v2527
    %2741 = vmatprep.subr.bf16.mxu0 %v2524
    %2742 = vmatpush2.bf16.msra.mxu0 %v2523
    %2743 = vmatprep.subr.bf16.mxu0 %v2520
    %2744 = vmatpush2.bf16.msra.mxu0 %v2519
    %2745 = vmatprep.subr.bf16.mxu0 %v2516
    %2746 = vmatpush2.bf16.msra.mxu0 %v2515
    %2747 = vmatprep.subr.bf16.mxu0 %v2512
    %2748 = vmatpush2.bf16.msra.mxu0 %v2511
    %2749 = vmatprep.subr.bf16.mxu0 %v2508
    %2750 = vmatpush2.bf16.msra.mxu0 %v2507
    %2751 = vmatprep.subr.bf16.mxu0 %v2504
    %2752 = vmatpush2.bf16.msra.mxu0 %v2503
    %2753 = vmatprep.subr.bf16.mxu0 %v2500
    %2754 = vmatpush2.bf16.msra.mxu0 %v2499
    %2755 = vmatprep.mubr.bf16.mxu0 %v1930
    %2756 = vmatmul.mubr.bf16.gmra.mxu0 %v1929
    %v2757 = vpop.f32.mrf.mxu0
    %v2758 = vadd.f32 %v2066, %v2757
    %v2759 = vpop.f32.mrf.mxu0
    %v2760 = vadd.f32 %v2070, %v2759
    %v2761 = vpop.f32.mrf.mxu0
    %v2762 = vpop.f32.mrf.mxu0
    %2763 = vdwg.mxu0
    %2764 = vmatprep.subr.bf16.mxu0 %v2560
    %2765 = vmatpush1.bf16.msra.mxu0 %v2559
    %2766 = vmatprep.subr.bf16.mxu0 %v2556
    %2767 = vmatpush1.bf16.msra.mxu0 %v2555
    %2768 = vmatprep.subr.bf16.mxu0 %v2552
    %2769 = vmatpush1.bf16.msra.mxu0 %v2551
    %2770 = vmatprep.subr.bf16.mxu0 %v2548
    %2771 = vmatpush1.bf16.msra.mxu0 %v2547
    %2772 = vmatprep.subr.bf16.mxu0 %v2544
    %2773 = vmatpush1.bf16.msra.mxu0 %v2543
    %2774 = vmatprep.subr.bf16.mxu0 %v2540
    %2775 = vmatpush1.bf16.msra.mxu0 %v2539
    %2776 = vmatprep.subr.bf16.mxu0 %v2536
    %2777 = vmatpush1.bf16.msra.mxu0 %v2535
    %2778 = vmatprep.subr.bf16.mxu0 %v2532
    %2779 = vmatpush1.bf16.msra.mxu0 %v2531
    %2780 = vmatprep.subr.bf16.mxu0 %v2592
    %2781 = vmatpush2.bf16.msra.mxu0 %v2591
    %2782 = vmatprep.subr.bf16.mxu0 %v2588
    %2783 = vmatpush2.bf16.msra.mxu0 %v2587
    %2784 = vmatprep.subr.bf16.mxu0 %v2584
    %2785 = vmatpush2.bf16.msra.mxu0 %v2583
    %2786 = vmatprep.subr.bf16.mxu0 %v2580
    %2787 = vmatpush2.bf16.msra.mxu0 %v2579
    %2788 = vmatprep.subr.bf16.mxu0 %v2576
    %2789 = vmatpush2.bf16.msra.mxu0 %v2575
    %2790 = vmatprep.subr.bf16.mxu0 %v2572
    %2791 = vmatpush2.bf16.msra.mxu0 %v2571
    %2792 = vmatprep.subr.bf16.mxu0 %v2568
    %2793 = vmatpush2.bf16.msra.mxu0 %v2567
    %2794 = vmatprep.subr.bf16.mxu0 %v2564
    %2795 = vmatpush2.bf16.msra.mxu0 %v2563
    %2796 = vmatprep.mubr.bf16.mxu0 %v1932
    %2797 = vmatmul.mubr.bf16.gmra.mxu0 %v1931
    %v2798 = vpop.f32.mrf.mxu0
    %v2799 = vadd.f32 %v2758, %v2798
    %v2800 = vpop.f32.mrf.mxu0
    %v2801 = vadd.f32 %v2760, %v2800
    %v2802 = vpop.f32.mrf.mxu0
    %v2803 = vpop.f32.mrf.mxu0
    %2804 = vdwg.mxu0
    %2805 = vmatprep.subr.bf16.mxu0 %v2498
    %2806 = vmatpush1.bf16.msra.mxu0 %v2497
    %2807 = vmatprep.subr.bf16.mxu0 %v2494
    %2808 = vmatpush1.bf16.msra.mxu0 %v2493
    %2809 = vmatprep.subr.bf16.mxu0 %v2490
    %2810 = vmatpush1.bf16.msra.mxu0 %v2489
    %2811 = vmatprep.subr.bf16.mxu0 %v2486
    %2812 = vmatpush1.bf16.msra.mxu0 %v2485
    %2813 = vmatprep.subr.bf16.mxu0 %v2482
    %2814 = vmatpush1.bf16.msra.mxu0 %v2481
    %2815 = vmatprep.subr.bf16.mxu0 %v2478
    %2816 = vmatpush1.bf16.msra.mxu0 %v2477
    %2817 = vmatprep.subr.bf16.mxu0 %v2474
    %2818 = vmatpush1.bf16.msra.mxu0 %v2473
    %2819 = vmatprep.subr.bf16.mxu0 %v2470
    %2820 = vmatpush1.bf16.msra.mxu0 %v2469
    %2821 = vmatprep.subr.bf16.mxu0 %v2530
    %2822 = vmatpush2.bf16.msra.mxu0 %v2529
    %2823 = vmatprep.subr.bf16.mxu0 %v2526
    %2824 = vmatpush2.bf16.msra.mxu0 %v2525
    %2825 = vmatprep.subr.bf16.mxu0 %v2522
    %2826 = vmatpush2.bf16.msra.mxu0 %v2521
    %2827 = vmatprep.subr.bf16.mxu0 %v2518
    %2828 = vmatpush2.bf16.msra.mxu0 %v2517
    %2829 = vmatprep.subr.bf16.mxu0 %v2514
    %2830 = vmatpush2.bf16.msra.mxu0 %v2513
    %2831 = vmatprep.subr.bf16.mxu0 %v2510
    %2832 = vmatpush2.bf16.msra.mxu0 %v2509
    %2833 = vmatprep.subr.bf16.mxu0 %v2506
    %2834 = vmatpush2.bf16.msra.mxu0 %v2505
    %2835 = vmatprep.subr.bf16.mxu0 %v2502
    %2836 = vmatpush2.bf16.msra.mxu0 %v2501
    %2837 = vmatprep.mubr.bf16.mxu0 %v1930
    %2838 = vmatmul.mubr.bf16.gmra.mxu0 %v1929
    %v2839 = vpop.f32.mrf.mxu0
    %v2840 = vadd.f32 %v2074, %v2839
    %v2841 = vpop.f32.mrf.mxu0
    %v2842 = vadd.f32 %v2078, %v2841
    %v2843 = vpop.f32.mrf.mxu0
    %v2844 = vpop.f32.mrf.mxu0
    %2845 = vdwg.mxu0
    %2846 = vmatprep.subr.bf16.mxu0 %v2562
    %2847 = vmatpush1.bf16.msra.mxu0 %v2561
    %2848 = vmatprep.subr.bf16.mxu0 %v2558
    %2849 = vmatpush1.bf16.msra.mxu0 %v2557
    %2850 = vmatprep.subr.bf16.mxu0 %v2554
    %2851 = vmatpush1.bf16.msra.mxu0 %v2553
    %2852 = vmatprep.subr.bf16.mxu0 %v2550
    %2853 = vmatpush1.bf16.msra.mxu0 %v2549
    %2854 = vmatprep.subr.bf16.mxu0 %v2546
    %2855 = vmatpush1.bf16.msra.mxu0 %v2545
    %2856 = vmatprep.subr.bf16.mxu0 %v2542
    %2857 = vmatpush1.bf16.msra.mxu0 %v2541
    %2858 = vmatprep.subr.bf16.mxu0 %v2538
    %2859 = vmatpush1.bf16.msra.mxu0 %v2537
    %2860 = vmatprep.subr.bf16.mxu0 %v2534
    %2861 = vmatpush1.bf16.msra.mxu0 %v2533
    %2862 = vmatprep.subr.bf16.mxu0 %v2594
    %2863 = vmatpush2.bf16.msra.mxu0 %v2593
    %2864 = vmatprep.subr.bf16.mxu0 %v2590
    %2865 = vmatpush2.bf16.msra.mxu0 %v2589
    %2866 = vmatprep.subr.bf16.mxu0 %v2586
    %2867 = vmatpush2.bf16.msra.mxu0 %v2585
    %2868 = vmatprep.subr.bf16.mxu0 %v2582
    %2869 = vmatpush2.bf16.msra.mxu0 %v2581
    %2870 = vmatprep.subr.bf16.mxu0 %v2578
    %2871 = vmatpush2.bf16.msra.mxu0 %v2577
    %2872 = vmatprep.subr.bf16.mxu0 %v2574
    %2873 = vmatpush2.bf16.msra.mxu0 %v2573
    %2874 = vmatprep.subr.bf16.mxu0 %v2570
    %2875 = vmatpush2.bf16.msra.mxu0 %v2569
    %2876 = vmatprep.subr.bf16.mxu0 %v2566
    %2877 = vmatpush2.bf16.msra.mxu0 %v2565
    %2878 = vmatprep.mubr.bf16.mxu0 %v1932
    %2879 = vmatmul.mubr.bf16.gmra.mxu0 %v1931
    %v2880 = vpop.f32.mrf.mxu0
    %v2881 = vadd.f32 %v2840, %v2880
    %v2882 = vpop.f32.mrf.mxu0
    %v2883 = vadd.f32 %v2842, %v2882
    %v2884 = vpop.f32.mrf.mxu0
    %v2885 = vpop.f32.mrf.mxu0
    %2886 = vdwg.mxu0
    %v2887 = vmax.f32 %v2799, 0.0
    %v2888 = vmax.f32 %v2801, 0.0
    %v2889 = vmax.f32 %v2881, 0.0
    %v2890 = vmax.f32 %v2883, 0.0
    %v2891 = vpack.c.bf16 %v2887, %v2887
    %v2892 = vpack.c.bf16 %v2888, %v2888
    %v2893 = vpack.c.bf16 %v2889, %v2889
    %v2894 = vpack.c.bf16 %v2890, %v2890
    %v2895 = vld [vmem:[%s5] sm:$0xff]
    %v2896 = vld [vmem:[%s5 + $0x8] sm:$0xff]
    %v2897 = vld [vmem:[%s5 + $0x10] sm:$0xff]
    %v2898 = vld [vmem:[%s5 + $0x18] sm:$0xff]
    %v2899 = vld [vmem:[%s5 + $0x20] sm:$0xff]
    %v2900 = vld [vmem:[%s5 + $0x28] sm:$0xff]
    %v2901 = vld [vmem:[%s5 + $0x30] sm:$0xff]
    %v2902 = vld [vmem:[%s5 + $0x38] sm:$0xff]
    %v2903 = vld [vmem:[%s5 + $0x40] sm:$0xff]
    %v2904 = vld [vmem:[%s5 + $0x48] sm:$0xff]
    %v2905 = vld [vmem:[%s5 + $0x50] sm:$0xff]
    %v2906 = vld [vmem:[%s5 + $0x58] sm:$0xff]
    %v2907 = vld [vmem:[%s5 + $0x60] sm:$0xff]
    %v2908 = vld [vmem:[%s5 + $0x68] sm:$0xff]
    %v2909 = vld [vmem:[%s5 + $0x70] sm:$0xff]
    %v2910 = vld [vmem:[%s5 + $0x78] sm:$0xff]
    %v2911 = vld [vmem:[%s5 + $0x80] sm:$0xff]
    %v2912 = vld [vmem:[%s5 + $0x88] sm:$0xff]
    %v2913 = vld [vmem:[%s5 + $0x90] sm:$0xff]
    %v2914 = vld [vmem:[%s5 + $0x98] sm:$0xff]
    %v2915 = vld [vmem:[%s5 + $0xa0] sm:$0xff]
    %v2916 = vld [vmem:[%s5 + $0xa8] sm:$0xff]
    %v2917 = vld [vmem:[%s5 + $0xb0] sm:$0xff]
    %v2918 = vld [vmem:[%s5 + $0xb8] sm:$0xff]
    %v2919 = vld [vmem:[%s5 + $0xc0] sm:$0xff]
    %v2920 = vld [vmem:[%s5 + $0xc8] sm:$0xff]
    %v2921 = vld [vmem:[%s5 + $0xd0] sm:$0xff]
    %v2922 = vld [vmem:[%s5 + $0xd8] sm:$0xff]
    %v2923 = vld [vmem:[%s5 + $0xe0] sm:$0xff]
    %v2924 = vld [vmem:[%s5 + $0xe8] sm:$0xff]
    %v2925 = vld [vmem:[%s5 + $0xf0] sm:$0xff]
    %v2926 = vld [vmem:[%s5 + $0xf8] sm:$0xff]
    %v2927 = vld [vmem:[%s5 + $0x100] sm:$0xff]
    %v2928 = vld [vmem:[%s5 + $0x108] sm:$0xff]
    %v2929 = vld [vmem:[%s5 + $0x110] sm:$0xff]
    %v2930 = vld [vmem:[%s5 + $0x118] sm:$0xff]
    %v2931 = vld [vmem:[%s5 + $0x120] sm:$0xff]
    %v2932 = vld [vmem:[%s5 + $0x128] sm:$0xff]
    %v2933 = vld [vmem:[%s5 + $0x130] sm:$0xff]
    %v2934 = vld [vmem:[%s5 + $0x138] sm:$0xff]
    %v2935 = vld [vmem:[%s5 + $0x140] sm:$0xff]
    %v2936 = vld [vmem:[%s5 + $0x148] sm:$0xff]
    %v2937 = vld [vmem:[%s5 + $0x150] sm:$0xff]
    %v2938 = vld [vmem:[%s5 + $0x158] sm:$0xff]
    %v2939 = vld [vmem:[%s5 + $0x160] sm:$0xff]
    %v2940 = vld [vmem:[%s5 + $0x168] sm:$0xff]
    %v2941 = vld [vmem:[%s5 + $0x170] sm:$0xff]
    %v2942 = vld [vmem:[%s5 + $0x178] sm:$0xff]
    %v2943 = vld [vmem:[%s5 + $0x180] sm:$0xff]
    %v2944 = vld [vmem:[%s5 + $0x188] sm:$0xff]
    %v2945 = vld [vmem:[%s5 + $0x190] sm:$0xff]
    %v2946 = vld [vmem:[%s5 + $0x198] sm:$0xff]
    %v2947 = vld [vmem:[%s5 + $0x1a0] sm:$0xff]
    %v2948 = vld [vmem:[%s5 + $0x1a8] sm:$0xff]
    %v2949 = vld [vmem:[%s5 + $0x1b0] sm:$0xff]
    %v2950 = vld [vmem:[%s5 + $0x1b8] sm:$0xff]
    %v2951 = vld [vmem:[%s5 + $0x1c0] sm:$0xff]
    %v2952 = vld [vmem:[%s5 + $0x1c8] sm:$0xff]
    %v2953 = vld [vmem:[%s5 + $0x1d0] sm:$0xff]
    %v2954 = vld [vmem:[%s5 + $0x1d8] sm:$0xff]
    %v2955 = vld [vmem:[%s5 + $0x1e0] sm:$0xff]
    %v2956 = vld [vmem:[%s5 + $0x1e8] sm:$0xff]
    %v2957 = vld [vmem:[%s5 + $0x1f0] sm:$0xff]
    %v2958 = vld [vmem:[%s5 + $0x1f8] sm:$0xff]
    %v2959 = vld [vmem:[%s5 + $0x200] sm:$0xff]
    %v2960 = vld [vmem:[%s5 + $0x208] sm:$0xff]
    %v2961 = vld [vmem:[%s5 + $0x210] sm:$0xff]
    %v2962 = vld [vmem:[%s5 + $0x218] sm:$0xff]
    %v2963 = vld [vmem:[%s5 + $0x220] sm:$0xff]
    %v2964 = vld [vmem:[%s5 + $0x228] sm:$0xff]
    %v2965 = vld [vmem:[%s5 + $0x230] sm:$0xff]
    %v2966 = vld [vmem:[%s5 + $0x238] sm:$0xff]
    %v2967 = vld [vmem:[%s5 + $0x240] sm:$0xff]
    %v2968 = vld [vmem:[%s5 + $0x248] sm:$0xff]
    %v2969 = vld [vmem:[%s5 + $0x250] sm:$0xff]
    %v2970 = vld [vmem:[%s5 + $0x258] sm:$0xff]
    %v2971 = vld [vmem:[%s5 + $0x260] sm:$0xff]
    %v2972 = vld [vmem:[%s5 + $0x268] sm:$0xff]
    %v2973 = vld [vmem:[%s5 + $0x270] sm:$0xff]
    %v2974 = vld [vmem:[%s5 + $0x278] sm:$0xff]
    %v2975 = vld [vmem:[%s5 + $0x280] sm:$0xff]
    %v2976 = vld [vmem:[%s5 + $0x288] sm:$0xff]
    %v2977 = vld [vmem:[%s5 + $0x290] sm:$0xff]
    %v2978 = vld [vmem:[%s5 + $0x298] sm:$0xff]
    %v2979 = vld [vmem:[%s5 + $0x2a0] sm:$0xff]
    %v2980 = vld [vmem:[%s5 + $0x2a8] sm:$0xff]
    %v2981 = vld [vmem:[%s5 + $0x2b0] sm:$0xff]
    %v2982 = vld [vmem:[%s5 + $0x2b8] sm:$0xff]
    %v2983 = vld [vmem:[%s5 + $0x2c0] sm:$0xff]
    %v2984 = vld [vmem:[%s5 + $0x2c8] sm:$0xff]
    %v2985 = vld [vmem:[%s5 + $0x2d0] sm:$0xff]
    %v2986 = vld [vmem:[%s5 + $0x2d8] sm:$0xff]
    %v2987 = vld [vmem:[%s5 + $0x2e0] sm:$0xff]
    %v2988 = vld [vmem:[%s5 + $0x2e8] sm:$0xff]
    %v2989 = vld [vmem:[%s5 + $0x2f0] sm:$0xff]
    %v2990 = vld [vmem:[%s5 + $0x2f8] sm:$0xff]
    %v2991 = vld [vmem:[%s5 + $0x300] sm:$0xff]
    %v2992 = vld [vmem:[%s5 + $0x308] sm:$0xff]
    %v2993 = vld [vmem:[%s5 + $0x310] sm:$0xff]
    %v2994 = vld [vmem:[%s5 + $0x318] sm:$0xff]
    %v2995 = vld [vmem:[%s5 + $0x320] sm:$0xff]
    %v2996 = vld [vmem:[%s5 + $0x328] sm:$0xff]
    %v2997 = vld [vmem:[%s5 + $0x330] sm:$0xff]
    %v2998 = vld [vmem:[%s5 + $0x338] sm:$0xff]
    %v2999 = vld [vmem:[%s5 + $0x340] sm:$0xff]
    %v3000 = vld [vmem:[%s5 + $0x348] sm:$0xff]
    %v3001 = vld [vmem:[%s5 + $0x350] sm:$0xff]
    %v3002 = vld [vmem:[%s5 + $0x358] sm:$0xff]
    %v3003 = vld [vmem:[%s5 + $0x360] sm:$0xff]
    %v3004 = vld [vmem:[%s5 + $0x368] sm:$0xff]
    %v3005 = vld [vmem:[%s5 + $0x370] sm:$0xff]
    %v3006 = vld [vmem:[%s5 + $0x378] sm:$0xff]
    %v3007 = vld [vmem:[%s5 + $0x380] sm:$0xff]
    %v3008 = vld [vmem:[%s5 + $0x388] sm:$0xff]
    %v3009 = vld [vmem:[%s5 + $0x390] sm:$0xff]
    %v3010 = vld [vmem:[%s5 + $0x398] sm:$0xff]
    %v3011 = vld [vmem:[%s5 + $0x3a0] sm:$0xff]
    %v3012 = vld [vmem:[%s5 + $0x3a8] sm:$0xff]
    %v3013 = vld [vmem:[%s5 + $0x3b0] sm:$0xff]
    %v3014 = vld [vmem:[%s5 + $0x3b8] sm:$0xff]
    %v3015 = vld [vmem:[%s5 + $0x3c0] sm:$0xff]
    %v3016 = vld [vmem:[%s5 + $0x3c8] sm:$0xff]
    %v3017 = vld [vmem:[%s5 + $0x3d0] sm:$0xff]
    %v3018 = vld [vmem:[%s5 + $0x3d8] sm:$0xff]
    %v3019 = vld [vmem:[%s5 + $0x3e0] sm:$0xff]
    %v3020 = vld [vmem:[%s5 + $0x3e8] sm:$0xff]
    %v3021 = vld [vmem:[%s5 + $0x3f0] sm:$0xff]
    %v3022 = vld [vmem:[%s5 + $0x3f8] sm:$0xff]
    %v3023 = vld [vmem:[%s6] sm:$0xf]
    %v3025 = vlaneseq
    %v3026 = vshrl.u32 %v3025, 7
    %v3027 = vsub.s32 0, %v3026
    %v3028 = vrot.slane %v3023, %v3027
    %v3029 = vlaneseq
    %v3030 = vshrl.u32 %v3029, 7
    %v3031 = vsub.s32 1, %v3030
    %v3032 = vrot.slane %v3023, %v3031
    %v3033 = vlaneseq
    %v3034 = vshrl.u32 %v3033, 7
    %v3035 = vsub.s32 2, %v3034
    %v3036 = vrot.slane %v3023, %v3035
    %v3037 = vlaneseq
    %v3038 = vshrl.u32 %v3037, 7
    %v3039 = vsub.s32 3, %v3038
    %v3040 = vrot.slane %v3023, %v3039
    %v3173 = vunpack.c.l.b16 %v2895
    %v3174 = vunpack.c.h.b16 %v2895
    %v3175 = vunpack.c.l.b16 %v2896
    %v3176 = vunpack.c.h.b16 %v2896
    %v3177 = vunpack.c.l.b16 %v2897
    %v3178 = vunpack.c.h.b16 %v2897
    %v3179 = vunpack.c.l.b16 %v2898
    %v3180 = vunpack.c.h.b16 %v2898
    %v3181 = vunpack.c.l.b16 %v2899
    %v3182 = vunpack.c.h.b16 %v2899
    %v3183 = vunpack.c.l.b16 %v2900
    %v3184 = vunpack.c.h.b16 %v2900
    %v3185 = vunpack.c.l.b16 %v2901
    %v3186 = vunpack.c.h.b16 %v2901
    %v3187 = vunpack.c.l.b16 %v2902
    %v3188 = vunpack.c.h.b16 %v2902
    %v3189 = vunpack.c.l.b16 %v2903
    %v3190 = vunpack.c.h.b16 %v2903
    %v3191 = vunpack.c.l.b16 %v2904
    %v3192 = vunpack.c.h.b16 %v2904
    %v3193 = vunpack.c.l.b16 %v2905
    %v3194 = vunpack.c.h.b16 %v2905
    %v3195 = vunpack.c.l.b16 %v2906
    %v3196 = vunpack.c.h.b16 %v2906
    %v3197 = vunpack.c.l.b16 %v2907
    %v3198 = vunpack.c.h.b16 %v2907
    %v3199 = vunpack.c.l.b16 %v2908
    %v3200 = vunpack.c.h.b16 %v2908
    %v3201 = vunpack.c.l.b16 %v2909
    %v3202 = vunpack.c.h.b16 %v2909
    %v3203 = vunpack.c.l.b16 %v2910
    %v3204 = vunpack.c.h.b16 %v2910
    %v3205 = vunpack.c.l.b16 %v2911
    %v3206 = vunpack.c.h.b16 %v2911
    %v3207 = vunpack.c.l.b16 %v2912
    %v3208 = vunpack.c.h.b16 %v2912
    %v3209 = vunpack.c.l.b16 %v2913
    %v3210 = vunpack.c.h.b16 %v2913
    %v3211 = vunpack.c.l.b16 %v2914
    %v3212 = vunpack.c.h.b16 %v2914
    %v3213 = vunpack.c.l.b16 %v2915
    %v3214 = vunpack.c.h.b16 %v2915
    %v3215 = vunpack.c.l.b16 %v2916
    %v3216 = vunpack.c.h.b16 %v2916
    %v3217 = vunpack.c.l.b16 %v2917
    %v3218 = vunpack.c.h.b16 %v2917
    %v3219 = vunpack.c.l.b16 %v2918
    %v3220 = vunpack.c.h.b16 %v2918
    %v3221 = vunpack.c.l.b16 %v2919
    %v3222 = vunpack.c.h.b16 %v2919
    %v3223 = vunpack.c.l.b16 %v2920
    %v3224 = vunpack.c.h.b16 %v2920
    %v3225 = vunpack.c.l.b16 %v2921
    %v3226 = vunpack.c.h.b16 %v2921
    %v3227 = vunpack.c.l.b16 %v2922
    %v3228 = vunpack.c.h.b16 %v2922
    %v3229 = vunpack.c.l.b16 %v2923
    %v3230 = vunpack.c.h.b16 %v2923
    %v3231 = vunpack.c.l.b16 %v2924
    %v3232 = vunpack.c.h.b16 %v2924
    %v3233 = vunpack.c.l.b16 %v2925
    %v3234 = vunpack.c.h.b16 %v2925
    %v3235 = vunpack.c.l.b16 %v2926
    %v3236 = vunpack.c.h.b16 %v2926
    %v3237 = vunpack.c.l.b16 %v2927
    %v3238 = vunpack.c.h.b16 %v2927
    %v3239 = vunpack.c.l.b16 %v2928
    %v3240 = vunpack.c.h.b16 %v2928
    %v3241 = vunpack.c.l.b16 %v2929
    %v3242 = vunpack.c.h.b16 %v2929
    %v3243 = vunpack.c.l.b16 %v2930
    %v3244 = vunpack.c.h.b16 %v2930
    %v3245 = vunpack.c.l.b16 %v2931
    %v3246 = vunpack.c.h.b16 %v2931
    %v3247 = vunpack.c.l.b16 %v2932
    %v3248 = vunpack.c.h.b16 %v2932
    %v3249 = vunpack.c.l.b16 %v2933
    %v3250 = vunpack.c.h.b16 %v2933
    %v3251 = vunpack.c.l.b16 %v2934
    %v3252 = vunpack.c.h.b16 %v2934
    %v3253 = vunpack.c.l.b16 %v2935
    %v3254 = vunpack.c.h.b16 %v2935
    %v3255 = vunpack.c.l.b16 %v2936
    %v3256 = vunpack.c.h.b16 %v2936
    %v3257 = vunpack.c.l.b16 %v2937
    %v3258 = vunpack.c.h.b16 %v2937
    %v3259 = vunpack.c.l.b16 %v2938
    %v3260 = vunpack.c.h.b16 %v2938
    %v3261 = vunpack.c.l.b16 %v2939
    %v3262 = vunpack.c.h.b16 %v2939
    %v3263 = vunpack.c.l.b16 %v2940
    %v3264 = vunpack.c.h.b16 %v2940
    %v3265 = vunpack.c.l.b16 %v2941
    %v3266 = vunpack.c.h.b16 %v2941
    %v3267 = vunpack.c.l.b16 %v2942
    %v3268 = vunpack.c.h.b16 %v2942
    %v3269 = vunpack.c.l.b16 %v2943
    %v3270 = vunpack.c.h.b16 %v2943
    %v3271 = vunpack.c.l.b16 %v2944
    %v3272 = vunpack.c.h.b16 %v2944
    %v3273 = vunpack.c.l.b16 %v2945
    %v3274 = vunpack.c.h.b16 %v2945
    %v3275 = vunpack.c.l.b16 %v2946
    %v3276 = vunpack.c.h.b16 %v2946
    %v3277 = vunpack.c.l.b16 %v2947
    %v3278 = vunpack.c.h.b16 %v2947
    %v3279 = vunpack.c.l.b16 %v2948
    %v3280 = vunpack.c.h.b16 %v2948
    %v3281 = vunpack.c.l.b16 %v2949
    %v3282 = vunpack.c.h.b16 %v2949
    %v3283 = vunpack.c.l.b16 %v2950
    %v3284 = vunpack.c.h.b16 %v2950
    %v3285 = vunpack.c.l.b16 %v2951
    %v3286 = vunpack.c.h.b16 %v2951
    %v3287 = vunpack.c.l.b16 %v2952
    %v3288 = vunpack.c.h.b16 %v2952
    %v3289 = vunpack.c.l.b16 %v2953
    %v3290 = vunpack.c.h.b16 %v2953
    %v3291 = vunpack.c.l.b16 %v2954
    %v3292 = vunpack.c.h.b16 %v2954
    %v3293 = vunpack.c.l.b16 %v2955
    %v3294 = vunpack.c.h.b16 %v2955
    %v3295 = vunpack.c.l.b16 %v2956
    %v3296 = vunpack.c.h.b16 %v2956
    %v3297 = vunpack.c.l.b16 %v2957
    %v3298 = vunpack.c.h.b16 %v2957
    %v3299 = vunpack.c.l.b16 %v2958
    %v3300 = vunpack.c.h.b16 %v2958
    %v3301 = vunpack.c.l.b16 %v2959
    %v3302 = vunpack.c.h.b16 %v2959
    %v3303 = vunpack.c.l.b16 %v2960
    %v3304 = vunpack.c.h.b16 %v2960
    %v3305 = vunpack.c.l.b16 %v2961
    %v3306 = vunpack.c.h.b16 %v2961
    %v3307 = vunpack.c.l.b16 %v2962
    %v3308 = vunpack.c.h.b16 %v2962
    %v3309 = vunpack.c.l.b16 %v2963
    %v3310 = vunpack.c.h.b16 %v2963
    %v3311 = vunpack.c.l.b16 %v2964
    %v3312 = vunpack.c.h.b16 %v2964
    %v3313 = vunpack.c.l.b16 %v2965
    %v3314 = vunpack.c.h.b16 %v2965
    %v3315 = vunpack.c.l.b16 %v2966
    %v3316 = vunpack.c.h.b16 %v2966
    %v3317 = vunpack.c.l.b16 %v2967
    %v3318 = vunpack.c.h.b16 %v2967
    %v3319 = vunpack.c.l.b16 %v2968
    %v3320 = vunpack.c.h.b16 %v2968
    %v3321 = vunpack.c.l.b16 %v2969
    %v3322 = vunpack.c.h.b16 %v2969
    %v3323 = vunpack.c.l.b16 %v2970
    %v3324 = vunpack.c.h.b16 %v2970
    %v3325 = vunpack.c.l.b16 %v2971
    %v3326 = vunpack.c.h.b16 %v2971
    %v3327 = vunpack.c.l.b16 %v2972
    %v3328 = vunpack.c.h.b16 %v2972
    %v3329 = vunpack.c.l.b16 %v2973
    %v3330 = vunpack.c.h.b16 %v2973
    %v3331 = vunpack.c.l.b16 %v2974
    %v3332 = vunpack.c.h.b16 %v2974
    %v3333 = vunpack.c.l.b16 %v2975
    %v3334 = vunpack.c.h.b16 %v2975
    %v3335 = vunpack.c.l.b16 %v2976
    %v3336 = vunpack.c.h.b16 %v2976
    %v3337 = vunpack.c.l.b16 %v2977
    %v3338 = vunpack.c.h.b16 %v2977
    %v3339 = vunpack.c.l.b16 %v2978
    %v3340 = vunpack.c.h.b16 %v2978
    %v3341 = vunpack.c.l.b16 %v2979
    %v3342 = vunpack.c.h.b16 %v2979
    %v3343 = vunpack.c.l.b16 %v2980
    %v3344 = vunpack.c.h.b16 %v2980
    %v3345 = vunpack.c.l.b16 %v2981
    %v3346 = vunpack.c.h.b16 %v2981
    %v3347 = vunpack.c.l.b16 %v2982
    %v3348 = vunpack.c.h.b16 %v2982
    %v3349 = vunpack.c.l.b16 %v2983
    %v3350 = vunpack.c.h.b16 %v2983
    %v3351 = vunpack.c.l.b16 %v2984
    %v3352 = vunpack.c.h.b16 %v2984
    %v3353 = vunpack.c.l.b16 %v2985
    %v3354 = vunpack.c.h.b16 %v2985
    %v3355 = vunpack.c.l.b16 %v2986
    %v3356 = vunpack.c.h.b16 %v2986
    %v3357 = vunpack.c.l.b16 %v2987
    %v3358 = vunpack.c.h.b16 %v2987
    %v3359 = vunpack.c.l.b16 %v2988
    %v3360 = vunpack.c.h.b16 %v2988
    %v3361 = vunpack.c.l.b16 %v2989
    %v3362 = vunpack.c.h.b16 %v2989
    %v3363 = vunpack.c.l.b16 %v2990
    %v3364 = vunpack.c.h.b16 %v2990
    %v3365 = vunpack.c.l.b16 %v2991
    %v3366 = vunpack.c.h.b16 %v2991
    %v3367 = vunpack.c.l.b16 %v2992
    %v3368 = vunpack.c.h.b16 %v2992
    %v3369 = vunpack.c.l.b16 %v2993
    %v3370 = vunpack.c.h.b16 %v2993
    %v3371 = vunpack.c.l.b16 %v2994
    %v3372 = vunpack.c.h.b16 %v2994
    %v3373 = vunpack.c.l.b16 %v2995
    %v3374 = vunpack.c.h.b16 %v2995
    %v3375 = vunpack.c.l.b16 %v2996
    %v3376 = vunpack.c.h.b16 %v2996
    %v3377 = vunpack.c.l.b16 %v2997
    %v3378 = vunpack.c.h.b16 %v2997
    %v3379 = vunpack.c.l.b16 %v2998
    %v3380 = vunpack.c.h.b16 %v2998
    %v3381 = vunpack.c.l.b16 %v2999
    %v3382 = vunpack.c.h.b16 %v2999
    %v3383 = vunpack.c.l.b16 %v3000
    %v3384 = vunpack.c.h.b16 %v3000
    %v3385 = vunpack.c.l.b16 %v3001
    %v3386 = vunpack.c.h.b16 %v3001
    %v3387 = vunpack.c.l.b16 %v3002
    %v3388 = vunpack.c.h.b16 %v3002
    %v3389 = vunpack.c.l.b16 %v3003
    %v3390 = vunpack.c.h.b16 %v3003
    %v3391 = vunpack.c.l.b16 %v3004
    %v3392 = vunpack.c.h.b16 %v3004
    %v3393 = vunpack.c.l.b16 %v3005
    %v3394 = vunpack.c.h.b16 %v3005
    %v3395 = vunpack.c.l.b16 %v3006
    %v3396 = vunpack.c.h.b16 %v3006
    %v3397 = vunpack.c.l.b16 %v3007
    %v3398 = vunpack.c.h.b16 %v3007
    %v3399 = vunpack.c.l.b16 %v3008
    %v3400 = vunpack.c.h.b16 %v3008
    %v3401 = vunpack.c.l.b16 %v3009
    %v3402 = vunpack.c.h.b16 %v3009
    %v3403 = vunpack.c.l.b16 %v3010
    %v3404 = vunpack.c.h.b16 %v3010
    %v3405 = vunpack.c.l.b16 %v3011
    %v3406 = vunpack.c.h.b16 %v3011
    %v3407 = vunpack.c.l.b16 %v3012
    %v3408 = vunpack.c.h.b16 %v3012
    %v3409 = vunpack.c.l.b16 %v3013
    %v3410 = vunpack.c.h.b16 %v3013
    %v3411 = vunpack.c.l.b16 %v3014
    %v3412 = vunpack.c.h.b16 %v3014
    %v3413 = vunpack.c.l.b16 %v3015
    %v3414 = vunpack.c.h.b16 %v3015
    %v3415 = vunpack.c.l.b16 %v3016
    %v3416 = vunpack.c.h.b16 %v3016
    %v3417 = vunpack.c.l.b16 %v3017
    %v3418 = vunpack.c.h.b16 %v3017
    %v3419 = vunpack.c.l.b16 %v3018
    %v3420 = vunpack.c.h.b16 %v3018
    %v3421 = vunpack.c.l.b16 %v3019
    %v3422 = vunpack.c.h.b16 %v3019
    %v3423 = vunpack.c.l.b16 %v3020
    %v3424 = vunpack.c.h.b16 %v3020
    %v3425 = vunpack.c.l.b16 %v3021
    %v3426 = vunpack.c.h.b16 %v3021
    %v3427 = vunpack.c.l.b16 %v3022
    %v3428 = vunpack.c.h.b16 %v3022
    %v3429 = vpack.c.b16 %v3177, %v3173
    %v3430 = vpack.c.b16 %v3178, %v3174
    %v3431 = vpack.c.b16 %v3179, %v3175
    %v3432 = vpack.c.b16 %v3180, %v3176
    %v3433 = vpack.c.b16 %v3185, %v3181
    %v3434 = vpack.c.b16 %v3186, %v3182
    %v3435 = vpack.c.b16 %v3187, %v3183
    %v3436 = vpack.c.b16 %v3188, %v3184
    %v3437 = vpack.c.b16 %v3193, %v3189
    %v3438 = vpack.c.b16 %v3194, %v3190
    %v3439 = vpack.c.b16 %v3195, %v3191
    %v3440 = vpack.c.b16 %v3196, %v3192
    %v3441 = vpack.c.b16 %v3201, %v3197
    %v3442 = vpack.c.b16 %v3202, %v3198
    %v3443 = vpack.c.b16 %v3203, %v3199
    %v3444 = vpack.c.b16 %v3204, %v3200
    %v3445 = vpack.c.b16 %v3209, %v3205
    %v3446 = vpack.c.b16 %v3210, %v3206
    %v3447 = vpack.c.b16 %v3211, %v3207
    %v3448 = vpack.c.b16 %v3212, %v3208
    %v3449 = vpack.c.b16 %v3217, %v3213
    %v3450 = vpack.c.b16 %v3218, %v3214
    %v3451 = vpack.c.b16 %v3219, %v3215
    %v3452 = vpack.c.b16 %v3220, %v3216
    %v3453 = vpack.c.b16 %v3225, %v3221
    %v3454 = vpack.c.b16 %v3226, %v3222
    %v3455 = vpack.c.b16 %v3227, %v3223
    %v3456 = vpack.c.b16 %v3228, %v3224
    %v3457 = vpack.c.b16 %v3233, %v3229
    %v3458 = vpack.c.b16 %v3234, %v3230
    %v3459 = vpack.c.b16 %v3235, %v3231
    %v3460 = vpack.c.b16 %v3236, %v3232
    %v3461 = vpack.c.b16 %v3241, %v3237
    %v3462 = vpack.c.b16 %v3242, %v3238
    %v3463 = vpack.c.b16 %v3243, %v3239
    %v3464 = vpack.c.b16 %v3244, %v3240
    %v3465 = vpack.c.b16 %v3249, %v3245
    %v3466 = vpack.c.b16 %v3250, %v3246
    %v3467 = vpack.c.b16 %v3251, %v3247
    %v3468 = vpack.c.b16 %v3252, %v3248
    %v3469 = vpack.c.b16 %v3257, %v3253
    %v3470 = vpack.c.b16 %v3258, %v3254
    %v3471 = vpack.c.b16 %v3259, %v3255
    %v3472 = vpack.c.b16 %v3260, %v3256
    %v3473 = vpack.c.b16 %v3265, %v3261
    %v3474 = vpack.c.b16 %v3266, %v3262
    %v3475 = vpack.c.b16 %v3267, %v3263
    %v3476 = vpack.c.b16 %v3268, %v3264
    %v3477 = vpack.c.b16 %v3273, %v3269
    %v3478 = vpack.c.b16 %v3274, %v3270
    %v3479 = vpack.c.b16 %v3275, %v3271
    %v3480 = vpack.c.b16 %v3276, %v3272
    %v3481 = vpack.c.b16 %v3281, %v3277
    %v3482 = vpack.c.b16 %v3282, %v3278
    %v3483 = vpack.c.b16 %v3283, %v3279
    %v3484 = vpack.c.b16 %v3284, %v3280
    %v3485 = vpack.c.b16 %v3289, %v3285
    %v3486 = vpack.c.b16 %v3290, %v3286
    %v3487 = vpack.c.b16 %v3291, %v3287
    %v3488 = vpack.c.b16 %v3292, %v3288
    %v3489 = vpack.c.b16 %v3297, %v3293
    %v3490 = vpack.c.b16 %v3298, %v3294
    %v3491 = vpack.c.b16 %v3299, %v3295
    %v3492 = vpack.c.b16 %v3300, %v3296
    %v3493 = vpack.c.b16 %v3305, %v3301
    %v3494 = vpack.c.b16 %v3306, %v3302
    %v3495 = vpack.c.b16 %v3307, %v3303
    %v3496 = vpack.c.b16 %v3308, %v3304
    %v3497 = vpack.c.b16 %v3313, %v3309
    %v3498 = vpack.c.b16 %v3314, %v3310
    %v3499 = vpack.c.b16 %v3315, %v3311
    %v3500 = vpack.c.b16 %v3316, %v3312
    %v3501 = vpack.c.b16 %v3321, %v3317
    %v3502 = vpack.c.b16 %v3322, %v3318
    %v3503 = vpack.c.b16 %v3323, %v3319
    %v3504 = vpack.c.b16 %v3324, %v3320
    %v3505 = vpack.c.b16 %v3329, %v3325
    %v3506 = vpack.c.b16 %v3330, %v3326
    %v3507 = vpack.c.b16 %v3331, %v3327
    %v3508 = vpack.c.b16 %v3332, %v3328
    %v3509 = vpack.c.b16 %v3337, %v3333
    %v3510 = vpack.c.b16 %v3338, %v3334
    %v3511 = vpack.c.b16 %v3339, %v3335
    %v3512 = vpack.c.b16 %v3340, %v3336
    %v3513 = vpack.c.b16 %v3345, %v3341
    %v3514 = vpack.c.b16 %v3346, %v3342
    %v3515 = vpack.c.b16 %v3347, %v3343
    %v3516 = vpack.c.b16 %v3348, %v3344
    %v3517 = vpack.c.b16 %v3353, %v3349
    %v3518 = vpack.c.b16 %v3354, %v3350
    %v3519 = vpack.c.b16 %v3355, %v3351
    %v3520 = vpack.c.b16 %v3356, %v3352
    %v3521 = vpack.c.b16 %v3361, %v3357
    %v3522 = vpack.c.b16 %v3362, %v3358
    %v3523 = vpack.c.b16 %v3363, %v3359
    %v3524 = vpack.c.b16 %v3364, %v3360
    %v3525 = vpack.c.b16 %v3369, %v3365
    %v3526 = vpack.c.b16 %v3370, %v3366
    %v3527 = vpack.c.b16 %v3371, %v3367
    %v3528 = vpack.c.b16 %v3372, %v3368
    %v3529 = vpack.c.b16 %v3377, %v3373
    %v3530 = vpack.c.b16 %v3378, %v3374
    %v3531 = vpack.c.b16 %v3379, %v3375
    %v3532 = vpack.c.b16 %v3380, %v3376
    %v3533 = vpack.c.b16 %v3385, %v3381
    %v3534 = vpack.c.b16 %v3386, %v3382
    %v3535 = vpack.c.b16 %v3387, %v3383
    %v3536 = vpack.c.b16 %v3388, %v3384
    %v3537 = vpack.c.b16 %v3393, %v3389
    %v3538 = vpack.c.b16 %v3394, %v3390
    %v3539 = vpack.c.b16 %v3395, %v3391
    %v3540 = vpack.c.b16 %v3396, %v3392
    %v3541 = vpack.c.b16 %v3401, %v3397
    %v3542 = vpack.c.b16 %v3402, %v3398
    %v3543 = vpack.c.b16 %v3403, %v3399
    %v3544 = vpack.c.b16 %v3404, %v3400
    %v3545 = vpack.c.b16 %v3409, %v3405
    %v3546 = vpack.c.b16 %v3410, %v3406
    %v3547 = vpack.c.b16 %v3411, %v3407
    %v3548 = vpack.c.b16 %v3412, %v3408
    %v3549 = vpack.c.b16 %v3417, %v3413
    %v3550 = vpack.c.b16 %v3418, %v3414
    %v3551 = vpack.c.b16 %v3419, %v3415
    %v3552 = vpack.c.b16 %v3420, %v3416
    %v3553 = vpack.c.b16 %v3425, %v3421
    %v3554 = vpack.c.b16 %v3426, %v3422
    %v3555 = vpack.c.b16 %v3427, %v3423
    %v3556 = vpack.c.b16 %v3428, %v3424
    %3685 = vmatprep.subr.bf16.mxu0 %v3458
    %3686 = vmatpush1.bf16.msra.mxu0 %v3457
    %3687 = vmatprep.subr.bf16.mxu0 %v3454
    %3688 = vmatpush1.bf16.msra.mxu0 %v3453
    %3689 = vmatprep.subr.bf16.mxu0 %v3450
    %3690 = vmatpush1.bf16.msra.mxu0 %v3449
    %3691 = vmatprep.subr.bf16.mxu0 %v3446
    %3692 = vmatpush1.bf16.msra.mxu0 %v3445
    %3693 = vmatprep.subr.bf16.mxu0 %v3442
    %3694 = vmatpush1.bf16.msra.mxu0 %v3441
    %3695 = vmatprep.subr.bf16.mxu0 %v3438
    %3696 = vmatpush1.bf16.msra.mxu0 %v3437
    %3697 = vmatprep.subr.bf16.mxu0 %v3434
    %3698 = vmatpush1.bf16.msra.mxu0 %v3433
    %3699 = vmatprep.subr.bf16.mxu0 %v3430
    %3700 = vmatpush1.bf16.msra.mxu0 %v3429
    %3701 = vmatprep.subr.bf16.mxu0 %v3490
    %3702 = vmatpush2.bf16.msra.mxu0 %v3489
    %3703 = vmatprep.subr.bf16.mxu0 %v3486
    %3704 = vmatpush2.bf16.msra.mxu0 %v3485
    %3705 = vmatprep.subr.bf16.mxu0 %v3482
    %3706 = vmatpush2.bf16.msra.mxu0 %v3481
    %3707 = vmatprep.subr.bf16.mxu0 %v3478
    %3708 = vmatpush2.bf16.msra.mxu0 %v3477
    %3709 = vmatprep.subr.bf16.mxu0 %v3474
    %3710 = vmatpush2.bf16.msra.mxu0 %v3473
    %3711 = vmatprep.subr.bf16.mxu0 %v3470
    %3712 = vmatpush2.bf16.msra.mxu0 %v3469
    %3713 = vmatprep.subr.bf16.mxu0 %v3466
    %3714 = vmatpush2.bf16.msra.mxu0 %v3465
    %3715 = vmatprep.subr.bf16.mxu0 %v3462
    %3716 = vmatpush2.bf16.msra.mxu0 %v3461
    %3717 = vmatprep.mubr.bf16.mxu0 %v2892
    %3718 = vmatmul.mubr.bf16.gmra.mxu0 %v2891
    %v3719 = vpop.f32.mrf.mxu0
    %v3720 = vadd.f32 %v3028, %v3719
    %v3721 = vpop.f32.mrf.mxu0
    %v3722 = vadd.f32 %v3032, %v3721
    %v3723 = vpop.f32.mrf.mxu0
    %v3724 = vpop.f32.mrf.mxu0
    %3725 = vdwg.mxu0
    %3726 = vmatprep.subr.bf16.mxu0 %v3522
    %3727 = vmatpush1.bf16.msra.mxu0 %v3521
    %3728 = vmatprep.subr.bf16.mxu0 %v3518
    %3729 = vmatpush1.bf16.msra.mxu0 %v3517
    %3730 = vmatprep.subr.bf16.mxu0 %v3514
    %3731 = vmatpush1.bf16.msra.mxu0 %v3513
    %3732 = vmatprep.subr.bf16.mxu0 %v3510
    %3733 = vmatpush1.bf16.msra.mxu0 %v3509
    %3734 = vmatprep.subr.bf16.mxu0 %v3506
    %3735 = vmatpush1.bf16.msra.mxu0 %v3505
    %3736 = vmatprep.subr.bf16.mxu0 %v3502
    %3737 = vmatpush1.bf16.msra.mxu0 %v3501
    %3738 = vmatprep.subr.bf16.mxu0 %v3498
    %3739 = vmatpush1.bf16.msra.mxu0 %v3497
    %3740 = vmatprep.subr.bf16.mxu0 %v3494
    %3741 = vmatpush1.bf16.msra.mxu0 %v3493
    %3742 = vmatprep.subr.bf16.mxu0 %v3554
    %3743 = vmatpush2.bf16.msra.mxu0 %v3553
    %3744 = vmatprep.subr.bf16.mxu0 %v3550
    %3745 = vmatpush2.bf16.msra.mxu0 %v3549
    %3746 = vmatprep.subr.bf16.mxu0 %v3546
    %3747 = vmatpush2.bf16.msra.mxu0 %v3545
    %3748 = vmatprep.subr.bf16.mxu0 %v3542
    %3749 = vmatpush2.bf16.msra.mxu0 %v3541
    %3750 = vmatprep.subr.bf16.mxu0 %v3538
    %3751 = vmatpush2.bf16.msra.mxu0 %v3537
    %3752 = vmatprep.subr.bf16.mxu0 %v3534
    %3753 = vmatpush2.bf16.msra.mxu0 %v3533
    %3754 = vmatprep.subr.bf16.mxu0 %v3530
    %3755 = vmatpush2.bf16.msra.mxu0 %v3529
    %3756 = vmatprep.subr.bf16.mxu0 %v3526
    %3757 = vmatpush2.bf16.msra.mxu0 %v3525
    %3758 = vmatprep.mubr.bf16.mxu0 %v2894
    %3759 = vmatmul.mubr.bf16.gmra.mxu0 %v2893
    %v3760 = vpop.f32.mrf.mxu0
    %v3761 = vadd.f32 %v3720, %v3760
    %v3762 = vpop.f32.mrf.mxu0
    %v3763 = vadd.f32 %v3722, %v3762
    %v3764 = vpop.f32.mrf.mxu0
    %v3765 = vpop.f32.mrf.mxu0
    %3766 = vdwg.mxu0
    %3767 = vmatprep.subr.bf16.mxu0 %v3460
    %3768 = vmatpush1.bf16.msra.mxu0 %v3459
    %3769 = vmatprep.subr.bf16.mxu0 %v3456
    %3770 = vmatpush1.bf16.msra.mxu0 %v3455
    %3771 = vmatprep.subr.bf16.mxu0 %v3452
    %3772 = vmatpush1.bf16.msra.mxu0 %v3451
    %3773 = vmatprep.subr.bf16.mxu0 %v3448
    %3774 = vmatpush1.bf16.msra.mxu0 %v3447
    %3775 = vmatprep.subr.bf16.mxu0 %v3444
    %3776 = vmatpush1.bf16.msra.mxu0 %v3443
    %3777 = vmatprep.subr.bf16.mxu0 %v3440
    %3778 = vmatpush1.bf16.msra.mxu0 %v3439
    %3779 = vmatprep.subr.bf16.mxu0 %v3436
    %3780 = vmatpush1.bf16.msra.mxu0 %v3435
    %3781 = vmatprep.subr.bf16.mxu0 %v3432
    %3782 = vmatpush1.bf16.msra.mxu0 %v3431
    %3783 = vmatprep.subr.bf16.mxu0 %v3492
    %3784 = vmatpush2.bf16.msra.mxu0 %v3491
    %3785 = vmatprep.subr.bf16.mxu0 %v3488
    %3786 = vmatpush2.bf16.msra.mxu0 %v3487
    %3787 = vmatprep.subr.bf16.mxu0 %v3484
    %3788 = vmatpush2.bf16.msra.mxu0 %v3483
    %3789 = vmatprep.subr.bf16.mxu0 %v3480
    %3790 = vmatpush2.bf16.msra.mxu0 %v3479
    %3791 = vmatprep.subr.bf16.mxu0 %v3476
    %3792 = vmatpush2.bf16.msra.mxu0 %v3475
    %3793 = vmatprep.subr.bf16.mxu0 %v3472
    %3794 = vmatpush2.bf16.msra.mxu0 %v3471
    %3795 = vmatprep.subr.bf16.mxu0 %v3468
    %3796 = vmatpush2.bf16.msra.mxu0 %v3467
    %3797 = vmatprep.subr.bf16.mxu0 %v3464
    %3798 = vmatpush2.bf16.msra.mxu0 %v3463
    %3799 = vmatprep.mubr.bf16.mxu0 %v2892
    %3800 = vmatmul.mubr.bf16.gmra.mxu0 %v2891
    %v3801 = vpop.f32.mrf.mxu0
    %v3802 = vadd.f32 %v3036, %v3801
    %v3803 = vpop.f32.mrf.mxu0
    %v3804 = vadd.f32 %v3040, %v3803
    %v3805 = vpop.f32.mrf.mxu0
    %v3806 = vpop.f32.mrf.mxu0
    %3807 = vdwg.mxu0
    %3808 = vmatprep.subr.bf16.mxu0 %v3524
    %3809 = vmatpush1.bf16.msra.mxu0 %v3523
    %3810 = vmatprep.subr.bf16.mxu0 %v3520
    %3811 = vmatpush1.bf16.msra.mxu0 %v3519
    %3812 = vmatprep.subr.bf16.mxu0 %v3516
    %3813 = vmatpush1.bf16.msra.mxu0 %v3515
    %3814 = vmatprep.subr.bf16.mxu0 %v3512
    %3815 = vmatpush1.bf16.msra.mxu0 %v3511
    %3816 = vmatprep.subr.bf16.mxu0 %v3508
    %3817 = vmatpush1.bf16.msra.mxu0 %v3507
    %3818 = vmatprep.subr.bf16.mxu0 %v3504
    %3819 = vmatpush1.bf16.msra.mxu0 %v3503
    %3820 = vmatprep.subr.bf16.mxu0 %v3500
    %3821 = vmatpush1.bf16.msra.mxu0 %v3499
    %3822 = vmatprep.subr.bf16.mxu0 %v3496
    %3823 = vmatpush1.bf16.msra.mxu0 %v3495
    %3824 = vmatprep.subr.bf16.mxu0 %v3556
    %3825 = vmatpush2.bf16.msra.mxu0 %v3555
    %3826 = vmatprep.subr.bf16.mxu0 %v3552
    %3827 = vmatpush2.bf16.msra.mxu0 %v3551
    %3828 = vmatprep.subr.bf16.mxu0 %v3548
    %3829 = vmatpush2.bf16.msra.mxu0 %v3547
    %3830 = vmatprep.subr.bf16.mxu0 %v3544
    %3831 = vmatpush2.bf16.msra.mxu0 %v3543
    %3832 = vmatprep.subr.bf16.mxu0 %v3540
    %3833 = vmatpush2.bf16.msra.mxu0 %v3539
    %3834 = vmatprep.subr.bf16.mxu0 %v3536
    %3835 = vmatpush2.bf16.msra.mxu0 %v3535
    %3836 = vmatprep.subr.bf16.mxu0 %v3532
    %3837 = vmatpush2.bf16.msra.mxu0 %v3531
    %3838 = vmatprep.subr.bf16.mxu0 %v3528
    %3839 = vmatpush2.bf16.msra.mxu0 %v3527
    %3840 = vmatprep.mubr.bf16.mxu0 %v2894
    %3841 = vmatmul.mubr.bf16.gmra.mxu0 %v2893
    %v3842 = vpop.f32.mrf.mxu0
    %v3843 = vadd.f32 %v3802, %v3842
    %v3844 = vpop.f32.mrf.mxu0
    %v3845 = vadd.f32 %v3804, %v3844
    %v3846 = vpop.f32.mrf.mxu0
    %v3847 = vpop.f32.mrf.mxu0
    %3848 = vdwg.mxu0
    %3849 = vst [vmem:[#allocation5] sm:$0xff] %v3761
    %3850 = vst [vmem:[#allocation5 + $0x8] sm:$0xff] %v3763
    %3851 = vst [vmem:[#allocation5 + $0x10] sm:$0xff] %v3843
    %vm3852 = vcmask 130048
    %3853 = vst.msk [vmem:[#allocation5 + $0x18] sm:$0xff] %vm3852, %v3845
    // Predicated region
    $region34: #{tpu_custom_call.1} parent=1 // pred_check
      _
    $region35: #{tpu_custom_call.1} parent=1 // pred_check_branch
      %3855 = sbr.rel (0) target = $region37
    $region36: #{tpu_custom_call.1} parent=1 // pred_region
      %s3857 = ssub.s32 512, 512
      %3858 = vsyncadd [#allocation4], %s3857
      %s3860 = sshll.u32 [#allocation5], 4
      %s3861 = int_to_ptr.vmem [resolvable:$true] %s3860
      %3863 = dma.vmem_to_hbm [thread:$0]  %s3861, 512, %s7, [#allocation4]
    $region37: #{tpu_custom_call.1} parent=1 // pred_fallthru
      _
    // Predicated region
    $region38: #{tpu_custom_call.1} parent=1 // pred_check
      _
    $region39: #{tpu_custom_call.1} parent=1 // pred_check_branch
      %3865 = sbr.rel (0) target = $region41
    $region40: #{tpu_custom_call.1} parent=1 // pred_region
      %3866 = dma.done [#allocation4], 512
    $region41: #{tpu_custom_call.1} parent=1 // pred_fallthru
      _
    %3867 = vsyncpa [#allocation3], 1
    %3868 = vsyncpa [#allocation4], 1

</llo_original>
